<compile_context>
chip_gen: v5e
topology: v5e:2x2
jax: 0.10.0
libtpu: 0.0.40
codegen_flags: <defaults>
</compile_context>

<pallas_src>
import functools

import jax
import jax.numpy as jnp
from jax import lax
from jax.experimental import pallas as pl
from jax.experimental.pallas import tpu as pltpu

_LANE = 128


def _ceil_to(x, m):
    return ((x + m - 1) // m) * m


@functools.lru_cache(maxsize=None)
def _tpu_config():
    """(num_tensorcores, vmem_limit_bytes) — conservative, exception-safe."""
    n_cores = 1
    vmem_cap = 128 * 1024 * 1024
    try:
        dev = jax.devices()[0]
        n_cores = max(1, int(getattr(dev, "num_cores", 1) or 1))
    except Exception:
        pass
    try:
        # v7x has only 64 MiB per TC: never request all of physical VMEM.
        vmem_cap = int(pltpu.get_tpu_info().vmem_capacity_bytes)
    except Exception:
        pass
    vmem_limit = max(32 * 1024 * 1024, min(64 * 1024 * 1024, (vmem_cap * 7) // 10))
    return n_cores, vmem_limit


# ---------------------------------------------------------------------------
# Pallas kernels
# ---------------------------------------------------------------------------
def _conv_bn_stats_kernel(x_ref, w_ref, y_ref, stats_ref, *,
                          ksize, stride, Wo, tile_h):
    """One output-row-tile of a direct conv as a single big-K MXU matmul,
    plus fused BN partial statistics.

    x_ref    : (S2, Hb, Wb, Cin_p)          phase-split zero-padded image
                                            (whole image; block index constant
                                            across the row-tile grid axis)
    w_ref    : (ksize*ksize*Cin_p, Cout_p)  tap-concatenated weight matrix
    y_ref    : (tile_h, Wo, Cout_p)         conv output rows (pre-BN)
    stats_ref: (1, 2, Cout_p)               [sum(y), sum(y*y)] over this tile
    """
    cin_p = x_ref.shape[-1]
    h = pl.program_id(1)
    base = pl.multiple_of(h * tile_h, tile_h)
    taps = []
    for di in range(ksize):
        for dj in range(ksize):
            ph = (di % stride) * stride + (dj % stride)   # phase index (static)
            oi, oj = di // stride, dj // stride           # offset inside phase
            patch = x_ref[ph, pl.ds(base + oi, tile_h), oj:oj + Wo, :]
            taps.append(patch.reshape(tile_h * Wo, cin_p))
    pm = taps[0] if len(taps) == 1 else jnp.concatenate(taps, axis=-1)
    acc = jnp.dot(pm, w_ref[...], preferred_element_type=jnp.float32)
    cout_p = acc.shape[-1]
    y_ref[...] = acc.reshape(tile_h, Wo, cout_p)
    ssum = jnp.sum(acc, axis=0, keepdims=True)
    ssq = jnp.sum(acc * acc, axis=0, keepdims=True)
    stats_ref[...] = jnp.concatenate([ssum, ssq], axis=0).reshape(1, 2, cout_p)


def _bn_relu_pad_kernel(y_ref, s_ref, b_ref, o_ref, *, pad):
    """relu(bn1(conv1)) written directly into conv2's zero-padded input layout."""
    H1, W1, _ = y_ref.shape
    a = jnp.maximum(y_ref[...] * s_ref[...] + b_ref[...], 0.0)
    o_ref[...] = jnp.zeros_like(o_ref)
    o_ref[pad:pad + H1, pad:pad + W1, :] = a


def _bn_add_relu_kernel(y_ref, s_ref, b_ref, yi_ref, si_ref, bi_ref, o_ref):
    """relu( bn2(conv2(out1)) + identity-branch )   (plain identity: si=1, bi=0)."""
    o_ref[...] = jnp.maximum(
        y_ref[...] * s_ref[...] + b_ref[...]
        + yi_ref[...] * si_ref[...] + bi_ref[...], 0.0)


# ---------------------------------------------------------------------------
# Tiling helpers
# ---------------------------------------------------------------------------
def _pick_tile_h(Ho, Wo, n_cores, max_rows=256):
    """Largest divisor of Ho keeping tile_h*Wo <= max_rows; on multi-TC parts
    ensure >= 2 row-tiles per image so each core has work to pipeline."""
    t = Ho
    while t > 1 and (Ho % t != 0 or t * Wo > max_rows):
        t -= 1
    if n_cores > 1 and t == Ho and Ho % 2 == 0:
        t = Ho // 2
    return t


def _row_tile(rows, n_cores, target=2048):
    if rows <= 8:
        return rows
    t = max(8, min(target, (rows // 8) * 8))
    if n_cores > 1 and rows >= 2 * n_cores * 8:
        t = min(t, max(8, (rows // (2 * n_cores) // 8) * 8))
    return t


# ---------------------------------------------------------------------------
# Conv input prep (zero-pad + phase-split; ~1x copy, not im2col)
# ---------------------------------------------------------------------------
def _prep_conv_input(x_nhwc, ksize, stride, pad):
    """xprep[n, p*s+q, ib, jb, c] == xpad[n, ib*s+p, jb*s+q, c].

    Makes every in-kernel tap slice a unit-stride static/dynamic window."""
    N, H, W, C = x_nhwc.shape
    s = stride
    Ho = (H + 2 * pad - ksize) // s + 1
    Wo = (W + 2 * pad - ksize) // s + 1
    Hb = max((ksize - 1) // s + Ho, -(-(H + 2 * pad) // s))
    Wb = max((ksize - 1) // s + Wo, -(-(W + 2 * pad) // s))
    xpad = jnp.zeros((N, s * Hb, s * Wb, C), x_nhwc.dtype)
    xpad = xpad.at[:, pad:pad + H, pad:pad + W, :].set(x_nhwc)
    xprep = (xpad.reshape(N, Hb, s, Wb, s, C)
                 .transpose(0, 2, 4, 1, 3, 5)
                 .reshape(N, s * s, Hb, Wb, C))
    return xprep, Ho, Wo


# ---------------------------------------------------------------------------
# Conv + fused BN batch-statistics
# ---------------------------------------------------------------------------
def pallas_conv_bn(xprep, Ho, Wo, w_oihw, gamma, beta, ksize, stride, eps=1e-5):
    """Direct conv (single tap-concatenated MXU matmul per tile) + BN fold.

    xprep: (N, S2, Hb, Wb, Cin_p) phase-split, zero-padded, channel-padded.
    Returns y (N, Ho, Wo, Cout_p), scale (1, Cout_p), bias (1, Cout_p) with
    bn(conv(x) + conv_bias) == y * scale + bias  (training-mode batch stats).
    """
    n_cores, vmem_limit = _tpu_config()
    Cout, Cin = w_oihw.shape[0], w_oihw.shape[1]
    cout_p = _ceil_to(Cout, _LANE)

    # Drop phases no tap ever reads (matters for the 1x1 strided shortcut).
    m = min(stride - 1, ksize - 1)
    n_ph = m * (stride + 1) + 1
    if xprep.shape[1] > n_ph:
        xprep = xprep[:, :n_ph]
    N, S2, Hb, Wb, cin_p = xprep.shape

    # (k,k,Cin,Cout) zero-padded to (k,k,Cin_p,Cout_p), rows in tap-major order
    # matching the in-kernel concatenation order.
    wmat = jnp.transpose(w_oihw.astype(jnp.float32), (2, 3, 1, 0))
    wfull = jnp.zeros((ksize, ksize, cin_p, cout_p), jnp.float32)
    wfull = wfull.at[:, :, :Cin, :Cout].set(wmat)
    wfull = wfull.reshape(ksize * ksize * cin_p, cout_p)

    tile_h = _pick_tile_h(Ho, Wo, n_cores)
    n_h = Ho // tile_h
    kernel = functools.partial(_conv_bn_stats_kernel, ksize=ksize,
                               stride=stride, Wo=Wo, tile_h=tile_h)
    flops = 2 * N * Ho * Wo * ksize * ksize * cin_p * cout_p
    bytes_acc = 4 * (xprep.size + wfull.size + N * Ho * Wo * cout_p)

    y, stats = pl.pallas_call(
        kernel,
        out_shape=(jax.ShapeDtypeStruct((N, Ho, Wo, cout_p), jnp.float32),
                   jax.ShapeDtypeStruct((N, n_h, 2, cout_p), jnp.float32)),
        grid=(N, n_h),
        in_specs=[
            # whole phase-split image; same block for every h step -> one DMA/image
            pl.BlockSpec((None, S2, Hb, Wb, cin_p), lambda n, h: (n, 0, 0, 0, 0)),
            # weights: constant block index, fetched once and kept resident
            pl.BlockSpec((ksize * ksize * cin_p, cout_p), lambda n, h: (0, 0)),
        ],
        out_specs=[
            pl.BlockSpec((None, tile_h, Wo, cout_p), lambda n, h: (n, h, 0, 0)),
            pl.BlockSpec((None, 1, 2, cout_p), lambda n, h: (n, h, 0, 0)),
        ],
        compiler_params=pltpu.CompilerParams(
            dimension_semantics=("parallel", "arbitrary"),
            vmem_limit_bytes=vmem_limit),
        cost_estimate=pl.CostEstimate(flops=flops, transcendentals=0,
                                      bytes_accessed=bytes_acc),
    )(xprep, wfull)

    # Finalize BN (training-mode batch stats, biased variance) from tiny partials.
    M = N * Ho * Wo
    tot = jnp.sum(stats, axis=(0, 1))                    # (2, Cout_p)
    mean = tot[0] / M
    var = jnp.maximum(tot[1] / M - mean * mean, 0.0)     # clamp single-pass var
    gp = jnp.zeros((cout_p,), jnp.float32).at[:Cout].set(gamma.astype(jnp.float32))
    bp = jnp.zeros((cout_p,), jnp.float32).at[:Cout].set(beta.astype(jnp.float32))
    scale = gp * lax.rsqrt(var + eps)
    bias = bp - mean * scale                             # conv bias cancels exactly
    return y, scale.reshape(1, cout_p), bias.reshape(1, cout_p)


# ---------------------------------------------------------------------------
# Fused elementwise epilogues (all lane-dense: C padded to 128)
# ---------------------------------------------------------------------------
def pallas_bn_relu_pad(y, scale, bias, pad):
    """relu(y*scale+bias) written straight into the zero-padded
    (N, H+2p, W+2p, Cp) buffer that conv2 (stride 1) consumes — removes one
    full HBM round trip of the intermediate activation."""
    n_cores, vmem_limit = _tpu_config()
    N, H1, W1, Cp = y.shape
    Hb, Wb = H1 + 2 * pad, W1 + 2 * pad
    return pl.pallas_call(
        functools.partial(_bn_relu_pad_kernel, pad=pad),
        out_shape=jax.ShapeDtypeStruct((N, Hb, Wb, Cp), jnp.float32),
        grid=(N,),
        in_specs=[pl.BlockSpec((None, H1, W1, Cp), lambda n: (n, 0, 0, 0)),
                  pl.BlockSpec((1, Cp), lambda n: (0, 0)),
                  pl.BlockSpec((1, Cp), lambda n: (0, 0))],
        out_specs=pl.BlockSpec((None, Hb, Wb, Cp), lambda n: (n, 0, 0, 0)),
        compiler_params=pltpu.CompilerParams(
            dimension_semantics=("parallel",),
            vmem_limit_bytes=vmem_limit),
    )(y, scale, bias)


def pallas_bn_add_relu(y2d, scale, bias, yid2d, scale_id, bias_id):
    n_cores, vmem_limit = _tpu_config()
    M, Cp = y2d.shape
    t = _row_tile(M, n_cores)
    big = pl.BlockSpec((t, Cp), lambda i: (i, 0))
    small = pl.BlockSpec((1, Cp), lambda i: (0, 0))
    return pl.pallas_call(
        _bn_add_relu_kernel,
        out_shape=jax.ShapeDtypeStruct((M, Cp), jnp.float32),
        grid=(pl.cdiv(M, t),),
        in_specs=[big, small, small, big, small, small],
        out_specs=pl.BlockSpec((t, Cp), lambda i: (i, 0)),
        compiler_params=pltpu.CompilerParams(
            dimension_semantics=("parallel",),
            vmem_limit_bytes=vmem_limit),
    )(y2d, scale, bias, yid2d, scale_id, bias_id)


# ---------------------------------------------------------------------------
# Residual block forward (NCHW in / NCHW out, like the PyTorch module)
# ---------------------------------------------------------------------------
def residual_forward(x_nchw, params, stride=1, downsample=False, eps=1e-5):
    x = jnp.transpose(x_nchw, (0, 2, 3, 1)).astype(jnp.float32)      # NHWC
    N, H, W, Cin = x.shape
    Cout = params['w1'].shape[0]
    cin_p = _ceil_to(Cin, _LANE)
    cout_p = _ceil_to(Cout, _LANE)

    # channel-pad once so every kernel block is 128-lane dense
    xp = jnp.zeros((N, H, W, cin_p), jnp.float32).at[..., :Cin].set(x)

    # conv1 (+ fused BN1 partial stats)
    x1prep, H1, W1 = _prep_conv_input(xp, 3, stride, 1)
    y1, s1, b1 = pallas_conv_bn(x1prep, H1, W1, params['w1'], params['g1'],
                                params['be1'], 3, stride, eps)

    # bn1 -> relu, fused with zero-padding into conv2's input layout (S2 = 1)
    x2pad = pallas_bn_relu_pad(y1, s1, b1, pad=1)
    x2prep = x2pad.reshape(N, 1, H1 + 2, W1 + 2, cout_p)

    # conv2 (+ fused BN2 partial stats)
    y2, s2, b2 = pallas_conv_bn(x2prep, H1, W1, params['w2'], params['g2'],
                                params['be2'], 3, 1, eps)

    # identity branch
    if downsample:
        xdprep, Hd, Wd = _prep_conv_input(xp, 1, stride, 0)
        yd, sd, bd = pallas_conv_bn(xdprep, Hd, Wd, params['wd'], params['gd'],
                                    params['bed'], 1, stride, eps)
        yid = yd.reshape(N * H1 * W1, cout_p)
    else:
        # plain identity shortcut (requires Cin == Cout, stride == 1)
        yid = xp.reshape(N * H * W, cin_p)
        sd = jnp.ones((1, cout_p), jnp.float32)
        bd = jnp.zeros((1, cout_p), jnp.float32)

    # relu( bn2(conv2(out1)) + identity )  — one fused lane-dense kernel
    out = pallas_bn_add_relu(y2.reshape(N * H1 * W1, cout_p), s2, b2, yid, sd, bd)
    out = out.reshape(N, H1, W1, cout_p)[..., :Cout]
    return jnp.transpose(out, (0, 3, 1, 2))                          # NCHW


# ---------------------------------------------------------------------------
# Pure-JAX reference (mirrors the PyTorch forward, NCHW, training-mode BN)
# ---------------------------------------------------------------------------
def ref_forward(x, params, stride=1, downsample=False, eps=1e-5):
    def conv(xx, w, b, s, pad):
        y = lax.conv_general_dilated(xx, w, (s, s), [(pad, pad), (pad, pad)],
                                     dimension_numbers=('NCHW', 'OIHW', 'NCHW'))
        return y + b.reshape(1, -1, 1, 1)

    def bn(xx, g, be):
        mean = jnp.mean(xx, axis=(0, 2, 3), keepdims=True)
        var = jnp.mean((xx - mean) ** 2, axis=(0, 2, 3), keepdims=True)
        return g.reshape(1, -1, 1, 1) * (xx - mean) / jnp.sqrt(var + eps) \
            + be.reshape(1, -1, 1, 1)

    out = jax.nn.relu(bn(conv(x, params['w1'], params['b1'], stride, 1),
                         params['g1'], params['be1']))
    out = bn(conv(out, params['w2'], params['b2'], 1, 1),
             params['g2'], params['be2'])
    identity = x
    if downsample:
        identity = bn(conv(x, params['wd'], params['bd'], stride, 0),
                      params['gd'], params['bed'])
    return jax.nn.relu(identity + out)


# ---------------------------------------------------------------------------
def make_params(key, cin, cout, downsample):
    ks = jax.random.split(key, 12)
    p = {
        'w1': 0.1 * jax.random.normal(ks[0], (cout, cin, 3, 3), jnp.float32),
        'b1': 0.05 * jax.random.normal(ks[1], (cout,), jnp.float32),
        'g1': 1.0 + 0.1 * jax.random.normal(ks[2], (cout,), jnp.float32),
        'be1': 0.1 * jax.random.normal(ks[3], (cout,), jnp.float32),
        'w2': 0.1 * jax.random.normal(ks[4], (cout, cout, 3, 3), jnp.float32),
        'b2': 0.05 * jax.random.normal(ks[5], (cout,), jnp.float32),
        'g2': 1.0 + 0.1 * jax.random.normal(ks[6], (cout,), jnp.float32),
        'be2': 0.1 * jax.random.normal(ks[7], (cout,), jnp.float32),
    }
    if downsample:
        p.update({
            'wd': 0.1 * jax.random.normal(ks[8], (cout, cin, 1, 1), jnp.float32),
            'bd': 0.05 * jax.random.normal(ks[9], (cout,), jnp.float32),
            'gd': 1.0 + 0.1 * jax.random.normal(ks[10], (cout,), jnp.float32),
            'bed': 0.1 * jax.random.normal(ks[11], (cout,), jnp.float32),
        })
    return p


if __name__ == "__main__":
    key = jax.random.PRNGKey(0)
    kx, kp1, kp2 = jax.random.split(key, 3)

    x = jax.random.normal(kx, (2, 8, 16, 16), jnp.float32)           # NCHW

    # Case 1: identity shortcut (in=out=8, stride=1, downsample=False)
    params1 = make_params(kp1, 8, 8, downsample=False)
    fwd1 = jax.jit(lambda xx, pp: residual_forward(xx, pp, stride=1,
                                                   downsample=False))
    out1 = jax.block_until_ready(fwd1(x, params1))
    ref1 = ref_forward(x, params1, stride=1, downsample=False)
    assert out1.shape == (2, 8, 16, 16)
    err1 = float(jnp.max(jnp.abs(out1 - ref1)))
    assert jnp.allclose(out1, ref1, rtol=1e-4, atol=1e-4), \
        f"mismatch (no downsample): {err1}"

    # Case 2: projection shortcut (in=8 -> out=16, stride=2, downsample=True)
    params2 = make_params(kp2, 8, 16, downsample=True)
    fwd2 = jax.jit(lambda xx, pp: residual_forward(xx, pp, stride=2,
                                                   downsample=True))
    out2 = jax.block_until_ready(fwd2(x, params2))
    ref2 = ref_forward(x, params2, stride=2, downsample=True)
    assert out2.shape == (2, 16, 8, 8)
    err2 = float(jnp.max(jnp.abs(out2 - ref2)))
    assert jnp.allclose(out2, ref2, rtol=1e-4, atol=1e-4), \
        f"mismatch (downsample): {err2}"

    print("KERNEL_OK")
</pallas_src>

<mosaic_0001>
module attributes {stable_mosaic.version = 11 : i64} {
  func.func @_conv_bn_stats_kernel(%arg0: i32, %arg1: i32, %arg2: memref<1x1x18x18x128xf32, #tpu.memory_space<vmem>>, %arg3: memref<1152x128xf32, #tpu.memory_space<vmem>>, %arg4: memref<1x16x16x128xf32, #tpu.memory_space<vmem>>, %arg5: memref<1x1x2x128xf32, #tpu.memory_space<vmem>>) attributes {dimension_semantics = [#tpu.dimension_semantics<parallel>, #tpu.dimension_semantics<arbitrary>], iteration_bounds = array<i64: 2, 1>, scalar_prefetch = 0 : i64, scratch_operands = 0 : i64, tpu.core_type = #tpu.core_type<tc>, window_params = [{transform_indices = @transform_0, window_bounds = array<i64: 1, 1, 18, 18, 128>}, {pipeline_mode = #tpu.pipeline_mode<synchronous>, transform_indices = @transform_1, window_bounds = array<i64: 1152, 128>}, {transform_indices = @transform_2, window_bounds = array<i64: 1, 16, 16, 128>}, {transform_indices = @transform_3, window_bounds = array<i64: 1, 1, 2, 128>}]} {
    %c16_i32 = arith.constant 16 : i32
    %0 = arith.muli %arg1, %c16_i32 : i32
    %1 = tpu.assume_multiple %0, 16 : i32
    %c0_i32 = arith.constant 0 : i32
    %2 = arith.addi %1, %c0_i32 : i32
    %c0 = arith.constant 0 : index
    %c0_0 = arith.constant 0 : index
    %3 = arith.index_cast %2 : i32 to index
    %c0_1 = arith.constant 0 : index
    %c0_2 = arith.constant 0 : index
    %4 = vector.load %arg2[%c0, %c0_0, %3, %c0_1, %c0_2] : memref<1x1x18x18x128xf32, #tpu.memory_space<vmem>>, vector<1x1x16x16x128xf32>
    %5 = vector.shape_cast %4 : vector<1x1x16x16x128xf32> to vector<16x16x128xf32>
    %6 = vector.shape_cast %5 : vector<16x16x128xf32> to vector<256x128xf32>
    %c0_i32_3 = arith.constant 0 : i32
    %7 = arith.addi %1, %c0_i32_3 : i32
    %c0_4 = arith.constant 0 : index
    %c0_5 = arith.constant 0 : index
    %8 = arith.index_cast %7 : i32 to index
    %c1 = arith.constant 1 : index
    %c0_6 = arith.constant 0 : index
    %9 = vector.load %arg2[%c0_4, %c0_5, %8, %c1, %c0_6] : memref<1x1x18x18x128xf32, #tpu.memory_space<vmem>>, vector<1x1x16x16x128xf32>
    %10 = vector.shape_cast %9 : vector<1x1x16x16x128xf32> to vector<16x16x128xf32>
    %11 = vector.shape_cast %10 : vector<16x16x128xf32> to vector<256x128xf32>
    %c0_i32_7 = arith.constant 0 : i32
    %12 = arith.addi %1, %c0_i32_7 : i32
    %c0_8 = arith.constant 0 : index
    %c0_9 = arith.constant 0 : index
    %13 = arith.index_cast %12 : i32 to index
    %c2 = arith.constant 2 : index
    %c0_10 = arith.constant 0 : index
    %14 = vector.load %arg2[%c0_8, %c0_9, %13, %c2, %c0_10] : memref<1x1x18x18x128xf32, #tpu.memory_space<vmem>>, vector<1x1x16x16x128xf32>
    %15 = vector.shape_cast %14 : vector<1x1x16x16x128xf32> to vector<16x16x128xf32>
    %16 = vector.shape_cast %15 : vector<16x16x128xf32> to vector<256x128xf32>
    %c1_i32 = arith.constant 1 : i32
    %17 = arith.addi %1, %c1_i32 : i32
    %c0_11 = arith.constant 0 : index
    %c0_12 = arith.constant 0 : index
    %18 = arith.index_cast %17 : i32 to index
    %c0_13 = arith.constant 0 : index
    %c0_14 = arith.constant 0 : index
    %19 = vector.load %arg2[%c0_11, %c0_12, %18, %c0_13, %c0_14] : memref<1x1x18x18x128xf32, #tpu.memory_space<vmem>>, vector<1x1x16x16x128xf32>
    %20 = vector.shape_cast %19 : vector<1x1x16x16x128xf32> to vector<16x16x128xf32>
    %21 = vector.shape_cast %20 : vector<16x16x128xf32> to vector<256x128xf32>
    %c1_i32_15 = arith.constant 1 : i32
    %22 = arith.addi %1, %c1_i32_15 : i32
    %c0_16 = arith.constant 0 : index
    %c0_17 = arith.constant 0 : index
    %23 = arith.index_cast %22 : i32 to index
    %c1_18 = arith.constant 1 : index
    %c0_19 = arith.constant 0 : index
    %24 = vector.load %arg2[%c0_16, %c0_17, %23, %c1_18, %c0_19] : memref<1x1x18x18x128xf32, #tpu.memory_space<vmem>>, vector<1x1x16x16x128xf32>
    %25 = vector.shape_cast %24 : vector<1x1x16x16x128xf32> to vector<16x16x128xf32>
    %26 = vector.shape_cast %25 : vector<16x16x128xf32> to vector<256x128xf32>
    %c1_i32_20 = arith.constant 1 : i32
    %27 = arith.addi %1, %c1_i32_20 : i32
    %c0_21 = arith.constant 0 : index
    %c0_22 = arith.constant 0 : index
    %28 = arith.index_cast %27 : i32 to index
    %c2_23 = arith.constant 2 : index
    %c0_24 = arith.constant 0 : index
    %29 = vector.load %arg2[%c0_21, %c0_22, %28, %c2_23, %c0_24] : memref<1x1x18x18x128xf32, #tpu.memory_space<vmem>>, vector<1x1x16x16x128xf32>
    %30 = vector.shape_cast %29 : vector<1x1x16x16x128xf32> to vector<16x16x128xf32>
    %31 = vector.shape_cast %30 : vector<16x16x128xf32> to vector<256x128xf32>
    %c2_i32 = arith.constant 2 : i32
    %32 = arith.addi %1, %c2_i32 : i32
    %c0_25 = arith.constant 0 : index
    %c0_26 = arith.constant 0 : index
    %33 = arith.index_cast %32 : i32 to index
    %c0_27 = arith.constant 0 : index
    %c0_28 = arith.constant 0 : index
    %34 = vector.load %arg2[%c0_25, %c0_26, %33, %c0_27, %c0_28] : memref<1x1x18x18x128xf32, #tpu.memory_space<vmem>>, vector<1x1x16x16x128xf32>
    %35 = vector.shape_cast %34 : vector<1x1x16x16x128xf32> to vector<16x16x128xf32>
    %36 = vector.shape_cast %35 : vector<16x16x128xf32> to vector<256x128xf32>
    %c2_i32_29 = arith.constant 2 : i32
    %37 = arith.addi %1, %c2_i32_29 : i32
    %c0_30 = arith.constant 0 : index
    %c0_31 = arith.constant 0 : index
    %38 = arith.index_cast %37 : i32 to index
    %c1_32 = arith.constant 1 : index
    %c0_33 = arith.constant 0 : index
    %39 = vector.load %arg2[%c0_30, %c0_31, %38, %c1_32, %c0_33] : memref<1x1x18x18x128xf32, #tpu.memory_space<vmem>>, vector<1x1x16x16x128xf32>
    %40 = vector.shape_cast %39 : vector<1x1x16x16x128xf32> to vector<16x16x128xf32>
    %41 = vector.shape_cast %40 : vector<16x16x128xf32> to vector<256x128xf32>
    %c2_i32_34 = arith.constant 2 : i32
    %42 = arith.addi %1, %c2_i32_34 : i32
    %c0_35 = arith.constant 0 : index
    %c0_36 = arith.constant 0 : index
    %43 = arith.index_cast %42 : i32 to index
    %c2_37 = arith.constant 2 : index
    %c0_38 = arith.constant 0 : index
    %44 = vector.load %arg2[%c0_35, %c0_36, %43, %c2_37, %c0_38] : memref<1x1x18x18x128xf32, #tpu.memory_space<vmem>>, vector<1x1x16x16x128xf32>
    %45 = vector.shape_cast %44 : vector<1x1x16x16x128xf32> to vector<16x16x128xf32>
    %46 = vector.shape_cast %45 : vector<16x16x128xf32> to vector<256x128xf32>
    %47 = tpu.concatenate %6, %11, %16, %21, %26, %31, %36, %41, %46 in 1 : vector<256x128xf32>, vector<256x128xf32>, vector<256x128xf32>, vector<256x128xf32>, vector<256x128xf32>, vector<256x128xf32>, vector<256x128xf32>, vector<256x128xf32>, vector<256x128xf32> -> vector<256x1152xf32>
    %c0_39 = arith.constant 0 : index
    %c0_40 = arith.constant 0 : index
    %48 = vector.load %arg3[%c0_39, %c0_40] : memref<1152x128xf32, #tpu.memory_space<vmem>>, vector<1152x128xf32>
    %cst = arith.constant dense<0.000000e+00> : vector<256x128xf32>
    %49 = tpu.matmul %47, %48, %cst {dimension_numbers = #tpu.dot_dimension_numbers<[1], [0], [0], [1], [0, 0, 1, 1], [], []>} : vector<256x1152xf32>, vector<1152x128xf32>, vector<256x128xf32> -> vector<256x128xf32>
    %50 = vector.shape_cast %49 : vector<256x128xf32> to vector<16x16x128xf32>
    %c0_41 = arith.constant 0 : index
    %c0_42 = arith.constant 0 : index
    %c0_43 = arith.constant 0 : index
    %c0_44 = arith.constant 0 : index
    %51 = vector.load %arg4[%c0_41, %c0_42, %c0_43, %c0_44] : memref<1x16x16x128xf32, #tpu.memory_space<vmem>>, vector<1x16x16x128xf32>
    %52 = vector.shape_cast %51 : vector<1x16x16x128xf32> to vector<16x16x128xf32>
    %53 = vector.shape_cast %50 : vector<16x16x128xf32> to vector<1x16x16x128xf32>
    tpu.vector_store %arg4[%c0_41, %c0_42, %c0_43, %c0_44], %53 {strides = array<i32>} : memref<1x16x16x128xf32, #tpu.memory_space<vmem>>, vector<1x16x16x128xf32>,
    %cst_45 = arith.constant dense<0.000000e+00> : vector<128xf32>
    %54 = vector.multi_reduction <add>, %49, %cst_45 [0] : vector<256x128xf32> to vector<128xf32>
    %55 = vector.shape_cast %54 : vector<128xf32> to vector<1x128xf32>
    %56 = arith.mulf %49, %49 : vector<256x128xf32>
    %cst_46 = arith.constant dense<0.000000e+00> : vector<128xf32>
    %57 = vector.multi_reduction <add>, %56, %cst_46 [0] : vector<256x128xf32> to vector<128xf32>
    %58 = vector.shape_cast %57 : vector<128xf32> to vector<1x128xf32>
    %59 = tpu.concatenate %55, %58 in 0 : vector<1x128xf32>, vector<1x128xf32> -> vector<2x128xf32>
    %60 = vector.shape_cast %59 : vector<2x128xf32> to vector<1x2x128xf32>
    %c0_47 = arith.constant 0 : index
    %c0_48 = arith.constant 0 : index
    %c0_49 = arith.constant 0 : index
    %c0_50 = arith.constant 0 : index
    %61 = vector.load %arg5[%c0_47, %c0_48, %c0_49, %c0_50] : memref<1x1x2x128xf32, #tpu.memory_space<vmem>>, vector<1x1x2x128xf32>
    %62 = vector.shape_cast %61 : vector<1x1x2x128xf32> to vector<1x2x128xf32>
    %63 = vector.shape_cast %60 : vector<1x2x128xf32> to vector<1x1x2x128xf32>
    tpu.vector_store %arg5[%c0_47, %c0_48, %c0_49, %c0_50], %63 {strides = array<i32>} : memref<1x1x2x128xf32, #tpu.memory_space<vmem>>, vector<1x1x2x128xf32>,
    return
  }
  func.func @transform_0(%arg0: i32, %arg1: i32) -> (i32, i32, i32, i32, i32) {
    %c0_i32 = arith.constant 0 : i32
    %c0_i32_0 = arith.constant 0 : i32
    %c0_i32_1 = arith.constant 0 : i32
    %c0_i32_2 = arith.constant 0 : i32
    %c0_i32_3 = arith.constant 0 : i32
    return %arg0, %c0_i32, %c0_i32_0, %c0_i32_1, %c0_i32_2 : i32, i32, i32, i32, i32
  }
  func.func @transform_1(%arg0: i32, %arg1: i32) -> (i32, i32) {
    %c0_i32 = arith.constant 0 : i32
    %c0_i32_0 = arith.constant 0 : i32
    %c0_i32_1 = arith.constant 0 : i32
    return %c0_i32, %c0_i32_0 : i32, i32
  }
  func.func @transform_2(%arg0: i32, %arg1: i32) -> (i32, i32, i32, i32) {
    %c0_i32 = arith.constant 0 : i32
    %c0_i32_0 = arith.constant 0 : i32
    %c0_i32_1 = arith.constant 0 : i32
    return %arg0, %arg1, %c0_i32, %c0_i32_0 : i32, i32, i32, i32
  }
  func.func @transform_3(%arg0: i32, %arg1: i32) -> (i32, i32, i32, i32) {
    %c0_i32 = arith.constant 0 : i32
    %c0_i32_0 = arith.constant 0 : i32
    %c0_i32_1 = arith.constant 0 : i32
    return %arg0, %arg1, %c0_i32, %c0_i32_0 : i32, i32, i32, i32
  }
}

module attributes {stable_mosaic.version = 11 : i64} {
  func.func @_bn_relu_pad_kernel(%arg0: i32, %arg1: memref<1x16x16x128xf32, #tpu.memory_space<vmem>>, %arg2: memref<1x128xf32, #tpu.memory_space<vmem>>, %arg3: memref<1x128xf32, #tpu.memory_space<vmem>>, %arg4: memref<1x18x18x128xf32, #tpu.memory_space<vmem>>) attributes {dimension_semantics = [#tpu.dimension_semantics<parallel>], iteration_bounds = array<i64: 2>, scalar_prefetch = 0 : i64, scratch_operands = 0 : i64, tpu.core_type = #tpu.core_type<tc>, window_params = [{transform_indices = @transform_0, window_bounds = array<i64: 1, 16, 16, 128>}, {pipeline_mode = #tpu.pipeline_mode<synchronous>, transform_indices = @transform_1, window_bounds = array<i64: 1, 128>}, {pipeline_mode = #tpu.pipeline_mode<synchronous>, transform_indices = @transform_2, window_bounds = array<i64: 1, 128>}, {transform_indices = @transform_3, window_bounds = array<i64: 1, 18, 18, 128>}]} {
    %c0 = arith.constant 0 : index
    %c0_0 = arith.constant 0 : index
    %c0_1 = arith.constant 0 : index
    %c0_2 = arith.constant 0 : index
    %0 = vector.load %arg1[%c0, %c0_0, %c0_1, %c0_2] : memref<1x16x16x128xf32, #tpu.memory_space<vmem>>, vector<1x16x16x128xf32>
    %1 = vector.shape_cast %0 : vector<1x16x16x128xf32> to vector<16x16x128xf32>
    %c0_3 = arith.constant 0 : index
    %c0_4 = arith.constant 0 : index
    %2 = vector.load %arg2[%c0_3, %c0_4] : memref<1x128xf32, #tpu.memory_space<vmem>>, vector<1x128xf32>
    %3 = vector.shape_cast %2 : vector<1x128xf32> to vector<1x1x128xf32>
    %4 = vector.broadcast %3 : vector<1x1x128xf32> to vector<16x16x128xf32>
    %5 = arith.mulf %1, %4 : vector<16x16x128xf32>
    %c0_5 = arith.constant 0 : index
    %c0_6 = arith.constant 0 : index
    %6 = vector.load %arg3[%c0_5, %c0_6] : memref<1x128xf32, #tpu.memory_space<vmem>>, vector<1x128xf32>
    %7 = vector.shape_cast %6 : vector<1x128xf32> to vector<1x1x128xf32>
    %8 = vector.broadcast %7 : vector<1x1x128xf32> to vector<16x16x128xf32>
    %9 = arith.addf %5, %8 : vector<16x16x128xf32>
    %cst = arith.constant 0.000000e+00 : f32
    %10 = vector.broadcast %cst : f32 to vector<16x16x128xf32>
    %11 = arith.maximumf %9, %10 : vector<16x16x128xf32>
    %cst_7 = arith.constant 0.000000e+00 : f32
    %12 = vector.broadcast %cst_7 : f32 to vector<18x18x128xf32>
    %c0_8 = arith.constant 0 : index
    %c0_9 = arith.constant 0 : index
    %c0_10 = arith.constant 0 : index
    %c0_11 = arith.constant 0 : index
    %13 = vector.load %arg4[%c0_8, %c0_9, %c0_10, %c0_11] : memref<1x18x18x128xf32, #tpu.memory_space<vmem>>, vector<1x18x18x128xf32>
    %14 = vector.shape_cast %13 : vector<1x18x18x128xf32> to vector<18x18x128xf32>
    %15 = vector.shape_cast %12 : vector<18x18x128xf32> to vector<1x18x18x128xf32>
    tpu.vector_store %arg4[%c0_8, %c0_9, %c0_10, %c0_11], %15 {strides = array<i32>} : memref<1x18x18x128xf32, #tpu.memory_space<vmem>>, vector<1x18x18x128xf32>,
    %c0_12 = arith.constant 0 : index
    %c1 = arith.constant 1 : index
    %c1_13 = arith.constant 1 : index
    %c0_14 = arith.constant 0 : index
    %16 = vector.load %arg4[%c0_12, %c1, %c1_13, %c0_14] : memref<1x18x18x128xf32, #tpu.memory_space<vmem>>, vector<1x16x16x128xf32>
    %17 = vector.shape_cast %16 : vector<1x16x16x128xf32> to vector<16x16x128xf32>
    %18 = vector.shape_cast %11 : vector<16x16x128xf32> to vector<1x16x16x128xf32>
    tpu.vector_store %arg4[%c0_12, %c1, %c1_13, %c0_14], %18 {strides = array<i32>} : memref<1x18x18x128xf32, #tpu.memory_space<vmem>>, vector<1x16x16x128xf32>,
    return
  }
  func.func @transform_0(%arg0: i32) -> (i32, i32, i32, i32) {
    %c0_i32 = arith.constant 0 : i32
    %c0_i32_0 = arith.constant 0 : i32
    %c0_i32_1 = arith.constant 0 : i32
    %c0_i32_2 = arith.constant 0 : i32
    return %arg0, %c0_i32, %c0_i32_0, %c0_i32_1 : i32, i32, i32, i32
  }
  func.func @transform_1(%arg0: i32) -> (i32, i32) {
    %c0_i32 = arith.constant 0 : i32
    %c0_i32_0 = arith.constant 0 : i32
    %c0_i32_1 = arith.constant 0 : i32
    return %c0_i32, %c0_i32_0 : i32, i32
  }
  func.func @transform_2(%arg0: i32) -> (i32, i32) {
    %c0_i32 = arith.constant 0 : i32
    %c0_i32_0 = arith.constant 0 : i32
    %c0_i32_1 = arith.constant 0 : i32
    return %c0_i32, %c0_i32_0 : i32, i32
  }
  func.func @transform_3(%arg0: i32) -> (i32, i32, i32, i32) {
    %c0_i32 = arith.constant 0 : i32
    %c0_i32_0 = arith.constant 0 : i32
    %c0_i32_1 = arith.constant 0 : i32
    %c0_i32_2 = arith.constant 0 : i32
    return %arg0, %c0_i32, %c0_i32_0, %c0_i32_1 : i32, i32, i32, i32
  }
}

module attributes {stable_mosaic.version = 11 : i64} {
  func.func @_bn_add_relu_kernel(%arg0: i32, %arg1: memref<512x128xf32, #tpu.memory_space<vmem>>, %arg2: memref<1x128xf32, #tpu.memory_space<vmem>>, %arg3: memref<1x128xf32, #tpu.memory_space<vmem>>, %arg4: memref<512x128xf32, #tpu.memory_space<vmem>>, %arg5: memref<1x128xf32, #tpu.memory_space<vmem>>, %arg6: memref<1x128xf32, #tpu.memory_space<vmem>>, %arg7: memref<512x128xf32, #tpu.memory_space<vmem>>) attributes {dimension_semantics = [#tpu.dimension_semantics<parallel>], iteration_bounds = array<i64: 1>, scalar_prefetch = 0 : i64, scratch_operands = 0 : i64, tpu.core_type = #tpu.core_type<tc>, window_params = [{transform_indices = @transform_0, window_bounds = array<i64: 512, 128>}, {pipeline_mode = #tpu.pipeline_mode<synchronous>, transform_indices = @transform_1, window_bounds = array<i64: 1, 128>}, {pipeline_mode = #tpu.pipeline_mode<synchronous>, transform_indices = @transform_2, window_bounds = array<i64: 1, 128>}, {transform_indices = @transform_3, window_bounds = array<i64: 512, 128>}, {pipeline_mode = #tpu.pipeline_mode<synchronous>, transform_indices = @transform_4, window_bounds = array<i64: 1, 128>}, {pipeline_mode = #tpu.pipeline_mode<synchronous>, transform_indices = @transform_5, window_bounds = array<i64: 1, 128>}, {transform_indices = @transform_6, window_bounds = array<i64: 512, 128>}]} {
    %c0 = arith.constant 0 : index
    %c0_0 = arith.constant 0 : index
    %0 = vector.load %arg1[%c0, %c0_0] : memref<512x128xf32, #tpu.memory_space<vmem>>, vector<512x128xf32>
    %c0_1 = arith.constant 0 : index
    %c0_2 = arith.constant 0 : index
    %1 = vector.load %arg2[%c0_1, %c0_2] : memref<1x128xf32, #tpu.memory_space<vmem>>, vector<1x128xf32>
    %2 = vector.broadcast %1 : vector<1x128xf32> to vector<512x128xf32>
    %3 = arith.mulf %0, %2 : vector<512x128xf32>
    %c0_3 = arith.constant 0 : index
    %c0_4 = arith.constant 0 : index
    %4 = vector.load %arg3[%c0_3, %c0_4] : memref<1x128xf32, #tpu.memory_space<vmem>>, vector<1x128xf32>
    %5 = vector.broadcast %4 : vector<1x128xf32> to vector<512x128xf32>
    %6 = arith.addf %3, %5 : vector<512x128xf32>
    %c0_5 = arith.constant 0 : index
    %c0_6 = arith.constant 0 : index
    %7 = vector.load %arg4[%c0_5, %c0_6] : memref<512x128xf32, #tpu.memory_space<vmem>>, vector<512x128xf32>
    %c0_7 = arith.constant 0 : index
    %c0_8 = arith.constant 0 : index
    %8 = vector.load %arg5[%c0_7, %c0_8] : memref<1x128xf32, #tpu.memory_space<vmem>>, vector<1x128xf32>
    %9 = vector.broadcast %8 : vector<1x128xf32> to vector<512x128xf32>
    %10 = arith.mulf %7, %9 : vector<512x128xf32>
    %11 = arith.addf %6, %10 : vector<512x128xf32>
    %c0_9 = arith.constant 0 : index
    %c0_10 = arith.constant 0 : index
    %12 = vector.load %arg6[%c0_9, %c0_10] : memref<1x128xf32, #tpu.memory_space<vmem>>, vector<1x128xf32>
    %13 = vector.broadcast %12 : vector<1x128xf32> to vector<512x128xf32>
    %14 = arith.addf %11, %13 : vector<512x128xf32>
    %cst = arith.constant 0.000000e+00 : f32
    %15 = vector.broadcast %cst : f32 to vector<512x128xf32>
    %16 = arith.maximumf %14, %15 : vector<512x128xf32>
    %c0_11 = arith.constant 0 : index
    %c0_12 = arith.constant 0 : index
    %17 = vector.load %arg7[%c0_11, %c0_12] : memref<512x128xf32, #tpu.memory_space<vmem>>, vector<512x128xf32>
    tpu.vector_store %arg7[%c0_11, %c0_12], %16 {strides = array<i32>} : memref<512x128xf32, #tpu.memory_space<vmem>>, vector<512x128xf32>,
    return
  }
  func.func @transform_0(%arg0: i32) -> (i32, i32) {
    %c0_i32 = arith.constant 0 : i32
    %c0_i32_0 = arith.constant 0 : i32
    return %arg0, %c0_i32 : i32, i32
  }
  func.func @transform_1(%arg0: i32) -> (i32, i32) {
    %c0_i32 = arith.constant 0 : i32
    %c0_i32_0 = arith.constant 0 : i32
    %c0_i32_1 = arith.constant 0 : i32
    return %c0_i32, %c0_i32_0 : i32, i32
  }
  func.func @transform_2(%arg0: i32) -> (i32, i32) {
    %c0_i32 = arith.constant 0 : i32
    %c0_i32_0 = arith.constant 0 : i32
    %c0_i32_1 = arith.constant 0 : i32
    return %c0_i32, %c0_i32_0 : i32, i32
  }
  func.func @transform_3(%arg0: i32) -> (i32, i32) {
    %c0_i32 = arith.constant 0 : i32
    %c0_i32_0 = arith.constant 0 : i32
    return %arg0, %c0_i32 : i32, i32
  }
  func.func @transform_4(%arg0: i32) -> (i32, i32) {
    %c0_i32 = arith.constant 0 : i32
    %c0_i32_0 = arith.constant 0 : i32
    %c0_i32_1 = arith.constant 0 : i32
    return %c0_i32, %c0_i32_0 : i32, i32
  }
  func.func @transform_5(%arg0: i32) -> (i32, i32) {
    %c0_i32 = arith.constant 0 : i32
    %c0_i32_0 = arith.constant 0 : i32
    %c0_i32_1 = arith.constant 0 : i32
    return %c0_i32, %c0_i32_0 : i32, i32
  }
  func.func @transform_6(%arg0: i32) -> (i32, i32) {
    %c0_i32 = arith.constant 0 : i32
    %c0_i32_0 = arith.constant 0 : i32
    return %arg0, %c0_i32 : i32, i32
  }
}

</mosaic_0001>

<llo_original>
// kernel: _lambda_.5
$region0: #{_lambda_.5}
  #allocation0 [shape = 'u32[]', space=smem, size = 0x4, offset = 0x4, fixed_abs, tag = 'smem constant byte address 0x4 - core index']
  #allocation1 [shape = 'u32[72,128]{1,0:T(1,128)}', space=vmem, size = 0x9000, scoped, tag = 'internal scratch']
  %s0 = inlined_call_operand.vmem [shape: f32[2,16,16,128], index: 0, kind: input, shape index: {}]
  %s1 = inlined_call_operand.vmem [shape: f32[1,128], index: 1, kind: input, shape index: {}]
  %s2 = inlined_call_operand.vmem [shape: f32[1,128], index: 2, kind: input, shape index: {}]
  %s3 = inlined_call_operand.vmem [shape: f32[2,18,18,128], index: 3, kind: output, shape index: {}]
  %s4 = sld [smem:[#allocation0]]
  $region45: #{_lambda_.5} parent=0
    _
  %s6 = ssub.s32 1, %s4
  %s7 = scalar_select 0, %s6, %s4
  loop: start=0, step=1, limit=4
  $region2: #{_lambda_.5} parent=0 // loop_pre_header
    _
  $region3: #{_lambda_.5} parent=0 // loop_header
    %s9 = sphi 0, %s13
    %p10 = scmp.ge.s32.totalorder %s9, 4
    %s19 = sphi 0, %s21
    %s22 = sphi 0, %s19
    %s23 = sphi 0, %s22
    %s39 = sphi 0, %s23
    %s43 = sphi 0, %s43
    %s45 = sphi 0, %s43
    %s46 = sphi 0, %s45
    %s60 = sphi 0, %s46
    %s64 = sphi 0, %s64
    %s66 = sphi 0, %s64
    %s67 = sphi 0, %s66
    %s81 = sphi 0, %s67
    %s87 = sphi 0, %s89
    %s90 = sphi 0, %s87
    %s91 = sphi 0, %s90
    %s107 = sphi 0, %s91
  $region4: #{_lambda_.5} parent=0 // loop_header_branch
    %12 = sbr.rel (%p10) target = $region8
  $region5: #{_lambda_.5} parent=0 // loop_body
    %s14 = ssub.s32 %s9, 1
    %s15 = ssub.s32 %s9, 2
    %s16 = sadd.s32 %s9, 1
    %s17 = ssub.s32 %s9, %s16
    %p18 = scmp.eq.s32.totalorder %s17, 0
    %s20 = sadd.s32 %s19, 1
    %s21 = scalar_select %p18, %s19, %s20
    %p24 = pneg %p18
    %p25 = scmp.eq.s32.totalorder %s9, 1
    %p26 = por %p24, %p25
    %p27 = scmp.ne.s32.totalorder %s19, %s22
    %p28 = scmp.eq.s32.totalorder %s9, 0
    %p29 = por %p27, %p28
    %p30 = scmp.ne.s32.totalorder %s19, %s22
    %p31 = scmp.eq.s32.totalorder %s14, 1
    %p32 = por %p30, %p31
    %p33 = scmp.ne.s32.totalorder %s22, %s23
    %p34 = scmp.eq.s32.totalorder %s14, 0
    %p35 = por %p33, %p34
    %p36 = scmp.ne.s32.totalorder %s22, %s23
    %p37 = scmp.eq.s32.totalorder %s15, 1
    %p38 = por %p36, %p37
    %p40 = scmp.ne.s32.totalorder %s23, %s39
    %p41 = scmp.eq.s32.totalorder %s15, 0
    %p42 = por %p40, %p41
    %s44 = sadd.s32 %s43, 1
    %p47 = scmp.eq.s32.totalorder %s9, 1
    %p48 = scmp.ne.s32.totalorder %s43, %s45
    %p49 = scmp.eq.s32.totalorder %s9, 0
    %p50 = por %p48, %p49
    %p51 = scmp.ne.s32.totalorder %s43, %s45
    %p52 = scmp.eq.s32.totalorder %s14, 1
    %p53 = por %p51, %p52
    %p54 = scmp.ne.s32.totalorder %s45, %s46
    %p55 = scmp.eq.s32.totalorder %s14, 0
    %p56 = por %p54, %p55
    %p57 = scmp.ne.s32.totalorder %s45, %s46
    %p58 = scmp.eq.s32.totalorder %s15, 1
    %p59 = por %p57, %p58
    %p61 = scmp.ne.s32.totalorder %s46, %s60
    %p62 = scmp.eq.s32.totalorder %s15, 0
    %p63 = por %p61, %p62
    %s65 = sadd.s32 %s64, 1
    %p68 = scmp.eq.s32.totalorder %s9, 1
    %p69 = scmp.ne.s32.totalorder %s64, %s66
    %p70 = scmp.eq.s32.totalorder %s9, 0
    %p71 = por %p69, %p70
    %p72 = scmp.ne.s32.totalorder %s64, %s66
    %p73 = scmp.eq.s32.totalorder %s14, 1
    %p74 = por %p72, %p73
    %p75 = scmp.ne.s32.totalorder %s66, %s67
    %p76 = scmp.eq.s32.totalorder %s14, 0
    %p77 = por %p75, %p76
    %p78 = scmp.ne.s32.totalorder %s66, %s67
    %p79 = scmp.eq.s32.totalorder %s15, 1
    %p80 = por %p78, %p79
    %p82 = scmp.ne.s32.totalorder %s67, %s81
    %p83 = scmp.eq.s32.totalorder %s15, 0
    %p84 = por %p82, %p83
    %s85 = ssub.s32 %s9, %s16
    %p86 = scmp.eq.s32.totalorder %s85, 0
    %s88 = sadd.s32 %s87, 1
    %s89 = scalar_select %p86, %s87, %s88
    %p92 = pneg %p86
    %p93 = scmp.eq.s32.totalorder %s9, 1
    %p94 = por %p92, %p93
    %p95 = scmp.ne.s32.totalorder %s87, %s90
    %p96 = scmp.eq.s32.totalorder %s9, 0
    %p97 = por %p95, %p96
    %p98 = scmp.ne.s32.totalorder %s87, %s90
    %p99 = scmp.eq.s32.totalorder %s14, 1
    %p100 = por %p98, %p99
    %p101 = scmp.ne.s32.totalorder %s90, %s91
    %p102 = scmp.eq.s32.totalorder %s14, 0
    %p103 = por %p101, %p102
    %p104 = scmp.ne.s32.totalorder %s90, %s91
    %p105 = scmp.eq.s32.totalorder %s15, 1
    %p106 = por %p104, %p105
    %p108 = scmp.ne.s32.totalorder %s91, %s107
    %p109 = scmp.eq.s32.totalorder %s15, 0
    %p110 = por %p108, %p109
    %p111 = scmp.le.s32.totalorder 1, %s9
    %p112 = scmp.lt.s32.totalorder %s9, 3
    %p113 = pnand %p111, %p112
    %p114 = pneg %p113
    // Predicated region
    $region9: #{_lambda_.5} parent=5 // pred_check
      _
    $region10: #{_lambda_.5} parent=5 // pred_check_branch
      %116 = sbr.rel (%p113) target = $region12
    $region11: #{_lambda_.5} parent=5 // pred_region
      %s117 = ssub.s32 %s9, 1
      // Predicated region
      $region13: #{_lambda_.5} parent=11 // pred_check
        %p118 = pneg %p56
      $region14: #{_lambda_.5} parent=11 // pred_check_branch
        %120 = sbr.rel (%p118) target = $region16
      $region15: #{_lambda_.5} parent=11 // pred_region
        _
      $region16: #{_lambda_.5} parent=11 // pred_fallthru
        _
      // Predicated region
      $region17: #{_lambda_.5} parent=11 // pred_check
        %p121 = pneg %p77
      $region18: #{_lambda_.5} parent=11 // pred_check_branch
        %123 = sbr.rel (%p121) target = $region20
      $region19: #{_lambda_.5} parent=11 // pred_region
        _
      $region20: #{_lambda_.5} parent=11 // pred_fallthru
        _
    $region12: #{_lambda_.5} parent=5 // pred_fallthru
      _
    %p124 = scmp.lt.s32.totalorder %s9, 2
    // Predicated region
    $region21: #{_lambda_.5} parent=5 // pred_check
      %p125 = pneg %p124
    $region22: #{_lambda_.5} parent=5 // pred_check_branch
      %127 = sbr.rel (%p125) target = $region24
    $region23: #{_lambda_.5} parent=5 // pred_region
      // Predicated region
      $region25: #{_lambda_.5} parent=23 // pred_check
        %p128 = pneg %p29
      $region26: #{_lambda_.5} parent=23 // pred_check_branch
        %130 = sbr.rel (%p128) target = $region28
      $region27: #{_lambda_.5} parent=23 // pred_region
        %p131 = scmp.lt.s32.totalorder %s9, 1
        %s132 = scalar_select %p131, %s9, 1
        %s133 = smul.addr %s132, 32
        %s134 = smul.addr %s133, 8
        %s135 = scalar_lea.vmem %s0, %s134
      $region28: #{_lambda_.5} parent=23 // pred_fallthru
        _
    $region24: #{_lambda_.5} parent=5 // pred_fallthru
      _
    %p136 = scmp.le.s32.totalorder 1, %s9
    %p137 = scmp.lt.s32.totalorder %s9, 3
    %p138 = pnand %p136, %p137
    %p139 = pneg %p138
    // Predicated region
    $region29: #{_lambda_.5} parent=5 // pred_check
      _
    $region30: #{_lambda_.5} parent=5 // pred_check_branch
      %141 = sbr.rel (%p138) target = $region32
    $region31: #{_lambda_.5} parent=5 // pred_region
      %s142 = ssub.s32 %s9, 1
      %p143 = scmp.lt.s32.totalorder %s14, 1
      %s144 = scalar_select %p143, %s14, 1
      %s145 = smul.addr %s144, 32
      %s146 = smul.addr %s145, 8
      %s147 = scalar_lea.vmem %s0, %s146
      %p148 = pneg %p35
      %p149 = pneg %p32
      %p150 = pneg %p56
      %p151 = pneg %p53
      %p152 = pneg %p77
      %p153 = pneg %p74
      %p154 = pneg %p103
      %p155 = pneg %p100
      %p156 = scmp.lt.s32.totalorder %s14, 1
      %s157 = scalar_select %p156, %s14, 1
      %s158 = smul.addr %s157, 54
      %s159 = smul.addr %s158, 8
      %s160 = scalar_lea.vmem %s3, %s159
      %p161 = scmp.lt.s32.totalorder %s14, 1
      %s162 = scalar_select %p161, %s14, 1
      %s163 = smul.addr %s162, 32
      %s164 = smul.addr %s163, 8
      %s165 = scalar_lea.vmem %s0, %s164
      %p166 = scmp.lt.s32.totalorder %s14, 1
      %s167 = scalar_select %p166, %s14, 1
      %s168 = smul.addr %s167, 54
      %s169 = smul.addr %s168, 8
      %s170 = scalar_lea.vmem %s3, %s169
      %v171 = vld [vmem:[%s165] sm:$0xff]
      %v172 = vld [vmem:[%s165 + $0x8] sm:$0xff]
      %v173 = vld [vmem:[%s165 + $0x10] sm:$0xff]
      %v174 = vld [vmem:[%s165 + $0x18] sm:$0xff]
      %v175 = vld [vmem:[%s165 + $0x20] sm:$0xff]
      %v176 = vld [vmem:[%s165 + $0x28] sm:$0xff]
      %v177 = vld [vmem:[%s165 + $0x30] sm:$0xff]
      %v178 = vld [vmem:[%s165 + $0x38] sm:$0xff]
      %v179 = vld [vmem:[%s165 + $0x40] sm:$0xff]
      %v180 = vld [vmem:[%s165 + $0x48] sm:$0xff]
      %v181 = vld [vmem:[%s165 + $0x50] sm:$0xff]
      %v182 = vld [vmem:[%s165 + $0x58] sm:$0xff]
      %v183 = vld [vmem:[%s165 + $0x60] sm:$0xff]
      %v184 = vld [vmem:[%s165 + $0x68] sm:$0xff]
      %v185 = vld [vmem:[%s165 + $0x70] sm:$0xff]
      %v186 = vld [vmem:[%s165 + $0x78] sm:$0xff]
      %v187 = vld [vmem:[%s165 + $0x80] sm:$0xff]
      %v188 = vld [vmem:[%s165 + $0x88] sm:$0xff]
      %v189 = vld [vmem:[%s165 + $0x90] sm:$0xff]
      %v190 = vld [vmem:[%s165 + $0x98] sm:$0xff]
      %v191 = vld [vmem:[%s165 + $0xa0] sm:$0xff]
      %v192 = vld [vmem:[%s165 + $0xa8] sm:$0xff]
      %v193 = vld [vmem:[%s165 + $0xb0] sm:$0xff]
      %v194 = vld [vmem:[%s165 + $0xb8] sm:$0xff]
      %v195 = vld [vmem:[%s165 + $0xc0] sm:$0xff]
      %v196 = vld [vmem:[%s165 + $0xc8] sm:$0xff]
      %v197 = vld [vmem:[%s165 + $0xd0] sm:$0xff]
      %v198 = vld [vmem:[%s165 + $0xd8] sm:$0xff]
      %v199 = vld [vmem:[%s165 + $0xe0] sm:$0xff]
      %v200 = vld [vmem:[%s165 + $0xe8] sm:$0xff]
      %v201 = vld [vmem:[%s165 + $0xf0] sm:$0xff]
      %v202 = vld [vmem:[%s165 + $0xf8] sm:$0xff]
      %v203 = vld [vmem:[%s1] sm:$0x1]
      %v205 = vperm.slane %v203, 0
      %v207 = vmul.f32 %v171, %v205
      %v208 = vmul.f32 %v172, %v205
      %v209 = vmul.f32 %v173, %v205
      %v210 = vmul.f32 %v174, %v205
      %v211 = vmul.f32 %v175, %v205
      %v212 = vmul.f32 %v176, %v205
      %v213 = vmul.f32 %v177, %v205
      %v214 = vmul.f32 %v178, %v205
      %v215 = vmul.f32 %v179, %v205
      %v216 = vmul.f32 %v180, %v205
      %v217 = vmul.f32 %v181, %v205
      %v218 = vmul.f32 %v182, %v205
      %v219 = vmul.f32 %v183, %v205
      %v220 = vmul.f32 %v184, %v205
      %v221 = vmul.f32 %v185, %v205
      %v222 = vmul.f32 %v186, %v205
      %v223 = vmul.f32 %v187, %v205
      %v224 = vmul.f32 %v188, %v205
      %v225 = vmul.f32 %v189, %v205
      %v226 = vmul.f32 %v190, %v205
      %v227 = vmul.f32 %v191, %v205
      %v228 = vmul.f32 %v192, %v205
      %v229 = vmul.f32 %v193, %v205
      %v230 = vmul.f32 %v194, %v205
      %v231 = vmul.f32 %v195, %v205
      %v232 = vmul.f32 %v196, %v205
      %v233 = vmul.f32 %v197, %v205
      %v234 = vmul.f32 %v198, %v205
      %v235 = vmul.f32 %v199, %v205
      %v236 = vmul.f32 %v200, %v205
      %v237 = vmul.f32 %v201, %v205
      %v238 = vmul.f32 %v202, %v205
      %v239 = vld [vmem:[%s2] sm:$0x1]
      %v241 = vperm.slane %v239, 0
      %v243 = vadd.f32 %v207, %v241
      %v244 = vadd.f32 %v208, %v241
      %v245 = vadd.f32 %v209, %v241
      %v246 = vadd.f32 %v210, %v241
      %v247 = vadd.f32 %v211, %v241
      %v248 = vadd.f32 %v212, %v241
      %v249 = vadd.f32 %v213, %v241
      %v250 = vadd.f32 %v214, %v241
      %v251 = vadd.f32 %v215, %v241
      %v252 = vadd.f32 %v216, %v241
      %v253 = vadd.f32 %v217, %v241
      %v254 = vadd.f32 %v218, %v241
      %v255 = vadd.f32 %v219, %v241
      %v256 = vadd.f32 %v220, %v241
      %v257 = vadd.f32 %v221, %v241
      %v258 = vadd.f32 %v222, %v241
      %v259 = vadd.f32 %v223, %v241
      %v260 = vadd.f32 %v224, %v241
      %v261 = vadd.f32 %v225, %v241
      %v262 = vadd.f32 %v226, %v241
      %v263 = vadd.f32 %v227, %v241
      %v264 = vadd.f32 %v228, %v241
      %v265 = vadd.f32 %v229, %v241
      %v266 = vadd.f32 %v230, %v241
      %v267 = vadd.f32 %v231, %v241
      %v268 = vadd.f32 %v232, %v241
      %v269 = vadd.f32 %v233, %v241
      %v270 = vadd.f32 %v234, %v241
      %v271 = vadd.f32 %v235, %v241
      %v272 = vadd.f32 %v236, %v241
      %v273 = vadd.f32 %v237, %v241
      %v274 = vadd.f32 %v238, %v241
      %v275 = vmax.f32 %v243, 0.0
      %v276 = vmax.f32 %v244, 0.0
      %v277 = vmax.f32 %v245, 0.0
      %v278 = vmax.f32 %v246, 0.0
      %v279 = vmax.f32 %v247, 0.0
      %v280 = vmax.f32 %v248, 0.0
      %v281 = vmax.f32 %v249, 0.0
      %v282 = vmax.f32 %v250, 0.0
      %v283 = vmax.f32 %v251, 0.0
      %v284 = vmax.f32 %v252, 0.0
      %v285 = vmax.f32 %v253, 0.0
      %v286 = vmax.f32 %v254, 0.0
      %v287 = vmax.f32 %v255, 0.0
      %v288 = vmax.f32 %v256, 0.0
      %v289 = vmax.f32 %v257, 0.0
      %v290 = vmax.f32 %v258, 0.0
      %v291 = vmax.f32 %v259, 0.0
      %v292 = vmax.f32 %v260, 0.0
      %v293 = vmax.f32 %v261, 0.0
      %v294 = vmax.f32 %v262, 0.0
      %v295 = vmax.f32 %v263, 0.0
      %v296 = vmax.f32 %v264, 0.0
      %v297 = vmax.f32 %v265, 0.0
      %v298 = vmax.f32 %v266, 0.0
      %v299 = vmax.f32 %v267, 0.0
      %v300 = vmax.f32 %v268, 0.0
      %v301 = vmax.f32 %v269, 0.0
      %v302 = vmax.f32 %v270, 0.0
      %v303 = vmax.f32 %v271, 0.0
      %v304 = vmax.f32 %v272, 0.0
      %v305 = vmax.f32 %v273, 0.0
      %v306 = vmax.f32 %v274, 0.0
      %307 = vst [vmem:[%s170] sm:$0xff] 0.0
      %308 = vst [vmem:[%s170 + $0x8] sm:$0xff] 0.0
      %309 = vst [vmem:[%s170 + $0x10] sm:$0x3] 0.0
      %310 = vst [vmem:[%s170 + $0x18] sm:$0xff] 0.0
      %311 = vst [vmem:[%s170 + $0x20] sm:$0xff] 0.0
      %312 = vst [vmem:[%s170 + $0x28] sm:$0x3] 0.0
      %313 = vst [vmem:[%s170 + $0x30] sm:$0xff] 0.0
      %314 = vst [vmem:[%s170 + $0x38] sm:$0xff] 0.0
      %315 = vst [vmem:[%s170 + $0x40] sm:$0x3] 0.0
      %316 = vst [vmem:[%s170 + $0x48] sm:$0xff] 0.0
      %317 = vst [vmem:[%s170 + $0x50] sm:$0xff] 0.0
      %318 = vst [vmem:[%s170 + $0x58] sm:$0x3] 0.0
      %319 = vst [vmem:[%s170 + $0x60] sm:$0xff] 0.0
      %320 = vst [vmem:[%s170 + $0x68] sm:$0xff] 0.0
      %321 = vst [vmem:[%s170 + $0x70] sm:$0x3] 0.0
      %322 = vst [vmem:[%s170 + $0x78] sm:$0xff] 0.0
      %323 = vst [vmem:[%s170 + $0x80] sm:$0xff] 0.0
      %324 = vst [vmem:[%s170 + $0x88] sm:$0x3] 0.0
      %325 = vst [vmem:[%s170 + $0x90] sm:$0xff] 0.0
      %326 = vst [vmem:[%s170 + $0x98] sm:$0xff] 0.0
      %327 = vst [vmem:[%s170 + $0xa0] sm:$0x3] 0.0
      %328 = vst [vmem:[%s170 + $0xa8] sm:$0xff] 0.0
      %329 = vst [vmem:[%s170 + $0xb0] sm:$0xff] 0.0
      %330 = vst [vmem:[%s170 + $0xb8] sm:$0x3] 0.0
      %331 = vst [vmem:[%s170 + $0xc0] sm:$0xff] 0.0
      %332 = vst [vmem:[%s170 + $0xc8] sm:$0xff] 0.0
      %333 = vst [vmem:[%s170 + $0xd0] sm:$0x3] 0.0
      %334 = vst [vmem:[%s170 + $0xd8] sm:$0xff] 0.0
      %335 = vst [vmem:[%s170 + $0xe0] sm:$0xff] 0.0
      %336 = vst [vmem:[%s170 + $0xe8] sm:$0x3] 0.0
      %337 = vst [vmem:[%s170 + $0xf0] sm:$0xff] 0.0
      %338 = vst [vmem:[%s170 + $0xf8] sm:$0xff] 0.0
      %339 = vst [vmem:[%s170 + $0x100] sm:$0x3] 0.0
      %340 = vst [vmem:[%s170 + $0x108] sm:$0xff] 0.0
      %341 = vst [vmem:[%s170 + $0x110] sm:$0xff] 0.0
      %342 = vst [vmem:[%s170 + $0x118] sm:$0x3] 0.0
      %343 = vst [vmem:[%s170 + $0x120] sm:$0xff] 0.0
      %344 = vst [vmem:[%s170 + $0x128] sm:$0xff] 0.0
      %345 = vst [vmem:[%s170 + $0x130] sm:$0x3] 0.0
      %346 = vst [vmem:[%s170 + $0x138] sm:$0xff] 0.0
      %347 = vst [vmem:[%s170 + $0x140] sm:$0xff] 0.0
      %348 = vst [vmem:[%s170 + $0x148] sm:$0x3] 0.0
      %349 = vst [vmem:[%s170 + $0x150] sm:$0xff] 0.0
      %350 = vst [vmem:[%s170 + $0x158] sm:$0xff] 0.0
      %351 = vst [vmem:[%s170 + $0x160] sm:$0x3] 0.0
      %352 = vst [vmem:[%s170 + $0x168] sm:$0xff] 0.0
      %353 = vst [vmem:[%s170 + $0x170] sm:$0xff] 0.0
      %354 = vst [vmem:[%s170 + $0x178] sm:$0x3] 0.0
      %355 = vst [vmem:[%s170 + $0x180] sm:$0xff] 0.0
      %356 = vst [vmem:[%s170 + $0x188] sm:$0xff] 0.0
      %357 = vst [vmem:[%s170 + $0x190] sm:$0x3] 0.0
      %358 = vst [vmem:[%s170 + $0x198] sm:$0xff] 0.0
      %359 = vst [vmem:[%s170 + $0x1a0] sm:$0xff] 0.0
      %360 = vst [vmem:[%s170 + $0x1a8] sm:$0x3] 0.0
      %s361 = scalar_lea.vmem %s170, 24
      %362 = vst [vmem:[%s361 + $0x1] sm:$0xff] %v275
      %363 = vst [vmem:[%s361 + $0x9] sm:$0xff] %v276
      %364 = vst [vmem:[%s361 + $0x19] sm:$0xff] %v277
      %365 = vst [vmem:[%s361 + $0x21] sm:$0xff] %v278
      %366 = vst [vmem:[%s361 + $0x31] sm:$0xff] %v279
      %367 = vst [vmem:[%s361 + $0x39] sm:$0xff] %v280
      %368 = vst [vmem:[%s361 + $0x49] sm:$0xff] %v281
      %369 = vst [vmem:[%s361 + $0x51] sm:$0xff] %v282
      %370 = vst [vmem:[%s361 + $0x61] sm:$0xff] %v283
      %371 = vst [vmem:[%s361 + $0x69] sm:$0xff] %v284
      %372 = vst [vmem:[%s361 + $0x79] sm:$0xff] %v285
      %373 = vst [vmem:[%s361 + $0x81] sm:$0xff] %v286
      %374 = vst [vmem:[%s361 + $0x91] sm:$0xff] %v287
      %375 = vst [vmem:[%s361 + $0x99] sm:$0xff] %v288
      %376 = vst [vmem:[%s361 + $0xa9] sm:$0xff] %v289
      %377 = vst [vmem:[%s361 + $0xb1] sm:$0xff] %v290
      %378 = vst [vmem:[%s361 + $0xc1] sm:$0xff] %v291
      %379 = vst [vmem:[%s361 + $0xc9] sm:$0xff] %v292
      %380 = vst [vmem:[%s361 + $0xd9] sm:$0xff] %v293
      %381 = vst [vmem:[%s361 + $0xe1] sm:$0xff] %v294
      %382 = vst [vmem:[%s361 + $0xf1] sm:$0xff] %v295
      %383 = vst [vmem:[%s361 + $0xf9] sm:$0xff] %v296
      %384 = vst [vmem:[%s361 + $0x109] sm:$0xff] %v297
      %385 = vst [vmem:[%s361 + $0x111] sm:$0xff] %v298
      %386 = vst [vmem:[%s361 + $0x121] sm:$0xff] %v299
      %387 = vst [vmem:[%s361 + $0x129] sm:$0xff] %v300
      %388 = vst [vmem:[%s361 + $0x139] sm:$0xff] %v301
      %389 = vst [vmem:[%s361 + $0x141] sm:$0xff] %v302
      %390 = vst [vmem:[%s361 + $0x151] sm:$0xff] %v303
      %391 = vst [vmem:[%s361 + $0x159] sm:$0xff] %v304
      %392 = vst [vmem:[%s361 + $0x169] sm:$0xff] %v305
      %393 = vst [vmem:[%s361 + $0x171] sm:$0xff] %v306
      %p394 = scmp.lt.s32.totalorder %s14, 1
      %s395 = scalar_select %p394, %s14, 1
      %s396 = smul.addr %s395, 54
      %s397 = smul.addr %s396, 8
      %s398 = scalar_lea.vmem %s3, %s397
      // Predicated region
      $region33: #{_lambda_.5} parent=31 // pred_check
        %p399 = pneg %p100
      $region34: #{_lambda_.5} parent=31 // pred_check_branch
        %401 = sbr.rel (%p399) target = $region36
      $region35: #{_lambda_.5} parent=31 // pred_region
        _
      $region36: #{_lambda_.5} parent=31 // pred_fallthru
        _
    $region32: #{_lambda_.5} parent=5 // pred_fallthru
      _
    %p402 = scmp.le.s32.totalorder 2, %s9
    // Predicated region
    $region37: #{_lambda_.5} parent=5 // pred_check
      %p403 = pneg %p402
    $region38: #{_lambda_.5} parent=5 // pred_check_branch
      %405 = sbr.rel (%p403) target = $region40
    $region39: #{_lambda_.5} parent=5 // pred_region
      %s406 = ssub.s32 %s9, 2
      // Predicated region
      $region41: #{_lambda_.5} parent=39 // pred_check
        %p407 = pneg %p106
      $region42: #{_lambda_.5} parent=39 // pred_check_branch
        %409 = sbr.rel (%p407) target = $region44
      $region43: #{_lambda_.5} parent=39 // pred_region
        %p410 = scmp.lt.s32.totalorder %s15, 1
        %s411 = scalar_select %p410, %s15, 1
        %s412 = smul.addr %s411, 54
        %s413 = smul.addr %s412, 8
        %s414 = scalar_lea.vmem %s3, %s413
      $region44: #{_lambda_.5} parent=39 // pred_fallthru
        _
    $region40: #{_lambda_.5} parent=5 // pred_fallthru
      _
  $region6: #{_lambda_.5} parent=0 // loop_footer
    %s13 = sadd.s32 1, %s9
  $region7: #{_lambda_.5} parent=0 // loop_footer_branch
    %8 = sbr.rel target = $region3
  $region8: #{_lambda_.5} parent=0 // loop_exit
    _

// kernel: _lambda_.7
$region0: #{_lambda_.7}
  #allocation0 [shape = 'u32[]', space=smem, size = 0x4, offset = 0x4, fixed_abs, tag = 'smem constant byte address 0x4 - core index']
  #allocation1 [shape = 'u32[72,128]{1,0:T(1,128)}', space=vmem, size = 0x9000, scoped, tag = 'internal scratch']
  %s0 = inlined_call_operand.vmem [shape: f32[512,128], index: 0, kind: input, shape index: {}]
  %s1 = inlined_call_operand.vmem [shape: f32[1,128], index: 1, kind: input, shape index: {}]
  %s2 = inlined_call_operand.vmem [shape: f32[1,128], index: 2, kind: input, shape index: {}]
  %s3 = inlined_call_operand.vmem [shape: f32[512,128], index: 3, kind: input, shape index: {}]
  %s4 = inlined_call_operand.vmem [shape: f32[1,128], index: 4, kind: input, shape index: {}]
  %s5 = inlined_call_operand.vmem [shape: f32[1,128], index: 5, kind: input, shape index: {}]
  %s6 = inlined_call_operand.vmem [shape: f32[512,128], index: 6, kind: output, shape index: {}]
  %s7 = sld [smem:[#allocation0]]
  $region34: #{_lambda_.7} parent=0
    _
  %s9 = ssub.s32 1, %s7
  %s10 = scalar_select 0, %s9, %s7
  // Predicated region
  $region2: #{_lambda_.7} parent=0 // pred_check
    _
  $region3: #{_lambda_.7} parent=0 // pred_check_branch
    %12 = sbr.rel (0) target = $region5
  $region4: #{_lambda_.7} parent=0 // pred_region
    _
  $region5: #{_lambda_.7} parent=0 // pred_fallthru
    _
  // Predicated region
  $region6: #{_lambda_.7} parent=0 // pred_check
    _
  $region7: #{_lambda_.7} parent=0 // pred_check_branch
    %14 = sbr.rel (0) target = $region9
  $region8: #{_lambda_.7} parent=0 // pred_region
    _
  $region9: #{_lambda_.7} parent=0 // pred_fallthru
    _
  // Predicated region
  $region10: #{_lambda_.7} parent=0 // pred_check
    _
  $region11: #{_lambda_.7} parent=0 // pred_check_branch
    %16 = sbr.rel (0) target = $region13
  $region12: #{_lambda_.7} parent=0 // pred_region
    _
  $region13: #{_lambda_.7} parent=0 // pred_fallthru
    _
  // Predicated region
  $region14: #{_lambda_.7} parent=0 // pred_check
    _
  $region15: #{_lambda_.7} parent=0 // pred_check_branch
    %18 = sbr.rel (0) target = $region17
  $region16: #{_lambda_.7} parent=0 // pred_region
    _
  $region17: #{_lambda_.7} parent=0 // pred_fallthru
    _
  // Predicated region
  $region18: #{_lambda_.7} parent=0 // pred_check
    _
  $region19: #{_lambda_.7} parent=0 // pred_check_branch
    %20 = sbr.rel (0) target = $region21
  $region20: #{_lambda_.7} parent=0 // pred_region
    _
  $region21: #{_lambda_.7} parent=0 // pred_fallthru
    _
  // Predicated region
  $region22: #{_lambda_.7} parent=0 // pred_check
    _
  $region23: #{_lambda_.7} parent=0 // pred_check_branch
    %22 = sbr.rel (0) target = $region25
  $region24: #{_lambda_.7} parent=0 // pred_region
    _
  $region25: #{_lambda_.7} parent=0 // pred_fallthru
    _
  %v23 = vld [vmem:[%s0] sm:$0xff]
  %v24 = vld [vmem:[%s0 + $0x8] sm:$0xff]
  %v25 = vld [vmem:[%s0 + $0x10] sm:$0xff]
  %v26 = vld [vmem:[%s0 + $0x18] sm:$0xff]
  %v27 = vld [vmem:[%s0 + $0x20] sm:$0xff]
  %v28 = vld [vmem:[%s0 + $0x28] sm:$0xff]
  %v29 = vld [vmem:[%s0 + $0x30] sm:$0xff]
  %v30 = vld [vmem:[%s0 + $0x38] sm:$0xff]
  %v31 = vld [vmem:[%s0 + $0x40] sm:$0xff]
  %v32 = vld [vmem:[%s0 + $0x48] sm:$0xff]
  %v33 = vld [vmem:[%s0 + $0x50] sm:$0xff]
  %v34 = vld [vmem:[%s0 + $0x58] sm:$0xff]
  %v35 = vld [vmem:[%s0 + $0x60] sm:$0xff]
  %v36 = vld [vmem:[%s0 + $0x68] sm:$0xff]
  %v37 = vld [vmem:[%s0 + $0x70] sm:$0xff]
  %v38 = vld [vmem:[%s0 + $0x78] sm:$0xff]
  %v39 = vld [vmem:[%s0 + $0x80] sm:$0xff]
  %v40 = vld [vmem:[%s0 + $0x88] sm:$0xff]
  %v41 = vld [vmem:[%s0 + $0x90] sm:$0xff]
  %v42 = vld [vmem:[%s0 + $0x98] sm:$0xff]
  %v43 = vld [vmem:[%s0 + $0xa0] sm:$0xff]
  %v44 = vld [vmem:[%s0 + $0xa8] sm:$0xff]
  %v45 = vld [vmem:[%s0 + $0xb0] sm:$0xff]
  %v46 = vld [vmem:[%s0 + $0xb8] sm:$0xff]
  %v47 = vld [vmem:[%s0 + $0xc0] sm:$0xff]
  %v48 = vld [vmem:[%s0 + $0xc8] sm:$0xff]
  %v49 = vld [vmem:[%s0 + $0xd0] sm:$0xff]
  %v50 = vld [vmem:[%s0 + $0xd8] sm:$0xff]
  %v51 = vld [vmem:[%s0 + $0xe0] sm:$0xff]
  %v52 = vld [vmem:[%s0 + $0xe8] sm:$0xff]
  %v53 = vld [vmem:[%s0 + $0xf0] sm:$0xff]
  %v54 = vld [vmem:[%s0 + $0xf8] sm:$0xff]
  %v55 = vld [vmem:[%s0 + $0x100] sm:$0xff]
  %v56 = vld [vmem:[%s0 + $0x108] sm:$0xff]
  %v57 = vld [vmem:[%s0 + $0x110] sm:$0xff]
  %v58 = vld [vmem:[%s0 + $0x118] sm:$0xff]
  %v59 = vld [vmem:[%s0 + $0x120] sm:$0xff]
  %v60 = vld [vmem:[%s0 + $0x128] sm:$0xff]
  %v61 = vld [vmem:[%s0 + $0x130] sm:$0xff]
  %v62 = vld [vmem:[%s0 + $0x138] sm:$0xff]
  %v63 = vld [vmem:[%s0 + $0x140] sm:$0xff]
  %v64 = vld [vmem:[%s0 + $0x148] sm:$0xff]
  %v65 = vld [vmem:[%s0 + $0x150] sm:$0xff]
  %v66 = vld [vmem:[%s0 + $0x158] sm:$0xff]
  %v67 = vld [vmem:[%s0 + $0x160] sm:$0xff]
  %v68 = vld [vmem:[%s0 + $0x168] sm:$0xff]
  %v69 = vld [vmem:[%s0 + $0x170] sm:$0xff]
  %v70 = vld [vmem:[%s0 + $0x178] sm:$0xff]
  %v71 = vld [vmem:[%s0 + $0x180] sm:$0xff]
  %v72 = vld [vmem:[%s0 + $0x188] sm:$0xff]
  %v73 = vld [vmem:[%s0 + $0x190] sm:$0xff]
  %v74 = vld [vmem:[%s0 + $0x198] sm:$0xff]
  %v75 = vld [vmem:[%s0 + $0x1a0] sm:$0xff]
  %v76 = vld [vmem:[%s0 + $0x1a8] sm:$0xff]
  %v77 = vld [vmem:[%s0 + $0x1b0] sm:$0xff]
  %v78 = vld [vmem:[%s0 + $0x1b8] sm:$0xff]
  %v79 = vld [vmem:[%s0 + $0x1c0] sm:$0xff]
  %v80 = vld [vmem:[%s0 + $0x1c8] sm:$0xff]
  %v81 = vld [vmem:[%s0 + $0x1d0] sm:$0xff]
  %v82 = vld [vmem:[%s0 + $0x1d8] sm:$0xff]
  %v83 = vld [vmem:[%s0 + $0x1e0] sm:$0xff]
  %v84 = vld [vmem:[%s0 + $0x1e8] sm:$0xff]
  %v85 = vld [vmem:[%s0 + $0x1f0] sm:$0xff]
  %v86 = vld [vmem:[%s0 + $0x1f8] sm:$0xff]
  %v87 = vld [vmem:[%s1] sm:$0x1]
  %v89 = vperm.slane %v87, 0
  %v91 = vmul.f32 %v23, %v89
  %v92 = vmul.f32 %v24, %v89
  %v93 = vmul.f32 %v25, %v89
  %v94 = vmul.f32 %v26, %v89
  %v95 = vmul.f32 %v27, %v89
  %v96 = vmul.f32 %v28, %v89
  %v97 = vmul.f32 %v29, %v89
  %v98 = vmul.f32 %v30, %v89
  %v99 = vmul.f32 %v31, %v89
  %v100 = vmul.f32 %v32, %v89
  %v101 = vmul.f32 %v33, %v89
  %v102 = vmul.f32 %v34, %v89
  %v103 = vmul.f32 %v35, %v89
  %v104 = vmul.f32 %v36, %v89
  %v105 = vmul.f32 %v37, %v89
  %v106 = vmul.f32 %v38, %v89
  %v107 = vmul.f32 %v39, %v89
  %v108 = vmul.f32 %v40, %v89
  %v109 = vmul.f32 %v41, %v89
  %v110 = vmul.f32 %v42, %v89
  %v111 = vmul.f32 %v43, %v89
  %v112 = vmul.f32 %v44, %v89
  %v113 = vmul.f32 %v45, %v89
  %v114 = vmul.f32 %v46, %v89
  %v115 = vmul.f32 %v47, %v89
  %v116 = vmul.f32 %v48, %v89
  %v117 = vmul.f32 %v49, %v89
  %v118 = vmul.f32 %v50, %v89
  %v119 = vmul.f32 %v51, %v89
  %v120 = vmul.f32 %v52, %v89
  %v121 = vmul.f32 %v53, %v89
  %v122 = vmul.f32 %v54, %v89
  %v123 = vmul.f32 %v55, %v89
  %v124 = vmul.f32 %v56, %v89
  %v125 = vmul.f32 %v57, %v89
  %v126 = vmul.f32 %v58, %v89
  %v127 = vmul.f32 %v59, %v89
  %v128 = vmul.f32 %v60, %v89
  %v129 = vmul.f32 %v61, %v89
  %v130 = vmul.f32 %v62, %v89
  %v131 = vmul.f32 %v63, %v89
  %v132 = vmul.f32 %v64, %v89
  %v133 = vmul.f32 %v65, %v89
  %v134 = vmul.f32 %v66, %v89
  %v135 = vmul.f32 %v67, %v89
  %v136 = vmul.f32 %v68, %v89
  %v137 = vmul.f32 %v69, %v89
  %v138 = vmul.f32 %v70, %v89
  %v139 = vmul.f32 %v71, %v89
  %v140 = vmul.f32 %v72, %v89
  %v141 = vmul.f32 %v73, %v89
  %v142 = vmul.f32 %v74, %v89
  %v143 = vmul.f32 %v75, %v89
  %v144 = vmul.f32 %v76, %v89
  %v145 = vmul.f32 %v77, %v89
  %v146 = vmul.f32 %v78, %v89
  %v147 = vmul.f32 %v79, %v89
  %v148 = vmul.f32 %v80, %v89
  %v149 = vmul.f32 %v81, %v89
  %v150 = vmul.f32 %v82, %v89
  %v151 = vmul.f32 %v83, %v89
  %v152 = vmul.f32 %v84, %v89
  %v153 = vmul.f32 %v85, %v89
  %v154 = vmul.f32 %v86, %v89
  %v155 = vld [vmem:[%s2] sm:$0x1]
  %v157 = vperm.slane %v155, 0
  %v159 = vadd.f32 %v91, %v157
  %v160 = vadd.f32 %v92, %v157
  %v161 = vadd.f32 %v93, %v157
  %v162 = vadd.f32 %v94, %v157
  %v163 = vadd.f32 %v95, %v157
  %v164 = vadd.f32 %v96, %v157
  %v165 = vadd.f32 %v97, %v157
  %v166 = vadd.f32 %v98, %v157
  %v167 = vadd.f32 %v99, %v157
  %v168 = vadd.f32 %v100, %v157
  %v169 = vadd.f32 %v101, %v157
  %v170 = vadd.f32 %v102, %v157
  %v171 = vadd.f32 %v103, %v157
  %v172 = vadd.f32 %v104, %v157
  %v173 = vadd.f32 %v105, %v157
  %v174 = vadd.f32 %v106, %v157
  %v175 = vadd.f32 %v107, %v157
  %v176 = vadd.f32 %v108, %v157
  %v177 = vadd.f32 %v109, %v157
  %v178 = vadd.f32 %v110, %v157
  %v179 = vadd.f32 %v111, %v157
  %v180 = vadd.f32 %v112, %v157
  %v181 = vadd.f32 %v113, %v157
  %v182 = vadd.f32 %v114, %v157
  %v183 = vadd.f32 %v115, %v157
  %v184 = vadd.f32 %v116, %v157
  %v185 = vadd.f32 %v117, %v157
  %v186 = vadd.f32 %v118, %v157
  %v187 = vadd.f32 %v119, %v157
  %v188 = vadd.f32 %v120, %v157
  %v189 = vadd.f32 %v121, %v157
  %v190 = vadd.f32 %v122, %v157
  %v191 = vadd.f32 %v123, %v157
  %v192 = vadd.f32 %v124, %v157
  %v193 = vadd.f32 %v125, %v157
  %v194 = vadd.f32 %v126, %v157
  %v195 = vadd.f32 %v127, %v157
  %v196 = vadd.f32 %v128, %v157
  %v197 = vadd.f32 %v129, %v157
  %v198 = vadd.f32 %v130, %v157
  %v199 = vadd.f32 %v131, %v157
  %v200 = vadd.f32 %v132, %v157
  %v201 = vadd.f32 %v133, %v157
  %v202 = vadd.f32 %v134, %v157
  %v203 = vadd.f32 %v135, %v157
  %v204 = vadd.f32 %v136, %v157
  %v205 = vadd.f32 %v137, %v157
  %v206 = vadd.f32 %v138, %v157
  %v207 = vadd.f32 %v139, %v157
  %v208 = vadd.f32 %v140, %v157
  %v209 = vadd.f32 %v141, %v157
  %v210 = vadd.f32 %v142, %v157
  %v211 = vadd.f32 %v143, %v157
  %v212 = vadd.f32 %v144, %v157
  %v213 = vadd.f32 %v145, %v157
  %v214 = vadd.f32 %v146, %v157
  %v215 = vadd.f32 %v147, %v157
  %v216 = vadd.f32 %v148, %v157
  %v217 = vadd.f32 %v149, %v157
  %v218 = vadd.f32 %v150, %v157
  %v219 = vadd.f32 %v151, %v157
  %v220 = vadd.f32 %v152, %v157
  %v221 = vadd.f32 %v153, %v157
  %v222 = vadd.f32 %v154, %v157
  %v223 = vld [vmem:[%s3] sm:$0xff]
  %v224 = vld [vmem:[%s3 + $0x8] sm:$0xff]
  %v225 = vld [vmem:[%s3 + $0x10] sm:$0xff]
  %v226 = vld [vmem:[%s3 + $0x18] sm:$0xff]
  %v227 = vld [vmem:[%s3 + $0x20] sm:$0xff]
  %v228 = vld [vmem:[%s3 + $0x28] sm:$0xff]
  %v229 = vld [vmem:[%s3 + $0x30] sm:$0xff]
  %v230 = vld [vmem:[%s3 + $0x38] sm:$0xff]
  %v231 = vld [vmem:[%s3 + $0x40] sm:$0xff]
  %v232 = vld [vmem:[%s3 + $0x48] sm:$0xff]
  %v233 = vld [vmem:[%s3 + $0x50] sm:$0xff]
  %v234 = vld [vmem:[%s3 + $0x58] sm:$0xff]
  %v235 = vld [vmem:[%s3 + $0x60] sm:$0xff]
  %v236 = vld [vmem:[%s3 + $0x68] sm:$0xff]
  %v237 = vld [vmem:[%s3 + $0x70] sm:$0xff]
  %v238 = vld [vmem:[%s3 + $0x78] sm:$0xff]
  %v239 = vld [vmem:[%s3 + $0x80] sm:$0xff]
  %v240 = vld [vmem:[%s3 + $0x88] sm:$0xff]
  %v241 = vld [vmem:[%s3 + $0x90] sm:$0xff]
  %v242 = vld [vmem:[%s3 + $0x98] sm:$0xff]
  %v243 = vld [vmem:[%s3 + $0xa0] sm:$0xff]
  %v244 = vld [vmem:[%s3 + $0xa8] sm:$0xff]
  %v245 = vld [vmem:[%s3 + $0xb0] sm:$0xff]
  %v246 = vld [vmem:[%s3 + $0xb8] sm:$0xff]
  %v247 = vld [vmem:[%s3 + $0xc0] sm:$0xff]
  %v248 = vld [vmem:[%s3 + $0xc8] sm:$0xff]
  %v249 = vld [vmem:[%s3 + $0xd0] sm:$0xff]
  %v250 = vld [vmem:[%s3 + $0xd8] sm:$0xff]
  %v251 = vld [vmem:[%s3 + $0xe0] sm:$0xff]
  %v252 = vld [vmem:[%s3 + $0xe8] sm:$0xff]
  %v253 = vld [vmem:[%s3 + $0xf0] sm:$0xff]
  %v254 = vld [vmem:[%s3 + $0xf8] sm:$0xff]
  %v255 = vld [vmem:[%s3 + $0x100] sm:$0xff]
  %v256 = vld [vmem:[%s3 + $0x108] sm:$0xff]
  %v257 = vld [vmem:[%s3 + $0x110] sm:$0xff]
  %v258 = vld [vmem:[%s3 + $0x118] sm:$0xff]
  %v259 = vld [vmem:[%s3 + $0x120] sm:$0xff]
  %v260 = vld [vmem:[%s3 + $0x128] sm:$0xff]
  %v261 = vld [vmem:[%s3 + $0x130] sm:$0xff]
  %v262 = vld [vmem:[%s3 + $0x138] sm:$0xff]
  %v263 = vld [vmem:[%s3 + $0x140] sm:$0xff]
  %v264 = vld [vmem:[%s3 + $0x148] sm:$0xff]
  %v265 = vld [vmem:[%s3 + $0x150] sm:$0xff]
  %v266 = vld [vmem:[%s3 + $0x158] sm:$0xff]
  %v267 = vld [vmem:[%s3 + $0x160] sm:$0xff]
  %v268 = vld [vmem:[%s3 + $0x168] sm:$0xff]
  %v269 = vld [vmem:[%s3 + $0x170] sm:$0xff]
  %v270 = vld [vmem:[%s3 + $0x178] sm:$0xff]
  %v271 = vld [vmem:[%s3 + $0x180] sm:$0xff]
  %v272 = vld [vmem:[%s3 + $0x188] sm:$0xff]
  %v273 = vld [vmem:[%s3 + $0x190] sm:$0xff]
  %v274 = vld [vmem:[%s3 + $0x198] sm:$0xff]
  %v275 = vld [vmem:[%s3 + $0x1a0] sm:$0xff]
  %v276 = vld [vmem:[%s3 + $0x1a8] sm:$0xff]
  %v277 = vld [vmem:[%s3 + $0x1b0] sm:$0xff]
  %v278 = vld [vmem:[%s3 + $0x1b8] sm:$0xff]
  %v279 = vld [vmem:[%s3 + $0x1c0] sm:$0xff]
  %v280 = vld [vmem:[%s3 + $0x1c8] sm:$0xff]
  %v281 = vld [vmem:[%s3 + $0x1d0] sm:$0xff]
  %v282 = vld [vmem:[%s3 + $0x1d8] sm:$0xff]
  %v283 = vld [vmem:[%s3 + $0x1e0] sm:$0xff]
  %v284 = vld [vmem:[%s3 + $0x1e8] sm:$0xff]
  %v285 = vld [vmem:[%s3 + $0x1f0] sm:$0xff]
  %v286 = vld [vmem:[%s3 + $0x1f8] sm:$0xff]
  %v287 = vld [vmem:[%s4] sm:$0x1]
  %v289 = vperm.slane %v287, 0
  %v291 = vmul.f32 %v223, %v289
  %v292 = vmul.f32 %v224, %v289
  %v293 = vmul.f32 %v225, %v289
  %v294 = vmul.f32 %v226, %v289
  %v295 = vmul.f32 %v227, %v289
  %v296 = vmul.f32 %v228, %v289
  %v297 = vmul.f32 %v229, %v289
  %v298 = vmul.f32 %v230, %v289
  %v299 = vmul.f32 %v231, %v289
  %v300 = vmul.f32 %v232, %v289
  %v301 = vmul.f32 %v233, %v289
  %v302 = vmul.f32 %v234, %v289
  %v303 = vmul.f32 %v235, %v289
  %v304 = vmul.f32 %v236, %v289
  %v305 = vmul.f32 %v237, %v289
  %v306 = vmul.f32 %v238, %v289
  %v307 = vmul.f32 %v239, %v289
  %v308 = vmul.f32 %v240, %v289
  %v309 = vmul.f32 %v241, %v289
  %v310 = vmul.f32 %v242, %v289
  %v311 = vmul.f32 %v243, %v289
  %v312 = vmul.f32 %v244, %v289
  %v313 = vmul.f32 %v245, %v289
  %v314 = vmul.f32 %v246, %v289
  %v315 = vmul.f32 %v247, %v289
  %v316 = vmul.f32 %v248, %v289
  %v317 = vmul.f32 %v249, %v289
  %v318 = vmul.f32 %v250, %v289
  %v319 = vmul.f32 %v251, %v289
  %v320 = vmul.f32 %v252, %v289
  %v321 = vmul.f32 %v253, %v289
  %v322 = vmul.f32 %v254, %v289
  %v323 = vmul.f32 %v255, %v289
  %v324 = vmul.f32 %v256, %v289
  %v325 = vmul.f32 %v257, %v289
  %v326 = vmul.f32 %v258, %v289
  %v327 = vmul.f32 %v259, %v289
  %v328 = vmul.f32 %v260, %v289
  %v329 = vmul.f32 %v261, %v289
  %v330 = vmul.f32 %v262, %v289
  %v331 = vmul.f32 %v263, %v289
  %v332 = vmul.f32 %v264, %v289
  %v333 = vmul.f32 %v265, %v289
  %v334 = vmul.f32 %v266, %v289
  %v335 = vmul.f32 %v267, %v289
  %v336 = vmul.f32 %v268, %v289
  %v337 = vmul.f32 %v269, %v289
  %v338 = vmul.f32 %v270, %v289
  %v339 = vmul.f32 %v271, %v289
  %v340 = vmul.f32 %v272, %v289
  %v341 = vmul.f32 %v273, %v289
  %v342 = vmul.f32 %v274, %v289
  %v343 = vmul.f32 %v275, %v289
  %v344 = vmul.f32 %v276, %v289
  %v345 = vmul.f32 %v277, %v289
  %v346 = vmul.f32 %v278, %v289
  %v347 = vmul.f32 %v279, %v289
  %v348 = vmul.f32 %v280, %v289
  %v349 = vmul.f32 %v281, %v289
  %v350 = vmul.f32 %v282, %v289
  %v351 = vmul.f32 %v283, %v289
  %v352 = vmul.f32 %v284, %v289
  %v353 = vmul.f32 %v285, %v289
  %v354 = vmul.f32 %v286, %v289
  %v355 = vadd.f32 %v159, %v291
  %v356 = vadd.f32 %v160, %v292
  %v357 = vadd.f32 %v161, %v293
  %v358 = vadd.f32 %v162, %v294
  %v359 = vadd.f32 %v163, %v295
  %v360 = vadd.f32 %v164, %v296
  %v361 = vadd.f32 %v165, %v297
  %v362 = vadd.f32 %v166, %v298
  %v363 = vadd.f32 %v167, %v299
  %v364 = vadd.f32 %v168, %v300
  %v365 = vadd.f32 %v169, %v301
  %v366 = vadd.f32 %v170, %v302
  %v367 = vadd.f32 %v171, %v303
  %v368 = vadd.f32 %v172, %v304
  %v369 = vadd.f32 %v173, %v305
  %v370 = vadd.f32 %v174, %v306
  %v371 = vadd.f32 %v175, %v307
  %v372 = vadd.f32 %v176, %v308
  %v373 = vadd.f32 %v177, %v309
  %v374 = vadd.f32 %v178, %v310
  %v375 = vadd.f32 %v179, %v311
  %v376 = vadd.f32 %v180, %v312
  %v377 = vadd.f32 %v181, %v313
  %v378 = vadd.f32 %v182, %v314
  %v379 = vadd.f32 %v183, %v315
  %v380 = vadd.f32 %v184, %v316
  %v381 = vadd.f32 %v185, %v317
  %v382 = vadd.f32 %v186, %v318
  %v383 = vadd.f32 %v187, %v319
  %v384 = vadd.f32 %v188, %v320
  %v385 = vadd.f32 %v189, %v321
  %v386 = vadd.f32 %v190, %v322
  %v387 = vadd.f32 %v191, %v323
  %v388 = vadd.f32 %v192, %v324
  %v389 = vadd.f32 %v193, %v325
  %v390 = vadd.f32 %v194, %v326
  %v391 = vadd.f32 %v195, %v327
  %v392 = vadd.f32 %v196, %v328
  %v393 = vadd.f32 %v197, %v329
  %v394 = vadd.f32 %v198, %v330
  %v395 = vadd.f32 %v199, %v331
  %v396 = vadd.f32 %v200, %v332
  %v397 = vadd.f32 %v201, %v333
  %v398 = vadd.f32 %v202, %v334
  %v399 = vadd.f32 %v203, %v335
  %v400 = vadd.f32 %v204, %v336
  %v401 = vadd.f32 %v205, %v337
  %v402 = vadd.f32 %v206, %v338
  %v403 = vadd.f32 %v207, %v339
  %v404 = vadd.f32 %v208, %v340
  %v405 = vadd.f32 %v209, %v341
  %v406 = vadd.f32 %v210, %v342
  %v407 = vadd.f32 %v211, %v343
  %v408 = vadd.f32 %v212, %v344
  %v409 = vadd.f32 %v213, %v345
  %v410 = vadd.f32 %v214, %v346
  %v411 = vadd.f32 %v215, %v347
  %v412 = vadd.f32 %v216, %v348
  %v413 = vadd.f32 %v217, %v349
  %v414 = vadd.f32 %v218, %v350
  %v415 = vadd.f32 %v219, %v351
  %v416 = vadd.f32 %v220, %v352
  %v417 = vadd.f32 %v221, %v353
  %v418 = vadd.f32 %v222, %v354
  %v419 = vld [vmem:[%s5] sm:$0x1]
  %v421 = vperm.slane %v419, 0
  %v423 = vadd.f32 %v355, %v421
  %v424 = vadd.f32 %v356, %v421
  %v425 = vadd.f32 %v357, %v421
  %v426 = vadd.f32 %v358, %v421
  %v427 = vadd.f32 %v359, %v421
  %v428 = vadd.f32 %v360, %v421
  %v429 = vadd.f32 %v361, %v421
  %v430 = vadd.f32 %v362, %v421
  %v431 = vadd.f32 %v363, %v421
  %v432 = vadd.f32 %v364, %v421
  %v433 = vadd.f32 %v365, %v421
  %v434 = vadd.f32 %v366, %v421
  %v435 = vadd.f32 %v367, %v421
  %v436 = vadd.f32 %v368, %v421
  %v437 = vadd.f32 %v369, %v421
  %v438 = vadd.f32 %v370, %v421
  %v439 = vadd.f32 %v371, %v421
  %v440 = vadd.f32 %v372, %v421
  %v441 = vadd.f32 %v373, %v421
  %v442 = vadd.f32 %v374, %v421
  %v443 = vadd.f32 %v375, %v421
  %v444 = vadd.f32 %v376, %v421
  %v445 = vadd.f32 %v377, %v421
  %v446 = vadd.f32 %v378, %v421
  %v447 = vadd.f32 %v379, %v421
  %v448 = vadd.f32 %v380, %v421
  %v449 = vadd.f32 %v381, %v421
  %v450 = vadd.f32 %v382, %v421
  %v451 = vadd.f32 %v383, %v421
  %v452 = vadd.f32 %v384, %v421
  %v453 = vadd.f32 %v385, %v421
  %v454 = vadd.f32 %v386, %v421
  %v455 = vadd.f32 %v387, %v421
  %v456 = vadd.f32 %v388, %v421
  %v457 = vadd.f32 %v389, %v421
  %v458 = vadd.f32 %v390, %v421
  %v459 = vadd.f32 %v391, %v421
  %v460 = vadd.f32 %v392, %v421
  %v461 = vadd.f32 %v393, %v421
  %v462 = vadd.f32 %v394, %v421
  %v463 = vadd.f32 %v395, %v421
  %v464 = vadd.f32 %v396, %v421
  %v465 = vadd.f32 %v397, %v421
  %v466 = vadd.f32 %v398, %v421
  %v467 = vadd.f32 %v399, %v421
  %v468 = vadd.f32 %v400, %v421
  %v469 = vadd.f32 %v401, %v421
  %v470 = vadd.f32 %v402, %v421
  %v471 = vadd.f32 %v403, %v421
  %v472 = vadd.f32 %v404, %v421
  %v473 = vadd.f32 %v405, %v421
  %v474 = vadd.f32 %v406, %v421
  %v475 = vadd.f32 %v407, %v421
  %v476 = vadd.f32 %v408, %v421
  %v477 = vadd.f32 %v409, %v421
  %v478 = vadd.f32 %v410, %v421
  %v479 = vadd.f32 %v411, %v421
  %v480 = vadd.f32 %v412, %v421
  %v481 = vadd.f32 %v413, %v421
  %v482 = vadd.f32 %v414, %v421
  %v483 = vadd.f32 %v415, %v421
  %v484 = vadd.f32 %v416, %v421
  %v485 = vadd.f32 %v417, %v421
  %v486 = vadd.f32 %v418, %v421
  %v487 = vmax.f32 %v423, 0.0
  %v488 = vmax.f32 %v424, 0.0
  %v489 = vmax.f32 %v425, 0.0
  %v490 = vmax.f32 %v426, 0.0
  %v491 = vmax.f32 %v427, 0.0
  %v492 = vmax.f32 %v428, 0.0
  %v493 = vmax.f32 %v429, 0.0
  %v494 = vmax.f32 %v430, 0.0
  %v495 = vmax.f32 %v431, 0.0
  %v496 = vmax.f32 %v432, 0.0
  %v497 = vmax.f32 %v433, 0.0
  %v498 = vmax.f32 %v434, 0.0
  %v499 = vmax.f32 %v435, 0.0
  %v500 = vmax.f32 %v436, 0.0
  %v501 = vmax.f32 %v437, 0.0
  %v502 = vmax.f32 %v438, 0.0
  %v503 = vmax.f32 %v439, 0.0
  %v504 = vmax.f32 %v440, 0.0
  %v505 = vmax.f32 %v441, 0.0
  %v506 = vmax.f32 %v442, 0.0
  %v507 = vmax.f32 %v443, 0.0
  %v508 = vmax.f32 %v444, 0.0
  %v509 = vmax.f32 %v445, 0.0
  %v510 = vmax.f32 %v446, 0.0
  %v511 = vmax.f32 %v447, 0.0
  %v512 = vmax.f32 %v448, 0.0
  %v513 = vmax.f32 %v449, 0.0
  %v514 = vmax.f32 %v450, 0.0
  %v515 = vmax.f32 %v451, 0.0
  %v516 = vmax.f32 %v452, 0.0
  %v517 = vmax.f32 %v453, 0.0
  %v518 = vmax.f32 %v454, 0.0
  %v519 = vmax.f32 %v455, 0.0
  %v520 = vmax.f32 %v456, 0.0
  %v521 = vmax.f32 %v457, 0.0
  %v522 = vmax.f32 %v458, 0.0
  %v523 = vmax.f32 %v459, 0.0
  %v524 = vmax.f32 %v460, 0.0
  %v525 = vmax.f32 %v461, 0.0
  %v526 = vmax.f32 %v462, 0.0
  %v527 = vmax.f32 %v463, 0.0
  %v528 = vmax.f32 %v464, 0.0
  %v529 = vmax.f32 %v465, 0.0
  %v530 = vmax.f32 %v466, 0.0
  %v531 = vmax.f32 %v467, 0.0
  %v532 = vmax.f32 %v468, 0.0
  %v533 = vmax.f32 %v469, 0.0
  %v534 = vmax.f32 %v470, 0.0
  %v535 = vmax.f32 %v471, 0.0
  %v536 = vmax.f32 %v472, 0.0
  %v537 = vmax.f32 %v473, 0.0
  %v538 = vmax.f32 %v474, 0.0
  %v539 = vmax.f32 %v475, 0.0
  %v540 = vmax.f32 %v476, 0.0
  %v541 = vmax.f32 %v477, 0.0
  %v542 = vmax.f32 %v478, 0.0
  %v543 = vmax.f32 %v479, 0.0
  %v544 = vmax.f32 %v480, 0.0
  %v545 = vmax.f32 %v481, 0.0
  %v546 = vmax.f32 %v482, 0.0
  %v547 = vmax.f32 %v483, 0.0
  %v548 = vmax.f32 %v484, 0.0
  %v549 = vmax.f32 %v485, 0.0
  %v550 = vmax.f32 %v486, 0.0
  %551 = vst [vmem:[%s6] sm:$0xff] %v487
  %552 = vst [vmem:[%s6 + $0x8] sm:$0xff] %v488
  %553 = vst [vmem:[%s6 + $0x10] sm:$0xff] %v489
  %554 = vst [vmem:[%s6 + $0x18] sm:$0xff] %v490
  %555 = vst [vmem:[%s6 + $0x20] sm:$0xff] %v491
  %556 = vst [vmem:[%s6 + $0x28] sm:$0xff] %v492
  %557 = vst [vmem:[%s6 + $0x30] sm:$0xff] %v493
  %558 = vst [vmem:[%s6 + $0x38] sm:$0xff] %v494
  %559 = vst [vmem:[%s6 + $0x40] sm:$0xff] %v495
  %560 = vst [vmem:[%s6 + $0x48] sm:$0xff] %v496
  %561 = vst [vmem:[%s6 + $0x50] sm:$0xff] %v497
  %562 = vst [vmem:[%s6 + $0x58] sm:$0xff] %v498
  %563 = vst [vmem:[%s6 + $0x60] sm:$0xff] %v499
  %564 = vst [vmem:[%s6 + $0x68] sm:$0xff] %v500
  %565 = vst [vmem:[%s6 + $0x70] sm:$0xff] %v501
  %566 = vst [vmem:[%s6 + $0x78] sm:$0xff] %v502
  %567 = vst [vmem:[%s6 + $0x80] sm:$0xff] %v503
  %568 = vst [vmem:[%s6 + $0x88] sm:$0xff] %v504
  %569 = vst [vmem:[%s6 + $0x90] sm:$0xff] %v505
  %570 = vst [vmem:[%s6 + $0x98] sm:$0xff] %v506
  %571 = vst [vmem:[%s6 + $0xa0] sm:$0xff] %v507
  %572 = vst [vmem:[%s6 + $0xa8] sm:$0xff] %v508
  %573 = vst [vmem:[%s6 + $0xb0] sm:$0xff] %v509
  %574 = vst [vmem:[%s6 + $0xb8] sm:$0xff] %v510
  %575 = vst [vmem:[%s6 + $0xc0] sm:$0xff] %v511
  %576 = vst [vmem:[%s6 + $0xc8] sm:$0xff] %v512
  %577 = vst [vmem:[%s6 + $0xd0] sm:$0xff] %v513
  %578 = vst [vmem:[%s6 + $0xd8] sm:$0xff] %v514
  %579 = vst [vmem:[%s6 + $0xe0] sm:$0xff] %v515
  %580 = vst [vmem:[%s6 + $0xe8] sm:$0xff] %v516
  %581 = vst [vmem:[%s6 + $0xf0] sm:$0xff] %v517
  %582 = vst [vmem:[%s6 + $0xf8] sm:$0xff] %v518
  %583 = vst [vmem:[%s6 + $0x100] sm:$0xff] %v519
  %584 = vst [vmem:[%s6 + $0x108] sm:$0xff] %v520
  %585 = vst [vmem:[%s6 + $0x110] sm:$0xff] %v521
  %586 = vst [vmem:[%s6 + $0x118] sm:$0xff] %v522
  %587 = vst [vmem:[%s6 + $0x120] sm:$0xff] %v523
  %588 = vst [vmem:[%s6 + $0x128] sm:$0xff] %v524
  %589 = vst [vmem:[%s6 + $0x130] sm:$0xff] %v525
  %590 = vst [vmem:[%s6 + $0x138] sm:$0xff] %v526
  %591 = vst [vmem:[%s6 + $0x140] sm:$0xff] %v527
  %592 = vst [vmem:[%s6 + $0x148] sm:$0xff] %v528
  %593 = vst [vmem:[%s6 + $0x150] sm:$0xff] %v529
  %594 = vst [vmem:[%s6 + $0x158] sm:$0xff] %v530
  %595 = vst [vmem:[%s6 + $0x160] sm:$0xff] %v531
  %596 = vst [vmem:[%s6 + $0x168] sm:$0xff] %v532
  %597 = vst [vmem:[%s6 + $0x170] sm:$0xff] %v533
  %598 = vst [vmem:[%s6 + $0x178] sm:$0xff] %v534
  %599 = vst [vmem:[%s6 + $0x180] sm:$0xff] %v535
  %600 = vst [vmem:[%s6 + $0x188] sm:$0xff] %v536
  %601 = vst [vmem:[%s6 + $0x190] sm:$0xff] %v537
  %602 = vst [vmem:[%s6 + $0x198] sm:$0xff] %v538
  %603 = vst [vmem:[%s6 + $0x1a0] sm:$0xff] %v539
  %604 = vst [vmem:[%s6 + $0x1a8] sm:$0xff] %v540
  %605 = vst [vmem:[%s6 + $0x1b0] sm:$0xff] %v541
  %606 = vst [vmem:[%s6 + $0x1b8] sm:$0xff] %v542
  %607 = vst [vmem:[%s6 + $0x1c0] sm:$0xff] %v543
  %608 = vst [vmem:[%s6 + $0x1c8] sm:$0xff] %v544
  %609 = vst [vmem:[%s6 + $0x1d0] sm:$0xff] %v545
  %610 = vst [vmem:[%s6 + $0x1d8] sm:$0xff] %v546
  %611 = vst [vmem:[%s6 + $0x1e0] sm:$0xff] %v547
  %612 = vst [vmem:[%s6 + $0x1e8] sm:$0xff] %v548
  %613 = vst [vmem:[%s6 + $0x1f0] sm:$0xff] %v549
  %614 = vst [vmem:[%s6 + $0x1f8] sm:$0xff] %v550
  // Predicated region
  $region26: #{_lambda_.7} parent=0 // pred_check
    _
  $region27: #{_lambda_.7} parent=0 // pred_check_branch
    %616 = sbr.rel (0) target = $region29
  $region28: #{_lambda_.7} parent=0 // pred_region
    _
  $region29: #{_lambda_.7} parent=0 // pred_fallthru
    _
  // Predicated region
  $region30: #{_lambda_.7} parent=0 // pred_check
    _
  $region31: #{_lambda_.7} parent=0 // pred_check_branch
    %618 = sbr.rel (0) target = $region33
  $region32: #{_lambda_.7} parent=0 // pred_region
    _
  $region33: #{_lambda_.7} parent=0 // pred_fallthru
    _

// kernel: _lambda_.4
$region0: #{_lambda_.4}
  #allocation0 [shape = 'u32[]', space=smem, size = 0x4, offset = 0x4, fixed_abs, tag = 'smem constant byte address 0x4 - core index']
  #allocation1 [shape = 'u32[72,128]{1,0:T(1,128)}', space=vmem, size = 0x9000, scoped, tag = 'internal scratch']
  %s0 = inlined_call_operand.vmem [shape: f32[2,1,18,18,128], index: 0, kind: input, shape index: {}]
  %s1 = inlined_call_operand.vmem [shape: f32[1152,128], index: 1, kind: input, shape index: {}]
  %s2 = inlined_call_operand.vmem [shape: f32[2,16,16,128], index: 2, kind: output, shape index: {0}]
  %s3 = inlined_call_operand.vmem [shape: f32[2,1,2,128], index: 3, kind: output, shape index: {1}]
  %4 = xla_tuple %s2, %s3
  %s5 = sld [smem:[#allocation0]]
  $region49: #{_lambda_.4} parent=0
    _
  %s7 = ssub.s32 1, %s5
  %s8 = scalar_select 0, %s7, %s5
  loop: start=0, step=1, limit=4
  $region2: #{_lambda_.4} parent=0 // loop_pre_header
    _
  $region3: #{_lambda_.4} parent=0 // loop_header
    %s10 = sphi 0, %s14
    %p11 = scmp.ge.s32.totalorder %s10, 4
    %s17 = sphi 0, %s29
    %s18 = sphi 0, %s25
    %s19 = sphi 0, %s17
    %s20 = sphi 0, %s18
    %s21 = sphi 0, %s19
    %s22 = sphi 0, %s20
    %s32 = sphi 0, %s34
    %s35 = sphi 0, %s32
    %s36 = sphi 0, %s35
    %s52 = sphi 0, %s36
    %s56 = sphi 0, %s56
    %s58 = sphi 0, %s56
    %s59 = sphi 0, %s58
    %s73 = sphi 0, %s59
    %s81 = sphi 0, %s83
    %s84 = sphi 0, %s81
    %s85 = sphi 0, %s84
    %s101 = sphi 0, %s85
    %s109 = sphi 0, %s111
    %s112 = sphi 0, %s109
    %s113 = sphi 0, %s112
    %s129 = sphi 0, %s113
  $region4: #{_lambda_.4} parent=0 // loop_header_branch
    %13 = sbr.rel (%p11) target = $region8
  $region5: #{_lambda_.4} parent=0 // loop_body
    %s15 = ssub.s32 %s10, 1
    %s16 = ssub.s32 %s10, 2
    %s23 = sadd.s32 1, %s18
    %p24 = scmp.ge.s32.totalorder %s23, 1
    %s25 = scalar_select %p24, 0, %s23
    %s26 = sadd.s32 1, %s17
    %s27 = scalar_select %p24, %s26, %s17
    %p28 = scmp.ge.s32.totalorder %s27, 2
    %s29 = scalar_select %p28, 0, %s27
    %s30 = ssub.s32 %s17, %s29
    %p31 = scmp.eq.s32.totalorder %s30, 0
    %s33 = sadd.s32 %s32, 1
    %s34 = scalar_select %p31, %s32, %s33
    %p37 = pneg %p31
    %p38 = scmp.eq.s32.totalorder %s10, 1
    %p39 = por %p37, %p38
    %p40 = scmp.ne.s32.totalorder %s32, %s35
    %p41 = scmp.eq.s32.totalorder %s10, 0
    %p42 = por %p40, %p41
    %p43 = scmp.ne.s32.totalorder %s32, %s35
    %p44 = scmp.eq.s32.totalorder %s15, 1
    %p45 = por %p43, %p44
    %p46 = scmp.ne.s32.totalorder %s35, %s36
    %p47 = scmp.eq.s32.totalorder %s15, 0
    %p48 = por %p46, %p47
    %p49 = scmp.ne.s32.totalorder %s35, %s36
    %p50 = scmp.eq.s32.totalorder %s16, 1
    %p51 = por %p49, %p50
    %p53 = scmp.ne.s32.totalorder %s36, %s52
    %p54 = scmp.eq.s32.totalorder %s16, 0
    %p55 = por %p53, %p54
    %s57 = sadd.s32 %s56, 1
    %p60 = scmp.eq.s32.totalorder %s10, 1
    %p61 = scmp.ne.s32.totalorder %s56, %s58
    %p62 = scmp.eq.s32.totalorder %s10, 0
    %p63 = por %p61, %p62
    %p64 = scmp.ne.s32.totalorder %s56, %s58
    %p65 = scmp.eq.s32.totalorder %s15, 1
    %p66 = por %p64, %p65
    %p67 = scmp.ne.s32.totalorder %s58, %s59
    %p68 = scmp.eq.s32.totalorder %s15, 0
    %p69 = por %p67, %p68
    %p70 = scmp.ne.s32.totalorder %s58, %s59
    %p71 = scmp.eq.s32.totalorder %s16, 1
    %p72 = por %p70, %p71
    %p74 = scmp.ne.s32.totalorder %s59, %s73
    %p75 = scmp.eq.s32.totalorder %s16, 0
    %p76 = por %p74, %p75
    %s77 = ssub.s32 %s17, %s29
    %s78 = ssub.s32 %s18, %s25
    %s79 = sor.u32 %s77, %s78
    %p80 = scmp.eq.s32.totalorder %s79, 0
    %s82 = sadd.s32 %s81, 1
    %s83 = scalar_select %p80, %s81, %s82
    %p86 = pneg %p80
    %p87 = scmp.eq.s32.totalorder %s10, 1
    %p88 = por %p86, %p87
    %p89 = scmp.ne.s32.totalorder %s81, %s84
    %p90 = scmp.eq.s32.totalorder %s10, 0
    %p91 = por %p89, %p90
    %p92 = scmp.ne.s32.totalorder %s81, %s84
    %p93 = scmp.eq.s32.totalorder %s15, 1
    %p94 = por %p92, %p93
    %p95 = scmp.ne.s32.totalorder %s84, %s85
    %p96 = scmp.eq.s32.totalorder %s15, 0
    %p97 = por %p95, %p96
    %p98 = scmp.ne.s32.totalorder %s84, %s85
    %p99 = scmp.eq.s32.totalorder %s16, 1
    %p100 = por %p98, %p99
    %p102 = scmp.ne.s32.totalorder %s85, %s101
    %p103 = scmp.eq.s32.totalorder %s16, 0
    %p104 = por %p102, %p103
    %s105 = ssub.s32 %s17, %s29
    %s106 = ssub.s32 %s18, %s25
    %s107 = sor.u32 %s105, %s106
    %p108 = scmp.eq.s32.totalorder %s107, 0
    %s110 = sadd.s32 %s109, 1
    %s111 = scalar_select %p108, %s109, %s110
    %p114 = pneg %p108
    %p115 = scmp.eq.s32.totalorder %s10, 1
    %p116 = por %p114, %p115
    %p117 = scmp.ne.s32.totalorder %s109, %s112
    %p118 = scmp.eq.s32.totalorder %s10, 0
    %p119 = por %p117, %p118
    %p120 = scmp.ne.s32.totalorder %s109, %s112
    %p121 = scmp.eq.s32.totalorder %s15, 1
    %p122 = por %p120, %p121
    %p123 = scmp.ne.s32.totalorder %s112, %s113
    %p124 = scmp.eq.s32.totalorder %s15, 0
    %p125 = por %p123, %p124
    %p126 = scmp.ne.s32.totalorder %s112, %s113
    %p127 = scmp.eq.s32.totalorder %s16, 1
    %p128 = por %p126, %p127
    %p130 = scmp.ne.s32.totalorder %s113, %s129
    %p131 = scmp.eq.s32.totalorder %s16, 0
    %p132 = por %p130, %p131
    %p133 = scmp.le.s32.totalorder 1, %s10
    %p134 = scmp.lt.s32.totalorder %s10, 3
    %p135 = pnand %p133, %p134
    %p136 = pneg %p135
    // Predicated region
    $region9: #{_lambda_.4} parent=5 // pred_check
      _
    $region10: #{_lambda_.4} parent=5 // pred_check_branch
      %138 = sbr.rel (%p135) target = $region12
    $region11: #{_lambda_.4} parent=5 // pred_region
      %s139 = ssub.s32 %s10, 1
      // Predicated region
      $region13: #{_lambda_.4} parent=11 // pred_check
        %p140 = pneg %p69
      $region14: #{_lambda_.4} parent=11 // pred_check_branch
        %142 = sbr.rel (%p140) target = $region16
      $region15: #{_lambda_.4} parent=11 // pred_region
        _
      $region16: #{_lambda_.4} parent=11 // pred_fallthru
        _
    $region12: #{_lambda_.4} parent=5 // pred_fallthru
      _
    %p143 = scmp.lt.s32.totalorder %s10, 2
    // Predicated region
    $region17: #{_lambda_.4} parent=5 // pred_check
      %p144 = pneg %p143
    $region18: #{_lambda_.4} parent=5 // pred_check_branch
      %146 = sbr.rel (%p144) target = $region20
    $region19: #{_lambda_.4} parent=5 // pred_region
      // Predicated region
      $region21: #{_lambda_.4} parent=19 // pred_check
        %p147 = pneg %p42
      $region22: #{_lambda_.4} parent=19 // pred_check_branch
        %149 = sbr.rel (%p147) target = $region24
      $region23: #{_lambda_.4} parent=19 // pred_region
        %p150 = scmp.lt.s32.totalorder %s17, 1
        %s151 = scalar_select %p150, %s17, 1
        %s152 = smul.addr %s151, 54
        %s153 = smul.addr %s152, 8
        %s154 = scalar_lea.vmem %s0, %s153
      $region24: #{_lambda_.4} parent=19 // pred_fallthru
        _
    $region20: #{_lambda_.4} parent=5 // pred_fallthru
      _
    %p155 = scmp.le.s32.totalorder 1, %s10
    %p156 = scmp.lt.s32.totalorder %s10, 3
    %p157 = pnand %p155, %p156
    %p158 = pneg %p157
    // Predicated region
    $region25: #{_lambda_.4} parent=5 // pred_check
      _
    $region26: #{_lambda_.4} parent=5 // pred_check_branch
      %160 = sbr.rel (%p157) target = $region28
    $region27: #{_lambda_.4} parent=5 // pred_region
      %s161 = ssub.s32 %s10, 1
      %p162 = scmp.lt.s32.totalorder %s19, 1
      %s163 = scalar_select %p162, %s19, 1
      %s164 = smul.addr %s163, 54
      %s165 = smul.addr %s164, 8
      %s166 = scalar_lea.vmem %s0, %s165
      %p167 = pneg %p48
      %p168 = pneg %p45
      %p169 = pneg %p69
      %p170 = pneg %p66
      %p171 = pneg %p97
      %p172 = pneg %p94
      %s173 = smul.u32 16, %s20
      %p174 = scmp.lt.s32.totalorder %s19, 1
      %s175 = scalar_select %p174, %s19, 1
      %p176 = scmp.lt.s32.totalorder %s173, 15
      %s177 = scalar_select %p176, %s173, 15
      %s178 = smul.addr %s177, 2
      %s179 = smul.addr %s175, 32
      %s180 = sadd.s32 %s178, %s179
      %s181 = smul.addr %s180, 8
      %s182 = scalar_lea.vmem %s2, %s181
      %p183 = pneg %p125
      %p184 = pneg %p122
      %p185 = scmp.lt.s32.totalorder %s19, 1
      %s186 = scalar_select %p185, %s19, 1
      %p187 = scmp.lt.s32.totalorder %s20, 0
      %s188 = scalar_select %p187, %s20, 0
      %s189 = sadd.s32 %s188, %s186
      %s190 = smul.addr %s189, 2
      %s191 = scalar_lea.vmem %s3, %s190
      %p192 = scmp.lt.s32.totalorder %s19, 1
      %s193 = scalar_select %p192, %s19, 1
      %s194 = smul.addr %s193, 54
      %s195 = smul.addr %s194, 8
      %s196 = scalar_lea.vmem %s0, %s195
      %s197 = smul.u32 16, %s20
      %p198 = scmp.lt.s32.totalorder %s19, 1
      %s199 = scalar_select %p198, %s19, 1
      %p200 = scmp.lt.s32.totalorder %s197, 15
      %s201 = scalar_select %p200, %s197, 15
      %s202 = smul.addr %s201, 2
      %s203 = smul.addr %s199, 32
      %s204 = sadd.s32 %s202, %s203
      %s205 = smul.addr %s204, 8
      %s206 = scalar_lea.vmem %s2, %s205
      %s207 = smul.u32 16, %s20
      %p208 = scmp.lt.s32.totalorder %s19, 1
      %s209 = scalar_select %p208, %s19, 1
      %p210 = scmp.lt.s32.totalorder %s20, 0
      %s211 = scalar_select %p210, %s20, 0
      %s212 = sadd.s32 %s211, %s209
      %s213 = smul.addr %s212, 2
      %s214 = scalar_lea.vmem %s3, %s213
      %s215 = smul.u32 %s20, 16
      %s216 = smul.u32 %s215, 24
      %s217 = scalar_lea.vmem %s196, %s216
      %v218 = vld [vmem:[%s217] sm:$0xff]
      %v219 = vld [vmem:[%s217 + $0x8] sm:$0xff]
      %v220 = vld [vmem:[%s217 + $0x18] sm:$0xff]
      %v221 = vld [vmem:[%s217 + $0x20] sm:$0xff]
      %v222 = vld [vmem:[%s217 + $0x30] sm:$0xff]
      %v223 = vld [vmem:[%s217 + $0x38] sm:$0xff]
      %v224 = vld [vmem:[%s217 + $0x48] sm:$0xff]
      %v225 = vld [vmem:[%s217 + $0x50] sm:$0xff]
      %v226 = vld [vmem:[%s217 + $0x60] sm:$0xff]
      %v227 = vld [vmem:[%s217 + $0x68] sm:$0xff]
      %v228 = vld [vmem:[%s217 + $0x78] sm:$0xff]
      %v229 = vld [vmem:[%s217 + $0x80] sm:$0xff]
      %v230 = vld [vmem:[%s217 + $0x90] sm:$0xff]
      %v231 = vld [vmem:[%s217 + $0x98] sm:$0xff]
      %v232 = vld [vmem:[%s217 + $0xa8] sm:$0xff]
      %v233 = vld [vmem:[%s217 + $0xb0] sm:$0xff]
      %v234 = vld [vmem:[%s217 + $0xc0] sm:$0xff]
      %v235 = vld [vmem:[%s217 + $0xc8] sm:$0xff]
      %v236 = vld [vmem:[%s217 + $0xd8] sm:$0xff]
      %v237 = vld [vmem:[%s217 + $0xe0] sm:$0xff]
      %v238 = vld [vmem:[%s217 + $0xf0] sm:$0xff]
      %v239 = vld [vmem:[%s217 + $0xf8] sm:$0xff]
      %v240 = vld [vmem:[%s217 + $0x108] sm:$0xff]
      %v241 = vld [vmem:[%s217 + $0x110] sm:$0xff]
      %v242 = vld [vmem:[%s217 + $0x120] sm:$0xff]
      %v243 = vld [vmem:[%s217 + $0x128] sm:$0xff]
      %v244 = vld [vmem:[%s217 + $0x138] sm:$0xff]
      %v245 = vld [vmem:[%s217 + $0x140] sm:$0xff]
      %v246 = vld [vmem:[%s217 + $0x150] sm:$0xff]
      %v247 = vld [vmem:[%s217 + $0x158] sm:$0xff]
      %v248 = vld [vmem:[%s217 + $0x168] sm:$0xff]
      %v249 = vld [vmem:[%s217 + $0x170] sm:$0xff]
      %v250 = vld [vmem:[%s217 + $0x1] sm:$0xff]
      %v251 = vld [vmem:[%s217 + $0x9] sm:$0xff]
      %v252 = vld [vmem:[%s217 + $0x19] sm:$0xff]
      %v253 = vld [vmem:[%s217 + $0x21] sm:$0xff]
      %v254 = vld [vmem:[%s217 + $0x31] sm:$0xff]
      %v255 = vld [vmem:[%s217 + $0x39] sm:$0xff]
      %v256 = vld [vmem:[%s217 + $0x49] sm:$0xff]
      %v257 = vld [vmem:[%s217 + $0x51] sm:$0xff]
      %v258 = vld [vmem:[%s217 + $0x61] sm:$0xff]
      %v259 = vld [vmem:[%s217 + $0x69] sm:$0xff]
      %v260 = vld [vmem:[%s217 + $0x79] sm:$0xff]
      %v261 = vld [vmem:[%s217 + $0x81] sm:$0xff]
      %v262 = vld [vmem:[%s217 + $0x91] sm:$0xff]
      %v263 = vld [vmem:[%s217 + $0x99] sm:$0xff]
      %v264 = vld [vmem:[%s217 + $0xa9] sm:$0xff]
      %v265 = vld [vmem:[%s217 + $0xb1] sm:$0xff]
      %v266 = vld [vmem:[%s217 + $0xc1] sm:$0xff]
      %v267 = vld [vmem:[%s217 + $0xc9] sm:$0xff]
      %v268 = vld [vmem:[%s217 + $0xd9] sm:$0xff]
      %v269 = vld [vmem:[%s217 + $0xe1] sm:$0xff]
      %v270 = vld [vmem:[%s217 + $0xf1] sm:$0xff]
      %v271 = vld [vmem:[%s217 + $0xf9] sm:$0xff]
      %v272 = vld [vmem:[%s217 + $0x109] sm:$0xff]
      %v273 = vld [vmem:[%s217 + $0x111] sm:$0xff]
      %v274 = vld [vmem:[%s217 + $0x121] sm:$0xff]
      %v275 = vld [vmem:[%s217 + $0x129] sm:$0xff]
      %v276 = vld [vmem:[%s217 + $0x139] sm:$0xff]
      %v277 = vld [vmem:[%s217 + $0x141] sm:$0xff]
      %v278 = vld [vmem:[%s217 + $0x151] sm:$0xff]
      %v279 = vld [vmem:[%s217 + $0x159] sm:$0xff]
      %v280 = vld [vmem:[%s217 + $0x169] sm:$0xff]
      %v281 = vld [vmem:[%s217 + $0x171] sm:$0xff]
      %v282 = vld [vmem:[%s217 + $0x2] sm:$0xff]
      %v283 = vld [vmem:[%s217 + $0xa] sm:$0xff]
      %v284 = vld [vmem:[%s217 + $0x1a] sm:$0xff]
      %v285 = vld [vmem:[%s217 + $0x22] sm:$0xff]
      %v286 = vld [vmem:[%s217 + $0x32] sm:$0xff]
      %v287 = vld [vmem:[%s217 + $0x3a] sm:$0xff]
      %v288 = vld [vmem:[%s217 + $0x4a] sm:$0xff]
      %v289 = vld [vmem:[%s217 + $0x52] sm:$0xff]
      %v290 = vld [vmem:[%s217 + $0x62] sm:$0xff]
      %v291 = vld [vmem:[%s217 + $0x6a] sm:$0xff]
      %v292 = vld [vmem:[%s217 + $0x7a] sm:$0xff]
      %v293 = vld [vmem:[%s217 + $0x82] sm:$0xff]
      %v294 = vld [vmem:[%s217 + $0x92] sm:$0xff]
      %v295 = vld [vmem:[%s217 + $0x9a] sm:$0xff]
      %v296 = vld [vmem:[%s217 + $0xaa] sm:$0xff]
      %v297 = vld [vmem:[%s217 + $0xb2] sm:$0xff]
      %v298 = vld [vmem:[%s217 + $0xc2] sm:$0xff]
      %v299 = vld [vmem:[%s217 + $0xca] sm:$0xff]
      %v300 = vld [vmem:[%s217 + $0xda] sm:$0xff]
      %v301 = vld [vmem:[%s217 + $0xe2] sm:$0xff]
      %v302 = vld [vmem:[%s217 + $0xf2] sm:$0xff]
      %v303 = vld [vmem:[%s217 + $0xfa] sm:$0xff]
      %v304 = vld [vmem:[%s217 + $0x10a] sm:$0xff]
      %v305 = vld [vmem:[%s217 + $0x112] sm:$0xff]
      %v306 = vld [vmem:[%s217 + $0x122] sm:$0xff]
      %v307 = vld [vmem:[%s217 + $0x12a] sm:$0xff]
      %v308 = vld [vmem:[%s217 + $0x13a] sm:$0xff]
      %v309 = vld [vmem:[%s217 + $0x142] sm:$0xff]
      %v310 = vld [vmem:[%s217 + $0x152] sm:$0xff]
      %v311 = vld [vmem:[%s217 + $0x15a] sm:$0xff]
      %v312 = vld [vmem:[%s217 + $0x16a] sm:$0xff]
      %v313 = vld [vmem:[%s217 + $0x172] sm:$0xff]
      %s314 = sadd.s32 %s215, 1
      %s315 = smul.u32 %s314, 24
      %s316 = scalar_lea.vmem %s196, %s315
      %v317 = vld [vmem:[%s316] sm:$0xff]
      %v318 = vld [vmem:[%s316 + $0x8] sm:$0xff]
      %v319 = vld [vmem:[%s316 + $0x18] sm:$0xff]
      %v320 = vld [vmem:[%s316 + $0x20] sm:$0xff]
      %v321 = vld [vmem:[%s316 + $0x30] sm:$0xff]
      %v322 = vld [vmem:[%s316 + $0x38] sm:$0xff]
      %v323 = vld [vmem:[%s316 + $0x48] sm:$0xff]
      %v324 = vld [vmem:[%s316 + $0x50] sm:$0xff]
      %v325 = vld [vmem:[%s316 + $0x60] sm:$0xff]
      %v326 = vld [vmem:[%s316 + $0x68] sm:$0xff]
      %v327 = vld [vmem:[%s316 + $0x78] sm:$0xff]
      %v328 = vld [vmem:[%s316 + $0x80] sm:$0xff]
      %v329 = vld [vmem:[%s316 + $0x90] sm:$0xff]
      %v330 = vld [vmem:[%s316 + $0x98] sm:$0xff]
      %v331 = vld [vmem:[%s316 + $0xa8] sm:$0xff]
      %v332 = vld [vmem:[%s316 + $0xb0] sm:$0xff]
      %v333 = vld [vmem:[%s316 + $0xc0] sm:$0xff]
      %v334 = vld [vmem:[%s316 + $0xc8] sm:$0xff]
      %v335 = vld [vmem:[%s316 + $0xd8] sm:$0xff]
      %v336 = vld [vmem:[%s316 + $0xe0] sm:$0xff]
      %v337 = vld [vmem:[%s316 + $0xf0] sm:$0xff]
      %v338 = vld [vmem:[%s316 + $0xf8] sm:$0xff]
      %v339 = vld [vmem:[%s316 + $0x108] sm:$0xff]
      %v340 = vld [vmem:[%s316 + $0x110] sm:$0xff]
      %v341 = vld [vmem:[%s316 + $0x120] sm:$0xff]
      %v342 = vld [vmem:[%s316 + $0x128] sm:$0xff]
      %v343 = vld [vmem:[%s316 + $0x138] sm:$0xff]
      %v344 = vld [vmem:[%s316 + $0x140] sm:$0xff]
      %v345 = vld [vmem:[%s316 + $0x150] sm:$0xff]
      %v346 = vld [vmem:[%s316 + $0x158] sm:$0xff]
      %v347 = vld [vmem:[%s316 + $0x168] sm:$0xff]
      %v348 = vld [vmem:[%s316 + $0x170] sm:$0xff]
      %v349 = vld [vmem:[%s316 + $0x1] sm:$0xff]
      %v350 = vld [vmem:[%s316 + $0x9] sm:$0xff]
      %v351 = vld [vmem:[%s316 + $0x19] sm:$0xff]
      %v352 = vld [vmem:[%s316 + $0x21] sm:$0xff]
      %v353 = vld [vmem:[%s316 + $0x31] sm:$0xff]
      %v354 = vld [vmem:[%s316 + $0x39] sm:$0xff]
      %v355 = vld [vmem:[%s316 + $0x49] sm:$0xff]
      %v356 = vld [vmem:[%s316 + $0x51] sm:$0xff]
      %v357 = vld [vmem:[%s316 + $0x61] sm:$0xff]
      %v358 = vld [vmem:[%s316 + $0x69] sm:$0xff]
      %v359 = vld [vmem:[%s316 + $0x79] sm:$0xff]
      %v360 = vld [vmem:[%s316 + $0x81] sm:$0xff]
      %v361 = vld [vmem:[%s316 + $0x91] sm:$0xff]
      %v362 = vld [vmem:[%s316 + $0x99] sm:$0xff]
      %v363 = vld [vmem:[%s316 + $0xa9] sm:$0xff]
      %v364 = vld [vmem:[%s316 + $0xb1] sm:$0xff]
      %v365 = vld [vmem:[%s316 + $0xc1] sm:$0xff]
      %v366 = vld [vmem:[%s316 + $0xc9] sm:$0xff]
      %v367 = vld [vmem:[%s316 + $0xd9] sm:$0xff]
      %v368 = vld [vmem:[%s316 + $0xe1] sm:$0xff]
      %v369 = vld [vmem:[%s316 + $0xf1] sm:$0xff]
      %v370 = vld [vmem:[%s316 + $0xf9] sm:$0xff]
      %v371 = vld [vmem:[%s316 + $0x109] sm:$0xff]
      %v372 = vld [vmem:[%s316 + $0x111] sm:$0xff]
      %v373 = vld [vmem:[%s316 + $0x121] sm:$0xff]
      %v374 = vld [vmem:[%s316 + $0x129] sm:$0xff]
      %v375 = vld [vmem:[%s316 + $0x139] sm:$0xff]
      %v376 = vld [vmem:[%s316 + $0x141] sm:$0xff]
      %v377 = vld [vmem:[%s316 + $0x151] sm:$0xff]
      %v378 = vld [vmem:[%s316 + $0x159] sm:$0xff]
      %v379 = vld [vmem:[%s316 + $0x169] sm:$0xff]
      %v380 = vld [vmem:[%s316 + $0x171] sm:$0xff]
      %v381 = vld [vmem:[%s316 + $0x2] sm:$0xff]
      %v382 = vld [vmem:[%s316 + $0xa] sm:$0xff]
      %v383 = vld [vmem:[%s316 + $0x1a] sm:$0xff]
      %v384 = vld [vmem:[%s316 + $0x22] sm:$0xff]
      %v385 = vld [vmem:[%s316 + $0x32] sm:$0xff]
      %v386 = vld [vmem:[%s316 + $0x3a] sm:$0xff]
      %v387 = vld [vmem:[%s316 + $0x4a] sm:$0xff]
      %v388 = vld [vmem:[%s316 + $0x52] sm:$0xff]
      %v389 = vld [vmem:[%s316 + $0x62] sm:$0xff]
      %v390 = vld [vmem:[%s316 + $0x6a] sm:$0xff]
      %v391 = vld [vmem:[%s316 + $0x7a] sm:$0xff]
      %v392 = vld [vmem:[%s316 + $0x82] sm:$0xff]
      %v393 = vld [vmem:[%s316 + $0x92] sm:$0xff]
      %v394 = vld [vmem:[%s316 + $0x9a] sm:$0xff]
      %v395 = vld [vmem:[%s316 + $0xaa] sm:$0xff]
      %v396 = vld [vmem:[%s316 + $0xb2] sm:$0xff]
      %v397 = vld [vmem:[%s316 + $0xc2] sm:$0xff]
      %v398 = vld [vmem:[%s316 + $0xca] sm:$0xff]
      %v399 = vld [vmem:[%s316 + $0xda] sm:$0xff]
      %v400 = vld [vmem:[%s316 + $0xe2] sm:$0xff]
      %v401 = vld [vmem:[%s316 + $0xf2] sm:$0xff]
      %v402 = vld [vmem:[%s316 + $0xfa] sm:$0xff]
      %v403 = vld [vmem:[%s316 + $0x10a] sm:$0xff]
      %v404 = vld [vmem:[%s316 + $0x112] sm:$0xff]
      %v405 = vld [vmem:[%s316 + $0x122] sm:$0xff]
      %v406 = vld [vmem:[%s316 + $0x12a] sm:$0xff]
      %v407 = vld [vmem:[%s316 + $0x13a] sm:$0xff]
      %v408 = vld [vmem:[%s316 + $0x142] sm:$0xff]
      %v409 = vld [vmem:[%s316 + $0x152] sm:$0xff]
      %v410 = vld [vmem:[%s316 + $0x15a] sm:$0xff]
      %v411 = vld [vmem:[%s316 + $0x16a] sm:$0xff]
      %v412 = vld [vmem:[%s316 + $0x172] sm:$0xff]
      %s413 = sadd.s32 %s215, 2
      %s414 = smul.u32 %s413, 24
      %s415 = scalar_lea.vmem %s196, %s414
      %v416 = vld [vmem:[%s415] sm:$0xff]
      %v417 = vld [vmem:[%s415 + $0x8] sm:$0xff]
      %v418 = vld [vmem:[%s415 + $0x18] sm:$0xff]
      %v419 = vld [vmem:[%s415 + $0x20] sm:$0xff]
      %v420 = vld [vmem:[%s415 + $0x30] sm:$0xff]
      %v421 = vld [vmem:[%s415 + $0x38] sm:$0xff]
      %v422 = vld [vmem:[%s415 + $0x48] sm:$0xff]
      %v423 = vld [vmem:[%s415 + $0x50] sm:$0xff]
      %v424 = vld [vmem:[%s415 + $0x60] sm:$0xff]
      %v425 = vld [vmem:[%s415 + $0x68] sm:$0xff]
      %v426 = vld [vmem:[%s415 + $0x78] sm:$0xff]
      %v427 = vld [vmem:[%s415 + $0x80] sm:$0xff]
      %v428 = vld [vmem:[%s415 + $0x90] sm:$0xff]
      %v429 = vld [vmem:[%s415 + $0x98] sm:$0xff]
      %v430 = vld [vmem:[%s415 + $0xa8] sm:$0xff]
      %v431 = vld [vmem:[%s415 + $0xb0] sm:$0xff]
      %v432 = vld [vmem:[%s415 + $0xc0] sm:$0xff]
      %v433 = vld [vmem:[%s415 + $0xc8] sm:$0xff]
      %v434 = vld [vmem:[%s415 + $0xd8] sm:$0xff]
      %v435 = vld [vmem:[%s415 + $0xe0] sm:$0xff]
      %v436 = vld [vmem:[%s415 + $0xf0] sm:$0xff]
      %v437 = vld [vmem:[%s415 + $0xf8] sm:$0xff]
      %v438 = vld [vmem:[%s415 + $0x108] sm:$0xff]
      %v439 = vld [vmem:[%s415 + $0x110] sm:$0xff]
      %v440 = vld [vmem:[%s415 + $0x120] sm:$0xff]
      %v441 = vld [vmem:[%s415 + $0x128] sm:$0xff]
      %v442 = vld [vmem:[%s415 + $0x138] sm:$0xff]
      %v443 = vld [vmem:[%s415 + $0x140] sm:$0xff]
      %v444 = vld [vmem:[%s415 + $0x150] sm:$0xff]
      %v445 = vld [vmem:[%s415 + $0x158] sm:$0xff]
      %v446 = vld [vmem:[%s415 + $0x168] sm:$0xff]
      %v447 = vld [vmem:[%s415 + $0x170] sm:$0xff]
      %v448 = vld [vmem:[%s415 + $0x1] sm:$0xff]
      %v449 = vld [vmem:[%s415 + $0x9] sm:$0xff]
      %v450 = vld [vmem:[%s415 + $0x19] sm:$0xff]
      %v451 = vld [vmem:[%s415 + $0x21] sm:$0xff]
      %v452 = vld [vmem:[%s415 + $0x31] sm:$0xff]
      %v453 = vld [vmem:[%s415 + $0x39] sm:$0xff]
      %v454 = vld [vmem:[%s415 + $0x49] sm:$0xff]
      %v455 = vld [vmem:[%s415 + $0x51] sm:$0xff]
      %v456 = vld [vmem:[%s415 + $0x61] sm:$0xff]
      %v457 = vld [vmem:[%s415 + $0x69] sm:$0xff]
      %v458 = vld [vmem:[%s415 + $0x79] sm:$0xff]
      %v459 = vld [vmem:[%s415 + $0x81] sm:$0xff]
      %v460 = vld [vmem:[%s415 + $0x91] sm:$0xff]
      %v461 = vld [vmem:[%s415 + $0x99] sm:$0xff]
      %v462 = vld [vmem:[%s415 + $0xa9] sm:$0xff]
      %v463 = vld [vmem:[%s415 + $0xb1] sm:$0xff]
      %v464 = vld [vmem:[%s415 + $0xc1] sm:$0xff]
      %v465 = vld [vmem:[%s415 + $0xc9] sm:$0xff]
      %v466 = vld [vmem:[%s415 + $0xd9] sm:$0xff]
      %v467 = vld [vmem:[%s415 + $0xe1] sm:$0xff]
      %v468 = vld [vmem:[%s415 + $0xf1] sm:$0xff]
      %v469 = vld [vmem:[%s415 + $0xf9] sm:$0xff]
      %v470 = vld [vmem:[%s415 + $0x109] sm:$0xff]
      %v471 = vld [vmem:[%s415 + $0x111] sm:$0xff]
      %v472 = vld [vmem:[%s415 + $0x121] sm:$0xff]
      %v473 = vld [vmem:[%s415 + $0x129] sm:$0xff]
      %v474 = vld [vmem:[%s415 + $0x139] sm:$0xff]
      %v475 = vld [vmem:[%s415 + $0x141] sm:$0xff]
      %v476 = vld [vmem:[%s415 + $0x151] sm:$0xff]
      %v477 = vld [vmem:[%s415 + $0x159] sm:$0xff]
      %v478 = vld [vmem:[%s415 + $0x169] sm:$0xff]
      %v479 = vld [vmem:[%s415 + $0x171] sm:$0xff]
      %v480 = vld [vmem:[%s415 + $0x2] sm:$0xff]
      %v481 = vld [vmem:[%s415 + $0xa] sm:$0xff]
      %v482 = vld [vmem:[%s415 + $0x1a] sm:$0xff]
      %v483 = vld [vmem:[%s415 + $0x22] sm:$0xff]
      %v484 = vld [vmem:[%s415 + $0x32] sm:$0xff]
      %v485 = vld [vmem:[%s415 + $0x3a] sm:$0xff]
      %v486 = vld [vmem:[%s415 + $0x4a] sm:$0xff]
      %v487 = vld [vmem:[%s415 + $0x52] sm:$0xff]
      %v488 = vld [vmem:[%s415 + $0x62] sm:$0xff]
      %v489 = vld [vmem:[%s415 + $0x6a] sm:$0xff]
      %v490 = vld [vmem:[%s415 + $0x7a] sm:$0xff]
      %v491 = vld [vmem:[%s415 + $0x82] sm:$0xff]
      %v492 = vld [vmem:[%s415 + $0x92] sm:$0xff]
      %v493 = vld [vmem:[%s415 + $0x9a] sm:$0xff]
      %v494 = vld [vmem:[%s415 + $0xaa] sm:$0xff]
      %v495 = vld [vmem:[%s415 + $0xb2] sm:$0xff]
      %v496 = vld [vmem:[%s415 + $0xc2] sm:$0xff]
      %v497 = vld [vmem:[%s415 + $0xca] sm:$0xff]
      %v498 = vld [vmem:[%s415 + $0xda] sm:$0xff]
      %v499 = vld [vmem:[%s415 + $0xe2] sm:$0xff]
      %v500 = vld [vmem:[%s415 + $0xf2] sm:$0xff]
      %v501 = vld [vmem:[%s415 + $0xfa] sm:$0xff]
      %v502 = vld [vmem:[%s415 + $0x10a] sm:$0xff]
      %v503 = vld [vmem:[%s415 + $0x112] sm:$0xff]
      %v504 = vld [vmem:[%s415 + $0x122] sm:$0xff]
      %v505 = vld [vmem:[%s415 + $0x12a] sm:$0xff]
      %v506 = vld [vmem:[%s415 + $0x13a] sm:$0xff]
      %v507 = vld [vmem:[%s415 + $0x142] sm:$0xff]
      %v508 = vld [vmem:[%s415 + $0x152] sm:$0xff]
      %v509 = vld [vmem:[%s415 + $0x15a] sm:$0xff]
      %v510 = vld [vmem:[%s415 + $0x16a] sm:$0xff]
      %v511 = vld [vmem:[%s415 + $0x172] sm:$0xff]
      %v512 = vld [vmem:[%s1] sm:$0xff]
      %v513 = vld [vmem:[%s1 + $0x8] sm:$0xff]
      %v514 = vld [vmem:[%s1 + $0x10] sm:$0xff]
      %v515 = vld [vmem:[%s1 + $0x18] sm:$0xff]
      %v516 = vld [vmem:[%s1 + $0x20] sm:$0xff]
      %v517 = vld [vmem:[%s1 + $0x28] sm:$0xff]
      %v518 = vld [vmem:[%s1 + $0x30] sm:$0xff]
      %v519 = vld [vmem:[%s1 + $0x38] sm:$0xff]
      %v520 = vld [vmem:[%s1 + $0x40] sm:$0xff]
      %v521 = vld [vmem:[%s1 + $0x48] sm:$0xff]
      %v522 = vld [vmem:[%s1 + $0x50] sm:$0xff]
      %v523 = vld [vmem:[%s1 + $0x58] sm:$0xff]
      %v524 = vld [vmem:[%s1 + $0x60] sm:$0xff]
      %v525 = vld [vmem:[%s1 + $0x68] sm:$0xff]
      %v526 = vld [vmem:[%s1 + $0x70] sm:$0xff]
      %v527 = vld [vmem:[%s1 + $0x78] sm:$0xff]
      %v528 = vld [vmem:[%s1 + $0x80] sm:$0xff]
      %v529 = vld [vmem:[%s1 + $0x88] sm:$0xff]
      %v530 = vld [vmem:[%s1 + $0x90] sm:$0xff]
      %v531 = vld [vmem:[%s1 + $0x98] sm:$0xff]
      %v532 = vld [vmem:[%s1 + $0xa0] sm:$0xff]
      %v533 = vld [vmem:[%s1 + $0xa8] sm:$0xff]
      %v534 = vld [vmem:[%s1 + $0xb0] sm:$0xff]
      %v535 = vld [vmem:[%s1 + $0xb8] sm:$0xff]
      %v536 = vld [vmem:[%s1 + $0xc0] sm:$0xff]
      %v537 = vld [vmem:[%s1 + $0xc8] sm:$0xff]
      %v538 = vld [vmem:[%s1 + $0xd0] sm:$0xff]
      %v539 = vld [vmem:[%s1 + $0xd8] sm:$0xff]
      %v540 = vld [vmem:[%s1 + $0xe0] sm:$0xff]
      %v541 = vld [vmem:[%s1 + $0xe8] sm:$0xff]
      %v542 = vld [vmem:[%s1 + $0xf0] sm:$0xff]
      %v543 = vld [vmem:[%s1 + $0xf8] sm:$0xff]
      %v544 = vld [vmem:[%s1 + $0x100] sm:$0xff]
      %v545 = vld [vmem:[%s1 + $0x108] sm:$0xff]
      %v546 = vld [vmem:[%s1 + $0x110] sm:$0xff]
      %v547 = vld [vmem:[%s1 + $0x118] sm:$0xff]
      %v548 = vld [vmem:[%s1 + $0x120] sm:$0xff]
      %v549 = vld [vmem:[%s1 + $0x128] sm:$0xff]
      %v550 = vld [vmem:[%s1 + $0x130] sm:$0xff]
      %v551 = vld [vmem:[%s1 + $0x138] sm:$0xff]
      %v552 = vld [vmem:[%s1 + $0x140] sm:$0xff]
      %v553 = vld [vmem:[%s1 + $0x148] sm:$0xff]
      %v554 = vld [vmem:[%s1 + $0x150] sm:$0xff]
      %v555 = vld [vmem:[%s1 + $0x158] sm:$0xff]
      %v556 = vld [vmem:[%s1 + $0x160] sm:$0xff]
      %v557 = vld [vmem:[%s1 + $0x168] sm:$0xff]
      %v558 = vld [vmem:[%s1 + $0x170] sm:$0xff]
      %v559 = vld [vmem:[%s1 + $0x178] sm:$0xff]
      %v560 = vld [vmem:[%s1 + $0x180] sm:$0xff]
      %v561 = vld [vmem:[%s1 + $0x188] sm:$0xff]
      %v562 = vld [vmem:[%s1 + $0x190] sm:$0xff]
      %v563 = vld [vmem:[%s1 + $0x198] sm:$0xff]
      %v564 = vld [vmem:[%s1 + $0x1a0] sm:$0xff]
      %v565 = vld [vmem:[%s1 + $0x1a8] sm:$0xff]
      %v566 = vld [vmem:[%s1 + $0x1b0] sm:$0xff]
      %v567 = vld [vmem:[%s1 + $0x1b8] sm:$0xff]
      %v568 = vld [vmem:[%s1 + $0x1c0] sm:$0xff]
      %v569 = vld [vmem:[%s1 + $0x1c8] sm:$0xff]
      %v570 = vld [vmem:[%s1 + $0x1d0] sm:$0xff]
      %v571 = vld [vmem:[%s1 + $0x1d8] sm:$0xff]
      %v572 = vld [vmem:[%s1 + $0x1e0] sm:$0xff]
      %v573 = vld [vmem:[%s1 + $0x1e8] sm:$0xff]
      %v574 = vld [vmem:[%s1 + $0x1f0] sm:$0xff]
      %v575 = vld [vmem:[%s1 + $0x1f8] sm:$0xff]
      %v576 = vld [vmem:[%s1 + $0x200] sm:$0xff]
      %v577 = vld [vmem:[%s1 + $0x208] sm:$0xff]
      %v578 = vld [vmem:[%s1 + $0x210] sm:$0xff]
      %v579 = vld [vmem:[%s1 + $0x218] sm:$0xff]
      %v580 = vld [vmem:[%s1 + $0x220] sm:$0xff]
      %v581 = vld [vmem:[%s1 + $0x228] sm:$0xff]
      %v582 = vld [vmem:[%s1 + $0x230] sm:$0xff]
      %v583 = vld [vmem:[%s1 + $0x238] sm:$0xff]
      %v584 = vld [vmem:[%s1 + $0x240] sm:$0xff]
      %v585 = vld [vmem:[%s1 + $0x248] sm:$0xff]
      %v586 = vld [vmem:[%s1 + $0x250] sm:$0xff]
      %v587 = vld [vmem:[%s1 + $0x258] sm:$0xff]
      %v588 = vld [vmem:[%s1 + $0x260] sm:$0xff]
      %v589 = vld [vmem:[%s1 + $0x268] sm:$0xff]
      %v590 = vld [vmem:[%s1 + $0x270] sm:$0xff]
      %v591 = vld [vmem:[%s1 + $0x278] sm:$0xff]
      %v592 = vld [vmem:[%s1 + $0x280] sm:$0xff]
      %v593 = vld [vmem:[%s1 + $0x288] sm:$0xff]
      %v594 = vld [vmem:[%s1 + $0x290] sm:$0xff]
      %v595 = vld [vmem:[%s1 + $0x298] sm:$0xff]
      %v596 = vld [vmem:[%s1 + $0x2a0] sm:$0xff]
      %v597 = vld [vmem:[%s1 + $0x2a8] sm:$0xff]
      %v598 = vld [vmem:[%s1 + $0x2b0] sm:$0xff]
      %v599 = vld [vmem:[%s1 + $0x2b8] sm:$0xff]
      %v600 = vld [vmem:[%s1 + $0x2c0] sm:$0xff]
      %v601 = vld [vmem:[%s1 + $0x2c8] sm:$0xff]
      %v602 = vld [vmem:[%s1 + $0x2d0] sm:$0xff]
      %v603 = vld [vmem:[%s1 + $0x2d8] sm:$0xff]
      %v604 = vld [vmem:[%s1 + $0x2e0] sm:$0xff]
      %v605 = vld [vmem:[%s1 + $0x2e8] sm:$0xff]
      %v606 = vld [vmem:[%s1 + $0x2f0] sm:$0xff]
      %v607 = vld [vmem:[%s1 + $0x2f8] sm:$0xff]
      %v608 = vld [vmem:[%s1 + $0x300] sm:$0xff]
      %v609 = vld [vmem:[%s1 + $0x308] sm:$0xff]
      %v610 = vld [vmem:[%s1 + $0x310] sm:$0xff]
      %v611 = vld [vmem:[%s1 + $0x318] sm:$0xff]
      %v612 = vld [vmem:[%s1 + $0x320] sm:$0xff]
      %v613 = vld [vmem:[%s1 + $0x328] sm:$0xff]
      %v614 = vld [vmem:[%s1 + $0x330] sm:$0xff]
      %v615 = vld [vmem:[%s1 + $0x338] sm:$0xff]
      %v616 = vld [vmem:[%s1 + $0x340] sm:$0xff]
      %v617 = vld [vmem:[%s1 + $0x348] sm:$0xff]
      %v618 = vld [vmem:[%s1 + $0x350] sm:$0xff]
      %v619 = vld [vmem:[%s1 + $0x358] sm:$0xff]
      %v620 = vld [vmem:[%s1 + $0x360] sm:$0xff]
      %v621 = vld [vmem:[%s1 + $0x368] sm:$0xff]
      %v622 = vld [vmem:[%s1 + $0x370] sm:$0xff]
      %v623 = vld [vmem:[%s1 + $0x378] sm:$0xff]
      %v624 = vld [vmem:[%s1 + $0x380] sm:$0xff]
      %v625 = vld [vmem:[%s1 + $0x388] sm:$0xff]
      %v626 = vld [vmem:[%s1 + $0x390] sm:$0xff]
      %v627 = vld [vmem:[%s1 + $0x398] sm:$0xff]
      %v628 = vld [vmem:[%s1 + $0x3a0] sm:$0xff]
      %v629 = vld [vmem:[%s1 + $0x3a8] sm:$0xff]
      %v630 = vld [vmem:[%s1 + $0x3b0] sm:$0xff]
      %v631 = vld [vmem:[%s1 + $0x3b8] sm:$0xff]
      %v632 = vld [vmem:[%s1 + $0x3c0] sm:$0xff]
      %v633 = vld [vmem:[%s1 + $0x3c8] sm:$0xff]
      %v634 = vld [vmem:[%s1 + $0x3d0] sm:$0xff]
      %v635 = vld [vmem:[%s1 + $0x3d8] sm:$0xff]
      %v636 = vld [vmem:[%s1 + $0x3e0] sm:$0xff]
      %v637 = vld [vmem:[%s1 + $0x3e8] sm:$0xff]
      %v638 = vld [vmem:[%s1 + $0x3f0] sm:$0xff]
      %v639 = vld [vmem:[%s1 + $0x3f8] sm:$0xff]
      %v640 = vld [vmem:[%s1 + $0x400] sm:$0xff]
      %v641 = vld [vmem:[%s1 + $0x408] sm:$0xff]
      %v642 = vld [vmem:[%s1 + $0x410] sm:$0xff]
      %v643 = vld [vmem:[%s1 + $0x418] sm:$0xff]
      %v644 = vld [vmem:[%s1 + $0x420] sm:$0xff]
      %v645 = vld [vmem:[%s1 + $0x428] sm:$0xff]
      %v646 = vld [vmem:[%s1 + $0x430] sm:$0xff]
      %v647 = vld [vmem:[%s1 + $0x438] sm:$0xff]
      %v648 = vld [vmem:[%s1 + $0x440] sm:$0xff]
      %v649 = vld [vmem:[%s1 + $0x448] sm:$0xff]
      %v650 = vld [vmem:[%s1 + $0x450] sm:$0xff]
      %v651 = vld [vmem:[%s1 + $0x458] sm:$0xff]
      %v652 = vld [vmem:[%s1 + $0x460] sm:$0xff]
      %v653 = vld [vmem:[%s1 + $0x468] sm:$0xff]
      %v654 = vld [vmem:[%s1 + $0x470] sm:$0xff]
      %v655 = vld [vmem:[%s1 + $0x478] sm:$0xff]
      %656 = vmatpush.msra.mxu0 %v527
      %657 = vmatpush.msra.mxu0 %v526
      %658 = vmatpush.msra.mxu0 %v525
      %659 = vmatpush.msra.mxu0 %v524
      %660 = vmatpush.msra.mxu0 %v523
      %661 = vmatpush.msra.mxu0 %v522
      %662 = vmatpush.msra.mxu0 %v521
      %663 = vmatpush.msra.mxu0 %v520
      %664 = vmatpush.msra.mxu0 %v519
      %665 = vmatpush.msra.mxu0 %v518
      %666 = vmatpush.msra.mxu0 %v517
      %667 = vmatpush.msra.mxu0 %v516
      %668 = vmatpush.msra.mxu0 %v515
      %669 = vmatpush.msra.mxu0 %v514
      %670 = vmatpush.msra.mxu0 %v513
      %671 = vmatpush.msra.mxu0 %v512
      %672 = vmatmul.f32.gmra.mxu0 %v218
      %v673 = vpop.f32.mrf.mxu0
      %v674 = vadd.f32 0.0, %v673
      %675 = vmatmul.f32.gmra.mxu0 %v219
      %v676 = vpop.f32.mrf.mxu0
      %v677 = vadd.f32 0.0, %v676
      %678 = vmatmul.f32.gmra.mxu0 %v220
      %v679 = vpop.f32.mrf.mxu0
      %v680 = vadd.f32 0.0, %v679
      %681 = vmatmul.f32.gmra.mxu0 %v221
      %v682 = vpop.f32.mrf.mxu0
      %v683 = vadd.f32 0.0, %v682
      %684 = vmatmul.f32.gmra.mxu0 %v222
      %v685 = vpop.f32.mrf.mxu0
      %v686 = vadd.f32 0.0, %v685
      %687 = vmatmul.f32.gmra.mxu0 %v223
      %v688 = vpop.f32.mrf.mxu0
      %v689 = vadd.f32 0.0, %v688
      %690 = vmatmul.f32.gmra.mxu0 %v224
      %v691 = vpop.f32.mrf.mxu0
      %v692 = vadd.f32 0.0, %v691
      %693 = vmatmul.f32.gmra.mxu0 %v225
      %v694 = vpop.f32.mrf.mxu0
      %v695 = vadd.f32 0.0, %v694
      %696 = vmatmul.f32.gmra.mxu0 %v226
      %v697 = vpop.f32.mrf.mxu0
      %v698 = vadd.f32 0.0, %v697
      %699 = vmatmul.f32.gmra.mxu0 %v227
      %v700 = vpop.f32.mrf.mxu0
      %v701 = vadd.f32 0.0, %v700
      %702 = vmatmul.f32.gmra.mxu0 %v228
      %v703 = vpop.f32.mrf.mxu0
      %v704 = vadd.f32 0.0, %v703
      %705 = vmatmul.f32.gmra.mxu0 %v229
      %v706 = vpop.f32.mrf.mxu0
      %v707 = vadd.f32 0.0, %v706
      %708 = vmatmul.f32.gmra.mxu0 %v230
      %v709 = vpop.f32.mrf.mxu0
      %v710 = vadd.f32 0.0, %v709
      %711 = vmatmul.f32.gmra.mxu0 %v231
      %v712 = vpop.f32.mrf.mxu0
      %v713 = vadd.f32 0.0, %v712
      %714 = vmatmul.f32.gmra.mxu0 %v232
      %v715 = vpop.f32.mrf.mxu0
      %v716 = vadd.f32 0.0, %v715
      %717 = vmatmul.f32.gmra.mxu0 %v233
      %v718 = vpop.f32.mrf.mxu0
      %v719 = vadd.f32 0.0, %v718
      %720 = vmatmul.f32.gmra.mxu0 %v234
      %v721 = vpop.f32.mrf.mxu0
      %v722 = vadd.f32 0.0, %v721
      %723 = vmatmul.f32.gmra.mxu0 %v235
      %v724 = vpop.f32.mrf.mxu0
      %v725 = vadd.f32 0.0, %v724
      %726 = vmatmul.f32.gmra.mxu0 %v236
      %v727 = vpop.f32.mrf.mxu0
      %v728 = vadd.f32 0.0, %v727
      %729 = vmatmul.f32.gmra.mxu0 %v237
      %v730 = vpop.f32.mrf.mxu0
      %v731 = vadd.f32 0.0, %v730
      %732 = vmatmul.f32.gmra.mxu0 %v238
      %v733 = vpop.f32.mrf.mxu0
      %v734 = vadd.f32 0.0, %v733
      %735 = vmatmul.f32.gmra.mxu0 %v239
      %v736 = vpop.f32.mrf.mxu0
      %v737 = vadd.f32 0.0, %v736
      %738 = vmatmul.f32.gmra.mxu0 %v240
      %v739 = vpop.f32.mrf.mxu0
      %v740 = vadd.f32 0.0, %v739
      %741 = vmatmul.f32.gmra.mxu0 %v241
      %v742 = vpop.f32.mrf.mxu0
      %v743 = vadd.f32 0.0, %v742
      %744 = vmatmul.f32.gmra.mxu0 %v242
      %v745 = vpop.f32.mrf.mxu0
      %v746 = vadd.f32 0.0, %v745
      %747 = vmatmul.f32.gmra.mxu0 %v243
      %v748 = vpop.f32.mrf.mxu0
      %v749 = vadd.f32 0.0, %v748
      %750 = vmatmul.f32.gmra.mxu0 %v244
      %v751 = vpop.f32.mrf.mxu0
      %v752 = vadd.f32 0.0, %v751
      %753 = vmatmul.f32.gmra.mxu0 %v245
      %v754 = vpop.f32.mrf.mxu0
      %v755 = vadd.f32 0.0, %v754
      %756 = vmatmul.f32.gmra.mxu0 %v246
      %v757 = vpop.f32.mrf.mxu0
      %v758 = vadd.f32 0.0, %v757
      %759 = vmatmul.f32.gmra.mxu0 %v247
      %v760 = vpop.f32.mrf.mxu0
      %v761 = vadd.f32 0.0, %v760
      %762 = vmatmul.f32.gmra.mxu0 %v248
      %v763 = vpop.f32.mrf.mxu0
      %v764 = vadd.f32 0.0, %v763
      %765 = vmatmul.f32.gmra.mxu0 %v249
      %v766 = vpop.f32.mrf.mxu0
      %v767 = vadd.f32 0.0, %v766
      %768 = vdwg.mxu0
      %769 = vmatpush.msra.mxu0 %v543
      %770 = vmatpush.msra.mxu0 %v542
      %771 = vmatpush.msra.mxu0 %v541
      %772 = vmatpush.msra.mxu0 %v540
      %773 = vmatpush.msra.mxu0 %v539
      %774 = vmatpush.msra.mxu0 %v538
      %775 = vmatpush.msra.mxu0 %v537
      %776 = vmatpush.msra.mxu0 %v536
      %777 = vmatpush.msra.mxu0 %v535
      %778 = vmatpush.msra.mxu0 %v534
      %779 = vmatpush.msra.mxu0 %v533
      %780 = vmatpush.msra.mxu0 %v532
      %781 = vmatpush.msra.mxu0 %v531
      %782 = vmatpush.msra.mxu0 %v530
      %783 = vmatpush.msra.mxu0 %v529
      %784 = vmatpush.msra.mxu0 %v528
      %785 = vmatmul.f32.gmra.mxu0 %v250
      %v786 = vpop.f32.mrf.mxu0
      %v787 = vadd.f32 %v674, %v786
      %788 = vmatmul.f32.gmra.mxu0 %v251
      %v789 = vpop.f32.mrf.mxu0
      %v790 = vadd.f32 %v677, %v789
      %791 = vmatmul.f32.gmra.mxu0 %v252
      %v792 = vpop.f32.mrf.mxu0
      %v793 = vadd.f32 %v680, %v792
      %794 = vmatmul.f32.gmra.mxu0 %v253
      %v795 = vpop.f32.mrf.mxu0
      %v796 = vadd.f32 %v683, %v795
      %797 = vmatmul.f32.gmra.mxu0 %v254
      %v798 = vpop.f32.mrf.mxu0
      %v799 = vadd.f32 %v686, %v798
      %800 = vmatmul.f32.gmra.mxu0 %v255
      %v801 = vpop.f32.mrf.mxu0
      %v802 = vadd.f32 %v689, %v801
      %803 = vmatmul.f32.gmra.mxu0 %v256
      %v804 = vpop.f32.mrf.mxu0
      %v805 = vadd.f32 %v692, %v804
      %806 = vmatmul.f32.gmra.mxu0 %v257
      %v807 = vpop.f32.mrf.mxu0
      %v808 = vadd.f32 %v695, %v807
      %809 = vmatmul.f32.gmra.mxu0 %v258
      %v810 = vpop.f32.mrf.mxu0
      %v811 = vadd.f32 %v698, %v810
      %812 = vmatmul.f32.gmra.mxu0 %v259
      %v813 = vpop.f32.mrf.mxu0
      %v814 = vadd.f32 %v701, %v813
      %815 = vmatmul.f32.gmra.mxu0 %v260
      %v816 = vpop.f32.mrf.mxu0
      %v817 = vadd.f32 %v704, %v816
      %818 = vmatmul.f32.gmra.mxu0 %v261
      %v819 = vpop.f32.mrf.mxu0
      %v820 = vadd.f32 %v707, %v819
      %821 = vmatmul.f32.gmra.mxu0 %v262
      %v822 = vpop.f32.mrf.mxu0
      %v823 = vadd.f32 %v710, %v822
      %824 = vmatmul.f32.gmra.mxu0 %v263
      %v825 = vpop.f32.mrf.mxu0
      %v826 = vadd.f32 %v713, %v825
      %827 = vmatmul.f32.gmra.mxu0 %v264
      %v828 = vpop.f32.mrf.mxu0
      %v829 = vadd.f32 %v716, %v828
      %830 = vmatmul.f32.gmra.mxu0 %v265
      %v831 = vpop.f32.mrf.mxu0
      %v832 = vadd.f32 %v719, %v831
      %833 = vmatmul.f32.gmra.mxu0 %v266
      %v834 = vpop.f32.mrf.mxu0
      %v835 = vadd.f32 %v722, %v834
      %836 = vmatmul.f32.gmra.mxu0 %v267
      %v837 = vpop.f32.mrf.mxu0
      %v838 = vadd.f32 %v725, %v837
      %839 = vmatmul.f32.gmra.mxu0 %v268
      %v840 = vpop.f32.mrf.mxu0
      %v841 = vadd.f32 %v728, %v840
      %842 = vmatmul.f32.gmra.mxu0 %v269
      %v843 = vpop.f32.mrf.mxu0
      %v844 = vadd.f32 %v731, %v843
      %845 = vmatmul.f32.gmra.mxu0 %v270
      %v846 = vpop.f32.mrf.mxu0
      %v847 = vadd.f32 %v734, %v846
      %848 = vmatmul.f32.gmra.mxu0 %v271
      %v849 = vpop.f32.mrf.mxu0
      %v850 = vadd.f32 %v737, %v849
      %851 = vmatmul.f32.gmra.mxu0 %v272
      %v852 = vpop.f32.mrf.mxu0
      %v853 = vadd.f32 %v740, %v852
      %854 = vmatmul.f32.gmra.mxu0 %v273
      %v855 = vpop.f32.mrf.mxu0
      %v856 = vadd.f32 %v743, %v855
      %857 = vmatmul.f32.gmra.mxu0 %v274
      %v858 = vpop.f32.mrf.mxu0
      %v859 = vadd.f32 %v746, %v858
      %860 = vmatmul.f32.gmra.mxu0 %v275
      %v861 = vpop.f32.mrf.mxu0
      %v862 = vadd.f32 %v749, %v861
      %863 = vmatmul.f32.gmra.mxu0 %v276
      %v864 = vpop.f32.mrf.mxu0
      %v865 = vadd.f32 %v752, %v864
      %866 = vmatmul.f32.gmra.mxu0 %v277
      %v867 = vpop.f32.mrf.mxu0
      %v868 = vadd.f32 %v755, %v867
      %869 = vmatmul.f32.gmra.mxu0 %v278
      %v870 = vpop.f32.mrf.mxu0
      %v871 = vadd.f32 %v758, %v870
      %872 = vmatmul.f32.gmra.mxu0 %v279
      %v873 = vpop.f32.mrf.mxu0
      %v874 = vadd.f32 %v761, %v873
      %875 = vmatmul.f32.gmra.mxu0 %v280
      %v876 = vpop.f32.mrf.mxu0
      %v877 = vadd.f32 %v764, %v876
      %878 = vmatmul.f32.gmra.mxu0 %v281
      %v879 = vpop.f32.mrf.mxu0
      %v880 = vadd.f32 %v767, %v879
      %881 = vdwg.mxu0
      %882 = vmatpush.msra.mxu0 %v559
      %883 = vmatpush.msra.mxu0 %v558
      %884 = vmatpush.msra.mxu0 %v557
      %885 = vmatpush.msra.mxu0 %v556
      %886 = vmatpush.msra.mxu0 %v555
      %887 = vmatpush.msra.mxu0 %v554
      %888 = vmatpush.msra.mxu0 %v553
      %889 = vmatpush.msra.mxu0 %v552
      %890 = vmatpush.msra.mxu0 %v551
      %891 = vmatpush.msra.mxu0 %v550
      %892 = vmatpush.msra.mxu0 %v549
      %893 = vmatpush.msra.mxu0 %v548
      %894 = vmatpush.msra.mxu0 %v547
      %895 = vmatpush.msra.mxu0 %v546
      %896 = vmatpush.msra.mxu0 %v545
      %897 = vmatpush.msra.mxu0 %v544
      %898 = vmatmul.f32.gmra.mxu0 %v282
      %v899 = vpop.f32.mrf.mxu0
      %v900 = vadd.f32 %v787, %v899
      %901 = vmatmul.f32.gmra.mxu0 %v283
      %v902 = vpop.f32.mrf.mxu0
      %v903 = vadd.f32 %v790, %v902
      %904 = vmatmul.f32.gmra.mxu0 %v284
      %v905 = vpop.f32.mrf.mxu0
      %v906 = vadd.f32 %v793, %v905
      %907 = vmatmul.f32.gmra.mxu0 %v285
      %v908 = vpop.f32.mrf.mxu0
      %v909 = vadd.f32 %v796, %v908
      %910 = vmatmul.f32.gmra.mxu0 %v286
      %v911 = vpop.f32.mrf.mxu0
      %v912 = vadd.f32 %v799, %v911
      %913 = vmatmul.f32.gmra.mxu0 %v287
      %v914 = vpop.f32.mrf.mxu0
      %v915 = vadd.f32 %v802, %v914
      %916 = vmatmul.f32.gmra.mxu0 %v288
      %v917 = vpop.f32.mrf.mxu0
      %v918 = vadd.f32 %v805, %v917
      %919 = vmatmul.f32.gmra.mxu0 %v289
      %v920 = vpop.f32.mrf.mxu0
      %v921 = vadd.f32 %v808, %v920
      %922 = vmatmul.f32.gmra.mxu0 %v290
      %v923 = vpop.f32.mrf.mxu0
      %v924 = vadd.f32 %v811, %v923
      %925 = vmatmul.f32.gmra.mxu0 %v291
      %v926 = vpop.f32.mrf.mxu0
      %v927 = vadd.f32 %v814, %v926
      %928 = vmatmul.f32.gmra.mxu0 %v292
      %v929 = vpop.f32.mrf.mxu0
      %v930 = vadd.f32 %v817, %v929
      %931 = vmatmul.f32.gmra.mxu0 %v293
      %v932 = vpop.f32.mrf.mxu0
      %v933 = vadd.f32 %v820, %v932
      %934 = vmatmul.f32.gmra.mxu0 %v294
      %v935 = vpop.f32.mrf.mxu0
      %v936 = vadd.f32 %v823, %v935
      %937 = vmatmul.f32.gmra.mxu0 %v295
      %v938 = vpop.f32.mrf.mxu0
      %v939 = vadd.f32 %v826, %v938
      %940 = vmatmul.f32.gmra.mxu0 %v296
      %v941 = vpop.f32.mrf.mxu0
      %v942 = vadd.f32 %v829, %v941
      %943 = vmatmul.f32.gmra.mxu0 %v297
      %v944 = vpop.f32.mrf.mxu0
      %v945 = vadd.f32 %v832, %v944
      %946 = vmatmul.f32.gmra.mxu0 %v298
      %v947 = vpop.f32.mrf.mxu0
      %v948 = vadd.f32 %v835, %v947
      %949 = vmatmul.f32.gmra.mxu0 %v299
      %v950 = vpop.f32.mrf.mxu0
      %v951 = vadd.f32 %v838, %v950
      %952 = vmatmul.f32.gmra.mxu0 %v300
      %v953 = vpop.f32.mrf.mxu0
      %v954 = vadd.f32 %v841, %v953
      %955 = vmatmul.f32.gmra.mxu0 %v301
      %v956 = vpop.f32.mrf.mxu0
      %v957 = vadd.f32 %v844, %v956
      %958 = vmatmul.f32.gmra.mxu0 %v302
      %v959 = vpop.f32.mrf.mxu0
      %v960 = vadd.f32 %v847, %v959
      %961 = vmatmul.f32.gmra.mxu0 %v303
      %v962 = vpop.f32.mrf.mxu0
      %v963 = vadd.f32 %v850, %v962
      %964 = vmatmul.f32.gmra.mxu0 %v304
      %v965 = vpop.f32.mrf.mxu0
      %v966 = vadd.f32 %v853, %v965
      %967 = vmatmul.f32.gmra.mxu0 %v305
      %v968 = vpop.f32.mrf.mxu0
      %v969 = vadd.f32 %v856, %v968
      %970 = vmatmul.f32.gmra.mxu0 %v306
      %v971 = vpop.f32.mrf.mxu0
      %v972 = vadd.f32 %v859, %v971
      %973 = vmatmul.f32.gmra.mxu0 %v307
      %v974 = vpop.f32.mrf.mxu0
      %v975 = vadd.f32 %v862, %v974
      %976 = vmatmul.f32.gmra.mxu0 %v308
      %v977 = vpop.f32.mrf.mxu0
      %v978 = vadd.f32 %v865, %v977
      %979 = vmatmul.f32.gmra.mxu0 %v309
      %v980 = vpop.f32.mrf.mxu0
      %v981 = vadd.f32 %v868, %v980
      %982 = vmatmul.f32.gmra.mxu0 %v310
      %v983 = vpop.f32.mrf.mxu0
      %v984 = vadd.f32 %v871, %v983
      %985 = vmatmul.f32.gmra.mxu0 %v311
      %v986 = vpop.f32.mrf.mxu0
      %v987 = vadd.f32 %v874, %v986
      %988 = vmatmul.f32.gmra.mxu0 %v312
      %v989 = vpop.f32.mrf.mxu0
      %v990 = vadd.f32 %v877, %v989
      %991 = vmatmul.f32.gmra.mxu0 %v313
      %v992 = vpop.f32.mrf.mxu0
      %v993 = vadd.f32 %v880, %v992
      %994 = vdwg.mxu0
      %995 = vmatpush.msra.mxu0 %v575
      %996 = vmatpush.msra.mxu0 %v574
      %997 = vmatpush.msra.mxu0 %v573
      %998 = vmatpush.msra.mxu0 %v572
      %999 = vmatpush.msra.mxu0 %v571
      %1000 = vmatpush.msra.mxu0 %v570
      %1001 = vmatpush.msra.mxu0 %v569
      %1002 = vmatpush.msra.mxu0 %v568
      %1003 = vmatpush.msra.mxu0 %v567
      %1004 = vmatpush.msra.mxu0 %v566
      %1005 = vmatpush.msra.mxu0 %v565
      %1006 = vmatpush.msra.mxu0 %v564
      %1007 = vmatpush.msra.mxu0 %v563
      %1008 = vmatpush.msra.mxu0 %v562
      %1009 = vmatpush.msra.mxu0 %v561
      %1010 = vmatpush.msra.mxu0 %v560
      %1011 = vmatmul.f32.gmra.mxu0 %v317
      %v1012 = vpop.f32.mrf.mxu0
      %v1013 = vadd.f32 %v900, %v1012
      %1014 = vmatmul.f32.gmra.mxu0 %v318
      %v1015 = vpop.f32.mrf.mxu0
      %v1016 = vadd.f32 %v903, %v1015
      %1017 = vmatmul.f32.gmra.mxu0 %v319
      %v1018 = vpop.f32.mrf.mxu0
      %v1019 = vadd.f32 %v906, %v1018
      %1020 = vmatmul.f32.gmra.mxu0 %v320
      %v1021 = vpop.f32.mrf.mxu0
      %v1022 = vadd.f32 %v909, %v1021
      %1023 = vmatmul.f32.gmra.mxu0 %v321
      %v1024 = vpop.f32.mrf.mxu0
      %v1025 = vadd.f32 %v912, %v1024
      %1026 = vmatmul.f32.gmra.mxu0 %v322
      %v1027 = vpop.f32.mrf.mxu0
      %v1028 = vadd.f32 %v915, %v1027
      %1029 = vmatmul.f32.gmra.mxu0 %v323
      %v1030 = vpop.f32.mrf.mxu0
      %v1031 = vadd.f32 %v918, %v1030
      %1032 = vmatmul.f32.gmra.mxu0 %v324
      %v1033 = vpop.f32.mrf.mxu0
      %v1034 = vadd.f32 %v921, %v1033
      %1035 = vmatmul.f32.gmra.mxu0 %v325
      %v1036 = vpop.f32.mrf.mxu0
      %v1037 = vadd.f32 %v924, %v1036
      %1038 = vmatmul.f32.gmra.mxu0 %v326
      %v1039 = vpop.f32.mrf.mxu0
      %v1040 = vadd.f32 %v927, %v1039
      %1041 = vmatmul.f32.gmra.mxu0 %v327
      %v1042 = vpop.f32.mrf.mxu0
      %v1043 = vadd.f32 %v930, %v1042
      %1044 = vmatmul.f32.gmra.mxu0 %v328
      %v1045 = vpop.f32.mrf.mxu0
      %v1046 = vadd.f32 %v933, %v1045
      %1047 = vmatmul.f32.gmra.mxu0 %v329
      %v1048 = vpop.f32.mrf.mxu0
      %v1049 = vadd.f32 %v936, %v1048
      %1050 = vmatmul.f32.gmra.mxu0 %v330
      %v1051 = vpop.f32.mrf.mxu0
      %v1052 = vadd.f32 %v939, %v1051
      %1053 = vmatmul.f32.gmra.mxu0 %v331
      %v1054 = vpop.f32.mrf.mxu0
      %v1055 = vadd.f32 %v942, %v1054
      %1056 = vmatmul.f32.gmra.mxu0 %v332
      %v1057 = vpop.f32.mrf.mxu0
      %v1058 = vadd.f32 %v945, %v1057
      %1059 = vmatmul.f32.gmra.mxu0 %v333
      %v1060 = vpop.f32.mrf.mxu0
      %v1061 = vadd.f32 %v948, %v1060
      %1062 = vmatmul.f32.gmra.mxu0 %v334
      %v1063 = vpop.f32.mrf.mxu0
      %v1064 = vadd.f32 %v951, %v1063
      %1065 = vmatmul.f32.gmra.mxu0 %v335
      %v1066 = vpop.f32.mrf.mxu0
      %v1067 = vadd.f32 %v954, %v1066
      %1068 = vmatmul.f32.gmra.mxu0 %v336
      %v1069 = vpop.f32.mrf.mxu0
      %v1070 = vadd.f32 %v957, %v1069
      %1071 = vmatmul.f32.gmra.mxu0 %v337
      %v1072 = vpop.f32.mrf.mxu0
      %v1073 = vadd.f32 %v960, %v1072
      %1074 = vmatmul.f32.gmra.mxu0 %v338
      %v1075 = vpop.f32.mrf.mxu0
      %v1076 = vadd.f32 %v963, %v1075
      %1077 = vmatmul.f32.gmra.mxu0 %v339
      %v1078 = vpop.f32.mrf.mxu0
      %v1079 = vadd.f32 %v966, %v1078
      %1080 = vmatmul.f32.gmra.mxu0 %v340
      %v1081 = vpop.f32.mrf.mxu0
      %v1082 = vadd.f32 %v969, %v1081
      %1083 = vmatmul.f32.gmra.mxu0 %v341
      %v1084 = vpop.f32.mrf.mxu0
      %v1085 = vadd.f32 %v972, %v1084
      %1086 = vmatmul.f32.gmra.mxu0 %v342
      %v1087 = vpop.f32.mrf.mxu0
      %v1088 = vadd.f32 %v975, %v1087
      %1089 = vmatmul.f32.gmra.mxu0 %v343
      %v1090 = vpop.f32.mrf.mxu0
      %v1091 = vadd.f32 %v978, %v1090
      %1092 = vmatmul.f32.gmra.mxu0 %v344
      %v1093 = vpop.f32.mrf.mxu0
      %v1094 = vadd.f32 %v981, %v1093
      %1095 = vmatmul.f32.gmra.mxu0 %v345
      %v1096 = vpop.f32.mrf.mxu0
      %v1097 = vadd.f32 %v984, %v1096
      %1098 = vmatmul.f32.gmra.mxu0 %v346
      %v1099 = vpop.f32.mrf.mxu0
      %v1100 = vadd.f32 %v987, %v1099
      %1101 = vmatmul.f32.gmra.mxu0 %v347
      %v1102 = vpop.f32.mrf.mxu0
      %v1103 = vadd.f32 %v990, %v1102
      %1104 = vmatmul.f32.gmra.mxu0 %v348
      %v1105 = vpop.f32.mrf.mxu0
      %v1106 = vadd.f32 %v993, %v1105
      %1107 = vdwg.mxu0
      %1108 = vmatpush.msra.mxu0 %v591
      %1109 = vmatpush.msra.mxu0 %v590
      %1110 = vmatpush.msra.mxu0 %v589
      %1111 = vmatpush.msra.mxu0 %v588
      %1112 = vmatpush.msra.mxu0 %v587
      %1113 = vmatpush.msra.mxu0 %v586
      %1114 = vmatpush.msra.mxu0 %v585
      %1115 = vmatpush.msra.mxu0 %v584
      %1116 = vmatpush.msra.mxu0 %v583
      %1117 = vmatpush.msra.mxu0 %v582
      %1118 = vmatpush.msra.mxu0 %v581
      %1119 = vmatpush.msra.mxu0 %v580
      %1120 = vmatpush.msra.mxu0 %v579
      %1121 = vmatpush.msra.mxu0 %v578
      %1122 = vmatpush.msra.mxu0 %v577
      %1123 = vmatpush.msra.mxu0 %v576
      %1124 = vmatmul.f32.gmra.mxu0 %v349
      %v1125 = vpop.f32.mrf.mxu0
      %v1126 = vadd.f32 %v1013, %v1125
      %1127 = vmatmul.f32.gmra.mxu0 %v350
      %v1128 = vpop.f32.mrf.mxu0
      %v1129 = vadd.f32 %v1016, %v1128
      %1130 = vmatmul.f32.gmra.mxu0 %v351
      %v1131 = vpop.f32.mrf.mxu0
      %v1132 = vadd.f32 %v1019, %v1131
      %1133 = vmatmul.f32.gmra.mxu0 %v352
      %v1134 = vpop.f32.mrf.mxu0
      %v1135 = vadd.f32 %v1022, %v1134
      %1136 = vmatmul.f32.gmra.mxu0 %v353
      %v1137 = vpop.f32.mrf.mxu0
      %v1138 = vadd.f32 %v1025, %v1137
      %1139 = vmatmul.f32.gmra.mxu0 %v354
      %v1140 = vpop.f32.mrf.mxu0
      %v1141 = vadd.f32 %v1028, %v1140
      %1142 = vmatmul.f32.gmra.mxu0 %v355
      %v1143 = vpop.f32.mrf.mxu0
      %v1144 = vadd.f32 %v1031, %v1143
      %1145 = vmatmul.f32.gmra.mxu0 %v356
      %v1146 = vpop.f32.mrf.mxu0
      %v1147 = vadd.f32 %v1034, %v1146
      %1148 = vmatmul.f32.gmra.mxu0 %v357
      %v1149 = vpop.f32.mrf.mxu0
      %v1150 = vadd.f32 %v1037, %v1149
      %1151 = vmatmul.f32.gmra.mxu0 %v358
      %v1152 = vpop.f32.mrf.mxu0
      %v1153 = vadd.f32 %v1040, %v1152
      %1154 = vmatmul.f32.gmra.mxu0 %v359
      %v1155 = vpop.f32.mrf.mxu0
      %v1156 = vadd.f32 %v1043, %v1155
      %1157 = vmatmul.f32.gmra.mxu0 %v360
      %v1158 = vpop.f32.mrf.mxu0
      %v1159 = vadd.f32 %v1046, %v1158
      %1160 = vmatmul.f32.gmra.mxu0 %v361
      %v1161 = vpop.f32.mrf.mxu0
      %v1162 = vadd.f32 %v1049, %v1161
      %1163 = vmatmul.f32.gmra.mxu0 %v362
      %v1164 = vpop.f32.mrf.mxu0
      %v1165 = vadd.f32 %v1052, %v1164
      %1166 = vmatmul.f32.gmra.mxu0 %v363
      %v1167 = vpop.f32.mrf.mxu0
      %v1168 = vadd.f32 %v1055, %v1167
      %1169 = vmatmul.f32.gmra.mxu0 %v364
      %v1170 = vpop.f32.mrf.mxu0
      %v1171 = vadd.f32 %v1058, %v1170
      %1172 = vmatmul.f32.gmra.mxu0 %v365
      %v1173 = vpop.f32.mrf.mxu0
      %v1174 = vadd.f32 %v1061, %v1173
      %1175 = vmatmul.f32.gmra.mxu0 %v366
      %v1176 = vpop.f32.mrf.mxu0
      %v1177 = vadd.f32 %v1064, %v1176
      %1178 = vmatmul.f32.gmra.mxu0 %v367
      %v1179 = vpop.f32.mrf.mxu0
      %v1180 = vadd.f32 %v1067, %v1179
      %1181 = vmatmul.f32.gmra.mxu0 %v368
      %v1182 = vpop.f32.mrf.mxu0
      %v1183 = vadd.f32 %v1070, %v1182
      %1184 = vmatmul.f32.gmra.mxu0 %v369
      %v1185 = vpop.f32.mrf.mxu0
      %v1186 = vadd.f32 %v1073, %v1185
      %1187 = vmatmul.f32.gmra.mxu0 %v370
      %v1188 = vpop.f32.mrf.mxu0
      %v1189 = vadd.f32 %v1076, %v1188
      %1190 = vmatmul.f32.gmra.mxu0 %v371
      %v1191 = vpop.f32.mrf.mxu0
      %v1192 = vadd.f32 %v1079, %v1191
      %1193 = vmatmul.f32.gmra.mxu0 %v372
      %v1194 = vpop.f32.mrf.mxu0
      %v1195 = vadd.f32 %v1082, %v1194
      %1196 = vmatmul.f32.gmra.mxu0 %v373
      %v1197 = vpop.f32.mrf.mxu0
      %v1198 = vadd.f32 %v1085, %v1197
      %1199 = vmatmul.f32.gmra.mxu0 %v374
      %v1200 = vpop.f32.mrf.mxu0
      %v1201 = vadd.f32 %v1088, %v1200
      %1202 = vmatmul.f32.gmra.mxu0 %v375
      %v1203 = vpop.f32.mrf.mxu0
      %v1204 = vadd.f32 %v1091, %v1203
      %1205 = vmatmul.f32.gmra.mxu0 %v376
      %v1206 = vpop.f32.mrf.mxu0
      %v1207 = vadd.f32 %v1094, %v1206
      %1208 = vmatmul.f32.gmra.mxu0 %v377
      %v1209 = vpop.f32.mrf.mxu0
      %v1210 = vadd.f32 %v1097, %v1209
      %1211 = vmatmul.f32.gmra.mxu0 %v378
      %v1212 = vpop.f32.mrf.mxu0
      %v1213 = vadd.f32 %v1100, %v1212
      %1214 = vmatmul.f32.gmra.mxu0 %v379
      %v1215 = vpop.f32.mrf.mxu0
      %v1216 = vadd.f32 %v1103, %v1215
      %1217 = vmatmul.f32.gmra.mxu0 %v380
      %v1218 = vpop.f32.mrf.mxu0
      %v1219 = vadd.f32 %v1106, %v1218
      %1220 = vdwg.mxu0
      %1221 = vmatpush.msra.mxu0 %v607
      %1222 = vmatpush.msra.mxu0 %v606
      %1223 = vmatpush.msra.mxu0 %v605
      %1224 = vmatpush.msra.mxu0 %v604
      %1225 = vmatpush.msra.mxu0 %v603
      %1226 = vmatpush.msra.mxu0 %v602
      %1227 = vmatpush.msra.mxu0 %v601
      %1228 = vmatpush.msra.mxu0 %v600
      %1229 = vmatpush.msra.mxu0 %v599
      %1230 = vmatpush.msra.mxu0 %v598
      %1231 = vmatpush.msra.mxu0 %v597
      %1232 = vmatpush.msra.mxu0 %v596
      %1233 = vmatpush.msra.mxu0 %v595
      %1234 = vmatpush.msra.mxu0 %v594
      %1235 = vmatpush.msra.mxu0 %v593
      %1236 = vmatpush.msra.mxu0 %v592
      %1237 = vmatmul.f32.gmra.mxu0 %v381
      %v1238 = vpop.f32.mrf.mxu0
      %v1239 = vadd.f32 %v1126, %v1238
      %1240 = vmatmul.f32.gmra.mxu0 %v382
      %v1241 = vpop.f32.mrf.mxu0
      %v1242 = vadd.f32 %v1129, %v1241
      %1243 = vmatmul.f32.gmra.mxu0 %v383
      %v1244 = vpop.f32.mrf.mxu0
      %v1245 = vadd.f32 %v1132, %v1244
      %1246 = vmatmul.f32.gmra.mxu0 %v384
      %v1247 = vpop.f32.mrf.mxu0
      %v1248 = vadd.f32 %v1135, %v1247
      %1249 = vmatmul.f32.gmra.mxu0 %v385
      %v1250 = vpop.f32.mrf.mxu0
      %v1251 = vadd.f32 %v1138, %v1250
      %1252 = vmatmul.f32.gmra.mxu0 %v386
      %v1253 = vpop.f32.mrf.mxu0
      %v1254 = vadd.f32 %v1141, %v1253
      %1255 = vmatmul.f32.gmra.mxu0 %v387
      %v1256 = vpop.f32.mrf.mxu0
      %v1257 = vadd.f32 %v1144, %v1256
      %1258 = vmatmul.f32.gmra.mxu0 %v388
      %v1259 = vpop.f32.mrf.mxu0
      %v1260 = vadd.f32 %v1147, %v1259
      %1261 = vmatmul.f32.gmra.mxu0 %v389
      %v1262 = vpop.f32.mrf.mxu0
      %v1263 = vadd.f32 %v1150, %v1262
      %1264 = vmatmul.f32.gmra.mxu0 %v390
      %v1265 = vpop.f32.mrf.mxu0
      %v1266 = vadd.f32 %v1153, %v1265
      %1267 = vmatmul.f32.gmra.mxu0 %v391
      %v1268 = vpop.f32.mrf.mxu0
      %v1269 = vadd.f32 %v1156, %v1268
      %1270 = vmatmul.f32.gmra.mxu0 %v392
      %v1271 = vpop.f32.mrf.mxu0
      %v1272 = vadd.f32 %v1159, %v1271
      %1273 = vmatmul.f32.gmra.mxu0 %v393
      %v1274 = vpop.f32.mrf.mxu0
      %v1275 = vadd.f32 %v1162, %v1274
      %1276 = vmatmul.f32.gmra.mxu0 %v394
      %v1277 = vpop.f32.mrf.mxu0
      %v1278 = vadd.f32 %v1165, %v1277
      %1279 = vmatmul.f32.gmra.mxu0 %v395
      %v1280 = vpop.f32.mrf.mxu0
      %v1281 = vadd.f32 %v1168, %v1280
      %1282 = vmatmul.f32.gmra.mxu0 %v396
      %v1283 = vpop.f32.mrf.mxu0
      %v1284 = vadd.f32 %v1171, %v1283
      %1285 = vmatmul.f32.gmra.mxu0 %v397
      %v1286 = vpop.f32.mrf.mxu0
      %v1287 = vadd.f32 %v1174, %v1286
      %1288 = vmatmul.f32.gmra.mxu0 %v398
      %v1289 = vpop.f32.mrf.mxu0
      %v1290 = vadd.f32 %v1177, %v1289
      %1291 = vmatmul.f32.gmra.mxu0 %v399
      %v1292 = vpop.f32.mrf.mxu0
      %v1293 = vadd.f32 %v1180, %v1292
      %1294 = vmatmul.f32.gmra.mxu0 %v400
      %v1295 = vpop.f32.mrf.mxu0
      %v1296 = vadd.f32 %v1183, %v1295
      %1297 = vmatmul.f32.gmra.mxu0 %v401
      %v1298 = vpop.f32.mrf.mxu0
      %v1299 = vadd.f32 %v1186, %v1298
      %1300 = vmatmul.f32.gmra.mxu0 %v402
      %v1301 = vpop.f32.mrf.mxu0
      %v1302 = vadd.f32 %v1189, %v1301
      %1303 = vmatmul.f32.gmra.mxu0 %v403
      %v1304 = vpop.f32.mrf.mxu0
      %v1305 = vadd.f32 %v1192, %v1304
      %1306 = vmatmul.f32.gmra.mxu0 %v404
      %v1307 = vpop.f32.mrf.mxu0
      %v1308 = vadd.f32 %v1195, %v1307
      %1309 = vmatmul.f32.gmra.mxu0 %v405
      %v1310 = vpop.f32.mrf.mxu0
      %v1311 = vadd.f32 %v1198, %v1310
      %1312 = vmatmul.f32.gmra.mxu0 %v406
      %v1313 = vpop.f32.mrf.mxu0
      %v1314 = vadd.f32 %v1201, %v1313
      %1315 = vmatmul.f32.gmra.mxu0 %v407
      %v1316 = vpop.f32.mrf.mxu0
      %v1317 = vadd.f32 %v1204, %v1316
      %1318 = vmatmul.f32.gmra.mxu0 %v408
      %v1319 = vpop.f32.mrf.mxu0
      %v1320 = vadd.f32 %v1207, %v1319
      %1321 = vmatmul.f32.gmra.mxu0 %v409
      %v1322 = vpop.f32.mrf.mxu0
      %v1323 = vadd.f32 %v1210, %v1322
      %1324 = vmatmul.f32.gmra.mxu0 %v410
      %v1325 = vpop.f32.mrf.mxu0
      %v1326 = vadd.f32 %v1213, %v1325
      %1327 = vmatmul.f32.gmra.mxu0 %v411
      %v1328 = vpop.f32.mrf.mxu0
      %v1329 = vadd.f32 %v1216, %v1328
      %1330 = vmatmul.f32.gmra.mxu0 %v412
      %v1331 = vpop.f32.mrf.mxu0
      %v1332 = vadd.f32 %v1219, %v1331
      %1333 = vdwg.mxu0
      %1334 = vmatpush.msra.mxu0 %v623
      %1335 = vmatpush.msra.mxu0 %v622
      %1336 = vmatpush.msra.mxu0 %v621
      %1337 = vmatpush.msra.mxu0 %v620
      %1338 = vmatpush.msra.mxu0 %v619
      %1339 = vmatpush.msra.mxu0 %v618
      %1340 = vmatpush.msra.mxu0 %v617
      %1341 = vmatpush.msra.mxu0 %v616
      %1342 = vmatpush.msra.mxu0 %v615
      %1343 = vmatpush.msra.mxu0 %v614
      %1344 = vmatpush.msra.mxu0 %v613
      %1345 = vmatpush.msra.mxu0 %v612
      %1346 = vmatpush.msra.mxu0 %v611
      %1347 = vmatpush.msra.mxu0 %v610
      %1348 = vmatpush.msra.mxu0 %v609
      %1349 = vmatpush.msra.mxu0 %v608
      %1350 = vmatmul.f32.gmra.mxu0 %v416
      %v1351 = vpop.f32.mrf.mxu0
      %v1352 = vadd.f32 %v1239, %v1351
      %1353 = vmatmul.f32.gmra.mxu0 %v417
      %v1354 = vpop.f32.mrf.mxu0
      %v1355 = vadd.f32 %v1242, %v1354
      %1356 = vmatmul.f32.gmra.mxu0 %v418
      %v1357 = vpop.f32.mrf.mxu0
      %v1358 = vadd.f32 %v1245, %v1357
      %1359 = vmatmul.f32.gmra.mxu0 %v419
      %v1360 = vpop.f32.mrf.mxu0
      %v1361 = vadd.f32 %v1248, %v1360
      %1362 = vmatmul.f32.gmra.mxu0 %v420
      %v1363 = vpop.f32.mrf.mxu0
      %v1364 = vadd.f32 %v1251, %v1363
      %1365 = vmatmul.f32.gmra.mxu0 %v421
      %v1366 = vpop.f32.mrf.mxu0
      %v1367 = vadd.f32 %v1254, %v1366
      %1368 = vmatmul.f32.gmra.mxu0 %v422
      %v1369 = vpop.f32.mrf.mxu0
      %v1370 = vadd.f32 %v1257, %v1369
      %1371 = vmatmul.f32.gmra.mxu0 %v423
      %v1372 = vpop.f32.mrf.mxu0
      %v1373 = vadd.f32 %v1260, %v1372
      %1374 = vmatmul.f32.gmra.mxu0 %v424
      %v1375 = vpop.f32.mrf.mxu0
      %v1376 = vadd.f32 %v1263, %v1375
      %1377 = vmatmul.f32.gmra.mxu0 %v425
      %v1378 = vpop.f32.mrf.mxu0
      %v1379 = vadd.f32 %v1266, %v1378
      %1380 = vmatmul.f32.gmra.mxu0 %v426
      %v1381 = vpop.f32.mrf.mxu0
      %v1382 = vadd.f32 %v1269, %v1381
      %1383 = vmatmul.f32.gmra.mxu0 %v427
      %v1384 = vpop.f32.mrf.mxu0
      %v1385 = vadd.f32 %v1272, %v1384
      %1386 = vmatmul.f32.gmra.mxu0 %v428
      %v1387 = vpop.f32.mrf.mxu0
      %v1388 = vadd.f32 %v1275, %v1387
      %1389 = vmatmul.f32.gmra.mxu0 %v429
      %v1390 = vpop.f32.mrf.mxu0
      %v1391 = vadd.f32 %v1278, %v1390
      %1392 = vmatmul.f32.gmra.mxu0 %v430
      %v1393 = vpop.f32.mrf.mxu0
      %v1394 = vadd.f32 %v1281, %v1393
      %1395 = vmatmul.f32.gmra.mxu0 %v431
      %v1396 = vpop.f32.mrf.mxu0
      %v1397 = vadd.f32 %v1284, %v1396
      %1398 = vmatmul.f32.gmra.mxu0 %v432
      %v1399 = vpop.f32.mrf.mxu0
      %v1400 = vadd.f32 %v1287, %v1399
      %1401 = vmatmul.f32.gmra.mxu0 %v433
      %v1402 = vpop.f32.mrf.mxu0
      %v1403 = vadd.f32 %v1290, %v1402
      %1404 = vmatmul.f32.gmra.mxu0 %v434
      %v1405 = vpop.f32.mrf.mxu0
      %v1406 = vadd.f32 %v1293, %v1405
      %1407 = vmatmul.f32.gmra.mxu0 %v435
      %v1408 = vpop.f32.mrf.mxu0
      %v1409 = vadd.f32 %v1296, %v1408
      %1410 = vmatmul.f32.gmra.mxu0 %v436
      %v1411 = vpop.f32.mrf.mxu0
      %v1412 = vadd.f32 %v1299, %v1411
      %1413 = vmatmul.f32.gmra.mxu0 %v437
      %v1414 = vpop.f32.mrf.mxu0
      %v1415 = vadd.f32 %v1302, %v1414
      %1416 = vmatmul.f32.gmra.mxu0 %v438
      %v1417 = vpop.f32.mrf.mxu0
      %v1418 = vadd.f32 %v1305, %v1417
      %1419 = vmatmul.f32.gmra.mxu0 %v439
      %v1420 = vpop.f32.mrf.mxu0
      %v1421 = vadd.f32 %v1308, %v1420
      %1422 = vmatmul.f32.gmra.mxu0 %v440
      %v1423 = vpop.f32.mrf.mxu0
      %v1424 = vadd.f32 %v1311, %v1423
      %1425 = vmatmul.f32.gmra.mxu0 %v441
      %v1426 = vpop.f32.mrf.mxu0
      %v1427 = vadd.f32 %v1314, %v1426
      %1428 = vmatmul.f32.gmra.mxu0 %v442
      %v1429 = vpop.f32.mrf.mxu0
      %v1430 = vadd.f32 %v1317, %v1429
      %1431 = vmatmul.f32.gmra.mxu0 %v443
      %v1432 = vpop.f32.mrf.mxu0
      %v1433 = vadd.f32 %v1320, %v1432
      %1434 = vmatmul.f32.gmra.mxu0 %v444
      %v1435 = vpop.f32.mrf.mxu0
      %v1436 = vadd.f32 %v1323, %v1435
      %1437 = vmatmul.f32.gmra.mxu0 %v445
      %v1438 = vpop.f32.mrf.mxu0
      %v1439 = vadd.f32 %v1326, %v1438
      %1440 = vmatmul.f32.gmra.mxu0 %v446
      %v1441 = vpop.f32.mrf.mxu0
      %v1442 = vadd.f32 %v1329, %v1441
      %1443 = vmatmul.f32.gmra.mxu0 %v447
      %v1444 = vpop.f32.mrf.mxu0
      %v1445 = vadd.f32 %v1332, %v1444
      %1446 = vdwg.mxu0
      %1447 = vmatpush.msra.mxu0 %v639
      %1448 = vmatpush.msra.mxu0 %v638
      %1449 = vmatpush.msra.mxu0 %v637
      %1450 = vmatpush.msra.mxu0 %v636
      %1451 = vmatpush.msra.mxu0 %v635
      %1452 = vmatpush.msra.mxu0 %v634
      %1453 = vmatpush.msra.mxu0 %v633
      %1454 = vmatpush.msra.mxu0 %v632
      %1455 = vmatpush.msra.mxu0 %v631
      %1456 = vmatpush.msra.mxu0 %v630
      %1457 = vmatpush.msra.mxu0 %v629
      %1458 = vmatpush.msra.mxu0 %v628
      %1459 = vmatpush.msra.mxu0 %v627
      %1460 = vmatpush.msra.mxu0 %v626
      %1461 = vmatpush.msra.mxu0 %v625
      %1462 = vmatpush.msra.mxu0 %v624
      %1463 = vmatmul.f32.gmra.mxu0 %v448
      %v1464 = vpop.f32.mrf.mxu0
      %v1465 = vadd.f32 %v1352, %v1464
      %1466 = vmatmul.f32.gmra.mxu0 %v449
      %v1467 = vpop.f32.mrf.mxu0
      %v1468 = vadd.f32 %v1355, %v1467
      %1469 = vmatmul.f32.gmra.mxu0 %v450
      %v1470 = vpop.f32.mrf.mxu0
      %v1471 = vadd.f32 %v1358, %v1470
      %1472 = vmatmul.f32.gmra.mxu0 %v451
      %v1473 = vpop.f32.mrf.mxu0
      %v1474 = vadd.f32 %v1361, %v1473
      %1475 = vmatmul.f32.gmra.mxu0 %v452
      %v1476 = vpop.f32.mrf.mxu0
      %v1477 = vadd.f32 %v1364, %v1476
      %1478 = vmatmul.f32.gmra.mxu0 %v453
      %v1479 = vpop.f32.mrf.mxu0
      %v1480 = vadd.f32 %v1367, %v1479
      %1481 = vmatmul.f32.gmra.mxu0 %v454
      %v1482 = vpop.f32.mrf.mxu0
      %v1483 = vadd.f32 %v1370, %v1482
      %1484 = vmatmul.f32.gmra.mxu0 %v455
      %v1485 = vpop.f32.mrf.mxu0
      %v1486 = vadd.f32 %v1373, %v1485
      %1487 = vmatmul.f32.gmra.mxu0 %v456
      %v1488 = vpop.f32.mrf.mxu0
      %v1489 = vadd.f32 %v1376, %v1488
      %1490 = vmatmul.f32.gmra.mxu0 %v457
      %v1491 = vpop.f32.mrf.mxu0
      %v1492 = vadd.f32 %v1379, %v1491
      %1493 = vmatmul.f32.gmra.mxu0 %v458
      %v1494 = vpop.f32.mrf.mxu0
      %v1495 = vadd.f32 %v1382, %v1494
      %1496 = vmatmul.f32.gmra.mxu0 %v459
      %v1497 = vpop.f32.mrf.mxu0
      %v1498 = vadd.f32 %v1385, %v1497
      %1499 = vmatmul.f32.gmra.mxu0 %v460
      %v1500 = vpop.f32.mrf.mxu0
      %v1501 = vadd.f32 %v1388, %v1500
      %1502 = vmatmul.f32.gmra.mxu0 %v461
      %v1503 = vpop.f32.mrf.mxu0
      %v1504 = vadd.f32 %v1391, %v1503
      %1505 = vmatmul.f32.gmra.mxu0 %v462
      %v1506 = vpop.f32.mrf.mxu0
      %v1507 = vadd.f32 %v1394, %v1506
      %1508 = vmatmul.f32.gmra.mxu0 %v463
      %v1509 = vpop.f32.mrf.mxu0
      %v1510 = vadd.f32 %v1397, %v1509
      %1511 = vmatmul.f32.gmra.mxu0 %v464
      %v1512 = vpop.f32.mrf.mxu0
      %v1513 = vadd.f32 %v1400, %v1512
      %1514 = vmatmul.f32.gmra.mxu0 %v465
      %v1515 = vpop.f32.mrf.mxu0
      %v1516 = vadd.f32 %v1403, %v1515
      %1517 = vmatmul.f32.gmra.mxu0 %v466
      %v1518 = vpop.f32.mrf.mxu0
      %v1519 = vadd.f32 %v1406, %v1518
      %1520 = vmatmul.f32.gmra.mxu0 %v467
      %v1521 = vpop.f32.mrf.mxu0
      %v1522 = vadd.f32 %v1409, %v1521
      %1523 = vmatmul.f32.gmra.mxu0 %v468
      %v1524 = vpop.f32.mrf.mxu0
      %v1525 = vadd.f32 %v1412, %v1524
      %1526 = vmatmul.f32.gmra.mxu0 %v469
      %v1527 = vpop.f32.mrf.mxu0
      %v1528 = vadd.f32 %v1415, %v1527
      %1529 = vmatmul.f32.gmra.mxu0 %v470
      %v1530 = vpop.f32.mrf.mxu0
      %v1531 = vadd.f32 %v1418, %v1530
      %1532 = vmatmul.f32.gmra.mxu0 %v471
      %v1533 = vpop.f32.mrf.mxu0
      %v1534 = vadd.f32 %v1421, %v1533
      %1535 = vmatmul.f32.gmra.mxu0 %v472
      %v1536 = vpop.f32.mrf.mxu0
      %v1537 = vadd.f32 %v1424, %v1536
      %1538 = vmatmul.f32.gmra.mxu0 %v473
      %v1539 = vpop.f32.mrf.mxu0
      %v1540 = vadd.f32 %v1427, %v1539
      %1541 = vmatmul.f32.gmra.mxu0 %v474
      %v1542 = vpop.f32.mrf.mxu0
      %v1543 = vadd.f32 %v1430, %v1542
      %1544 = vmatmul.f32.gmra.mxu0 %v475
      %v1545 = vpop.f32.mrf.mxu0
      %v1546 = vadd.f32 %v1433, %v1545
      %1547 = vmatmul.f32.gmra.mxu0 %v476
      %v1548 = vpop.f32.mrf.mxu0
      %v1549 = vadd.f32 %v1436, %v1548
      %1550 = vmatmul.f32.gmra.mxu0 %v477
      %v1551 = vpop.f32.mrf.mxu0
      %v1552 = vadd.f32 %v1439, %v1551
      %1553 = vmatmul.f32.gmra.mxu0 %v478
      %v1554 = vpop.f32.mrf.mxu0
      %v1555 = vadd.f32 %v1442, %v1554
      %1556 = vmatmul.f32.gmra.mxu0 %v479
      %v1557 = vpop.f32.mrf.mxu0
      %v1558 = vadd.f32 %v1445, %v1557
      %1559 = vdwg.mxu0
      %1560 = vmatpush.msra.mxu0 %v655
      %1561 = vmatpush.msra.mxu0 %v654
      %1562 = vmatpush.msra.mxu0 %v653
      %1563 = vmatpush.msra.mxu0 %v652
      %1564 = vmatpush.msra.mxu0 %v651
      %1565 = vmatpush.msra.mxu0 %v650
      %1566 = vmatpush.msra.mxu0 %v649
      %1567 = vmatpush.msra.mxu0 %v648
      %1568 = vmatpush.msra.mxu0 %v647
      %1569 = vmatpush.msra.mxu0 %v646
      %1570 = vmatpush.msra.mxu0 %v645
      %1571 = vmatpush.msra.mxu0 %v644
      %1572 = vmatpush.msra.mxu0 %v643
      %1573 = vmatpush.msra.mxu0 %v642
      %1574 = vmatpush.msra.mxu0 %v641
      %1575 = vmatpush.msra.mxu0 %v640
      %1576 = vmatmul.f32.gmra.mxu0 %v480
      %v1577 = vpop.f32.mrf.mxu0
      %v1578 = vadd.f32 %v1465, %v1577
      %1579 = vmatmul.f32.gmra.mxu0 %v481
      %v1580 = vpop.f32.mrf.mxu0
      %v1581 = vadd.f32 %v1468, %v1580
      %1582 = vmatmul.f32.gmra.mxu0 %v482
      %v1583 = vpop.f32.mrf.mxu0
      %v1584 = vadd.f32 %v1471, %v1583
      %1585 = vmatmul.f32.gmra.mxu0 %v483
      %v1586 = vpop.f32.mrf.mxu0
      %v1587 = vadd.f32 %v1474, %v1586
      %1588 = vmatmul.f32.gmra.mxu0 %v484
      %v1589 = vpop.f32.mrf.mxu0
      %v1590 = vadd.f32 %v1477, %v1589
      %1591 = vmatmul.f32.gmra.mxu0 %v485
      %v1592 = vpop.f32.mrf.mxu0
      %v1593 = vadd.f32 %v1480, %v1592
      %1594 = vmatmul.f32.gmra.mxu0 %v486
      %v1595 = vpop.f32.mrf.mxu0
      %v1596 = vadd.f32 %v1483, %v1595
      %1597 = vmatmul.f32.gmra.mxu0 %v487
      %v1598 = vpop.f32.mrf.mxu0
      %v1599 = vadd.f32 %v1486, %v1598
      %1600 = vmatmul.f32.gmra.mxu0 %v488
      %v1601 = vpop.f32.mrf.mxu0
      %v1602 = vadd.f32 %v1489, %v1601
      %1603 = vmatmul.f32.gmra.mxu0 %v489
      %v1604 = vpop.f32.mrf.mxu0
      %v1605 = vadd.f32 %v1492, %v1604
      %1606 = vmatmul.f32.gmra.mxu0 %v490
      %v1607 = vpop.f32.mrf.mxu0
      %v1608 = vadd.f32 %v1495, %v1607
      %1609 = vmatmul.f32.gmra.mxu0 %v491
      %v1610 = vpop.f32.mrf.mxu0
      %v1611 = vadd.f32 %v1498, %v1610
      %1612 = vmatmul.f32.gmra.mxu0 %v492
      %v1613 = vpop.f32.mrf.mxu0
      %v1614 = vadd.f32 %v1501, %v1613
      %1615 = vmatmul.f32.gmra.mxu0 %v493
      %v1616 = vpop.f32.mrf.mxu0
      %v1617 = vadd.f32 %v1504, %v1616
      %1618 = vmatmul.f32.gmra.mxu0 %v494
      %v1619 = vpop.f32.mrf.mxu0
      %v1620 = vadd.f32 %v1507, %v1619
      %1621 = vmatmul.f32.gmra.mxu0 %v495
      %v1622 = vpop.f32.mrf.mxu0
      %v1623 = vadd.f32 %v1510, %v1622
      %1624 = vmatmul.f32.gmra.mxu0 %v496
      %v1625 = vpop.f32.mrf.mxu0
      %v1626 = vadd.f32 %v1513, %v1625
      %1627 = vmatmul.f32.gmra.mxu0 %v497
      %v1628 = vpop.f32.mrf.mxu0
      %v1629 = vadd.f32 %v1516, %v1628
      %1630 = vmatmul.f32.gmra.mxu0 %v498
      %v1631 = vpop.f32.mrf.mxu0
      %v1632 = vadd.f32 %v1519, %v1631
      %1633 = vmatmul.f32.gmra.mxu0 %v499
      %v1634 = vpop.f32.mrf.mxu0
      %v1635 = vadd.f32 %v1522, %v1634
      %1636 = vmatmul.f32.gmra.mxu0 %v500
      %v1637 = vpop.f32.mrf.mxu0
      %v1638 = vadd.f32 %v1525, %v1637
      %1639 = vmatmul.f32.gmra.mxu0 %v501
      %v1640 = vpop.f32.mrf.mxu0
      %v1641 = vadd.f32 %v1528, %v1640
      %1642 = vmatmul.f32.gmra.mxu0 %v502
      %v1643 = vpop.f32.mrf.mxu0
      %v1644 = vadd.f32 %v1531, %v1643
      %1645 = vmatmul.f32.gmra.mxu0 %v503
      %v1646 = vpop.f32.mrf.mxu0
      %v1647 = vadd.f32 %v1534, %v1646
      %1648 = vmatmul.f32.gmra.mxu0 %v504
      %v1649 = vpop.f32.mrf.mxu0
      %v1650 = vadd.f32 %v1537, %v1649
      %1651 = vmatmul.f32.gmra.mxu0 %v505
      %v1652 = vpop.f32.mrf.mxu0
      %v1653 = vadd.f32 %v1540, %v1652
      %1654 = vmatmul.f32.gmra.mxu0 %v506
      %v1655 = vpop.f32.mrf.mxu0
      %v1656 = vadd.f32 %v1543, %v1655
      %1657 = vmatmul.f32.gmra.mxu0 %v507
      %v1658 = vpop.f32.mrf.mxu0
      %v1659 = vadd.f32 %v1546, %v1658
      %1660 = vmatmul.f32.gmra.mxu0 %v508
      %v1661 = vpop.f32.mrf.mxu0
      %v1662 = vadd.f32 %v1549, %v1661
      %1663 = vmatmul.f32.gmra.mxu0 %v509
      %v1664 = vpop.f32.mrf.mxu0
      %v1665 = vadd.f32 %v1552, %v1664
      %1666 = vmatmul.f32.gmra.mxu0 %v510
      %v1667 = vpop.f32.mrf.mxu0
      %v1668 = vadd.f32 %v1555, %v1667
      %1669 = vmatmul.f32.gmra.mxu0 %v511
      %v1670 = vpop.f32.mrf.mxu0
      %v1671 = vadd.f32 %v1558, %v1670
      %1672 = vdwg.mxu0
      %1673 = vst [vmem:[%s206] sm:$0xff] %v1578
      %1674 = vst [vmem:[%s206 + $0x8] sm:$0xff] %v1581
      %1675 = vst [vmem:[%s206 + $0x10] sm:$0xff] %v1584
      %1676 = vst [vmem:[%s206 + $0x18] sm:$0xff] %v1587
      %1677 = vst [vmem:[%s206 + $0x20] sm:$0xff] %v1590
      %1678 = vst [vmem:[%s206 + $0x28] sm:$0xff] %v1593
      %1679 = vst [vmem:[%s206 + $0x30] sm:$0xff] %v1596
      %1680 = vst [vmem:[%s206 + $0x38] sm:$0xff] %v1599
      %1681 = vst [vmem:[%s206 + $0x40] sm:$0xff] %v1602
      %1682 = vst [vmem:[%s206 + $0x48] sm:$0xff] %v1605
      %1683 = vst [vmem:[%s206 + $0x50] sm:$0xff] %v1608
      %1684 = vst [vmem:[%s206 + $0x58] sm:$0xff] %v1611
      %1685 = vst [vmem:[%s206 + $0x60] sm:$0xff] %v1614
      %1686 = vst [vmem:[%s206 + $0x68] sm:$0xff] %v1617
      %1687 = vst [vmem:[%s206 + $0x70] sm:$0xff] %v1620
      %1688 = vst [vmem:[%s206 + $0x78] sm:$0xff] %v1623
      %1689 = vst [vmem:[%s206 + $0x80] sm:$0xff] %v1626
      %1690 = vst [vmem:[%s206 + $0x88] sm:$0xff] %v1629
      %1691 = vst [vmem:[%s206 + $0x90] sm:$0xff] %v1632
      %1692 = vst [vmem:[%s206 + $0x98] sm:$0xff] %v1635
      %1693 = vst [vmem:[%s206 + $0xa0] sm:$0xff] %v1638
      %1694 = vst [vmem:[%s206 + $0xa8] sm:$0xff] %v1641
      %1695 = vst [vmem:[%s206 + $0xb0] sm:$0xff] %v1644
      %1696 = vst [vmem:[%s206 + $0xb8] sm:$0xff] %v1647
      %1697 = vst [vmem:[%s206 + $0xc0] sm:$0xff] %v1650
      %1698 = vst [vmem:[%s206 + $0xc8] sm:$0xff] %v1653
      %1699 = vst [vmem:[%s206 + $0xd0] sm:$0xff] %v1656
      %1700 = vst [vmem:[%s206 + $0xd8] sm:$0xff] %v1659
      %1701 = vst [vmem:[%s206 + $0xe0] sm:$0xff] %v1662
      %1702 = vst [vmem:[%s206 + $0xe8] sm:$0xff] %v1665
      %1703 = vst [vmem:[%s206 + $0xf0] sm:$0xff] %v1668
      %1704 = vst [vmem:[%s206 + $0xf8] sm:$0xff] %v1671
      %v1705 = vadd.f32 %v1578, %v1581
      %v1706 = vadd.f32 %v1705, %v1584
      %v1707 = vadd.f32 %v1706, %v1587
      %v1708 = vadd.f32 %v1707, %v1590
      %v1709 = vadd.f32 %v1708, %v1593
      %v1710 = vadd.f32 %v1709, %v1596
      %v1711 = vadd.f32 %v1710, %v1599
      %v1712 = vadd.f32 %v1711, %v1602
      %v1713 = vadd.f32 %v1712, %v1605
      %v1714 = vadd.f32 %v1713, %v1608
      %v1715 = vadd.f32 %v1714, %v1611
      %v1716 = vadd.f32 %v1715, %v1614
      %v1717 = vadd.f32 %v1716, %v1617
      %v1718 = vadd.f32 %v1717, %v1620
      %v1719 = vadd.f32 %v1718, %v1623
      %v1720 = vadd.f32 %v1719, %v1626
      %v1721 = vadd.f32 %v1720, %v1629
      %v1722 = vadd.f32 %v1721, %v1632
      %v1723 = vadd.f32 %v1722, %v1635
      %v1724 = vadd.f32 %v1723, %v1638
      %v1725 = vadd.f32 %v1724, %v1641
      %v1726 = vadd.f32 %v1725, %v1644
      %v1727 = vadd.f32 %v1726, %v1647
      %v1728 = vadd.f32 %v1727, %v1650
      %v1729 = vadd.f32 %v1728, %v1653
      %v1730 = vadd.f32 %v1729, %v1656
      %v1731 = vadd.f32 %v1730, %v1659
      %v1732 = vadd.f32 %v1731, %v1662
      %v1733 = vadd.f32 %v1732, %v1665
      %v1734 = vadd.f32 %v1733, %v1668
      %v1735 = vadd.f32 %v1734, %v1671
      %v1736 = vrot.slane %v1735, 4
      %v1737 = vadd.f32 %v1735, %v1736
      %v1738 = vrot.slane %v1737, 2
      %v1739 = vadd.f32 %v1737, %v1738
      %v1740 = vrot.slane %v1739, 1
      %v1741 = vadd.f32 %v1739, %v1740
      %v1742 = vmul.f32 %v1578, %v1578
      %v1743 = vmul.f32 %v1581, %v1581
      %v1744 = vmul.f32 %v1584, %v1584
      %v1745 = vmul.f32 %v1587, %v1587
      %v1746 = vmul.f32 %v1590, %v1590
      %v1747 = vmul.f32 %v1593, %v1593
      %v1748 = vmul.f32 %v1596, %v1596
      %v1749 = vmul.f32 %v1599, %v1599
      %v1750 = vmul.f32 %v1602, %v1602
      %v1751 = vmul.f32 %v1605, %v1605
      %v1752 = vmul.f32 %v1608, %v1608
      %v1753 = vmul.f32 %v1611, %v1611
      %v1754 = vmul.f32 %v1614, %v1614
      %v1755 = vmul.f32 %v1617, %v1617
      %v1756 = vmul.f32 %v1620, %v1620
      %v1757 = vmul.f32 %v1623, %v1623
      %v1758 = vmul.f32 %v1626, %v1626
      %v1759 = vmul.f32 %v1629, %v1629
      %v1760 = vmul.f32 %v1632, %v1632
      %v1761 = vmul.f32 %v1635, %v1635
      %v1762 = vmul.f32 %v1638, %v1638
      %v1763 = vmul.f32 %v1641, %v1641
      %v1764 = vmul.f32 %v1644, %v1644
      %v1765 = vmul.f32 %v1647, %v1647
      %v1766 = vmul.f32 %v1650, %v1650
      %v1767 = vmul.f32 %v1653, %v1653
      %v1768 = vmul.f32 %v1656, %v1656
      %v1769 = vmul.f32 %v1659, %v1659
      %v1770 = vmul.f32 %v1662, %v1662
      %v1771 = vmul.f32 %v1665, %v1665
      %v1772 = vmul.f32 %v1668, %v1668
      %v1773 = vmul.f32 %v1671, %v1671
      %v1774 = vadd.f32 %v1742, %v1743
      %v1775 = vadd.f32 %v1774, %v1744
      %v1776 = vadd.f32 %v1775, %v1745
      %v1777 = vadd.f32 %v1776, %v1746
      %v1778 = vadd.f32 %v1777, %v1747
      %v1779 = vadd.f32 %v1778, %v1748
      %v1780 = vadd.f32 %v1779, %v1749
      %v1781 = vadd.f32 %v1780, %v1750
      %v1782 = vadd.f32 %v1781, %v1751
      %v1783 = vadd.f32 %v1782, %v1752
      %v1784 = vadd.f32 %v1783, %v1753
      %v1785 = vadd.f32 %v1784, %v1754
      %v1786 = vadd.f32 %v1785, %v1755
      %v1787 = vadd.f32 %v1786, %v1756
      %v1788 = vadd.f32 %v1787, %v1757
      %v1789 = vadd.f32 %v1788, %v1758
      %v1790 = vadd.f32 %v1789, %v1759
      %v1791 = vadd.f32 %v1790, %v1760
      %v1792 = vadd.f32 %v1791, %v1761
      %v1793 = vadd.f32 %v1792, %v1762
      %v1794 = vadd.f32 %v1793, %v1763
      %v1795 = vadd.f32 %v1794, %v1764
      %v1796 = vadd.f32 %v1795, %v1765
      %v1797 = vadd.f32 %v1796, %v1766
      %v1798 = vadd.f32 %v1797, %v1767
      %v1799 = vadd.f32 %v1798, %v1768
      %v1800 = vadd.f32 %v1799, %v1769
      %v1801 = vadd.f32 %v1800, %v1770
      %v1802 = vadd.f32 %v1801, %v1771
      %v1803 = vadd.f32 %v1802, %v1772
      %v1804 = vadd.f32 %v1803, %v1773
      %v1805 = vrot.slane %v1804, 4
      %v1806 = vadd.f32 %v1804, %v1805
      %v1807 = vrot.slane %v1806, 2
      %v1808 = vadd.f32 %v1806, %v1807
      %v1809 = vrot.slane %v1808, 1
      %v1810 = vadd.f32 %v1808, %v1809
      %vm1811 = vcmask 1040384
      %v1812 = vsel %vm1811, %v1741, %v1810
      %1813 = vst [vmem:[%s214] sm:$0x3] %v1812
      %s1814 = smul.u32 16, %s20
      %p1815 = scmp.lt.s32.totalorder %s19, 1
      %s1816 = scalar_select %p1815, %s19, 1
      %p1817 = scmp.lt.s32.totalorder %s1814, 15
      %s1818 = scalar_select %p1817, %s1814, 15
      %s1819 = smul.addr %s1818, 2
      %s1820 = smul.addr %s1816, 32
      %s1821 = sadd.s32 %s1819, %s1820
      %s1822 = smul.addr %s1821, 8
      %s1823 = scalar_lea.vmem %s2, %s1822
      %p1824 = scmp.lt.s32.totalorder %s19, 1
      %s1825 = scalar_select %p1824, %s19, 1
      %p1826 = scmp.lt.s32.totalorder %s20, 0
      %s1827 = scalar_select %p1826, %s20, 0
      %s1828 = sadd.s32 %s1827, %s1825
      %s1829 = smul.addr %s1828, 2
      %s1830 = scalar_lea.vmem %s3, %s1829
      // Predicated region
      $region29: #{_lambda_.4} parent=27 // pred_check
        %p1831 = pneg %p94
      $region30: #{_lambda_.4} parent=27 // pred_check_branch
        %1833 = sbr.rel (%p1831) target = $region32
      $region31: #{_lambda_.4} parent=27 // pred_region
        %s1834 = smul.u32 16, %s20
      $region32: #{_lambda_.4} parent=27 // pred_fallthru
        _
      // Predicated region
      $region33: #{_lambda_.4} parent=27 // pred_check
        %p1835 = pneg %p122
      $region34: #{_lambda_.4} parent=27 // pred_check_branch
        %1837 = sbr.rel (%p1835) target = $region36
      $region35: #{_lambda_.4} parent=27 // pred_region
        _
      $region36: #{_lambda_.4} parent=27 // pred_fallthru
        _
    $region28: #{_lambda_.4} parent=5 // pred_fallthru
      _
    %p1838 = scmp.le.s32.totalorder 2, %s10
    // Predicated region
    $region37: #{_lambda_.4} parent=5 // pred_check
      %p1839 = pneg %p1838
    $region38: #{_lambda_.4} parent=5 // pred_check_branch
      %1841 = sbr.rel (%p1839) target = $region40
    $region39: #{_lambda_.4} parent=5 // pred_region
      %s1842 = ssub.s32 %s10, 2
      // Predicated region
      $region41: #{_lambda_.4} parent=39 // pred_check
        %p1843 = pneg %p100
      $region42: #{_lambda_.4} parent=39 // pred_check_branch
        %1845 = sbr.rel (%p1843) target = $region44
      $region43: #{_lambda_.4} parent=39 // pred_region
        %s1846 = smul.u32 16, %s22
        %p1847 = scmp.lt.s32.totalorder %s21, 1
        %s1848 = scalar_select %p1847, %s21, 1
        %p1849 = scmp.lt.s32.totalorder %s1846, 15
        %s1850 = scalar_select %p1849, %s1846, 15
        %s1851 = smul.addr %s1850, 2
        %s1852 = smul.addr %s1848, 32
        %s1853 = sadd.s32 %s1851, %s1852
        %s1854 = smul.addr %s1853, 8
        %s1855 = scalar_lea.vmem %s2, %s1854
      $region44: #{_lambda_.4} parent=39 // pred_fallthru
        _
      // Predicated region
      $region45: #{_lambda_.4} parent=39 // pred_check
        %p1856 = pneg %p128
      $region46: #{_lambda_.4} parent=39 // pred_check_branch
        %1858 = sbr.rel (%p1856) target = $region48
      $region47: #{_lambda_.4} parent=39 // pred_region
        %p1859 = scmp.lt.s32.totalorder %s21, 1
        %s1860 = scalar_select %p1859, %s21, 1
        %p1861 = scmp.lt.s32.totalorder %s22, 0
        %s1862 = scalar_select %p1861, %s22, 0
        %s1863 = sadd.s32 %s1862, %s1860
        %s1864 = smul.addr %s1863, 2
        %s1865 = scalar_lea.vmem %s3, %s1864
      $region48: #{_lambda_.4} parent=39 // pred_fallthru
        _
    $region40: #{_lambda_.4} parent=5 // pred_fallthru
      _
  $region6: #{_lambda_.4} parent=0 // loop_footer
    %s14 = sadd.s32 1, %s10
  $region7: #{_lambda_.4} parent=0 // loop_footer_branch
    %9 = sbr.rel target = $region3
  $region8: #{_lambda_.4} parent=0 // loop_exit
    _

</llo_original>
